<compile_context>
chip_gen: v6e
topology: v6e:2x2x1
jax: 0.10.0
libtpu: 0.0.40
codegen_flags: <defaults>
</compile_context>

<pallas_src>
import functools

import jax
import jax.numpy as jnp
from jax.experimental import pallas as pl
from jax.experimental.pallas import tpu as pltpu


# ----------------------------------------------------------------------------
# tile-size helpers
# ----------------------------------------------------------------------------
def _pick_chunk(g, max_chunk=128):
    """Largest divisor of g that is <= max_chunk (g itself when small)."""
    if g <= max_chunk:
        return g
    for c in range(max_chunk, 0, -1):
        if g % c == 0:
            return c
    return 1


def _lane_tiles(n, target=2048):
    """Tile the lane (last) dim; full array if small or not cleanly divisible."""
    # TODO(synk): pad n up to a multiple of `target` for very large ragged n.
    if n <= target or n % target != 0:
        return n, 1
    return target, n // target


_PARALLEL = pltpu.CompilerParams(dimension_semantics=("parallel",))


# ----------------------------------------------------------------------------
# Pallas kernels
# ----------------------------------------------------------------------------
def _bmm_kernel(a_ref, b_ref, o_ref):
    # (g, M, K) @ (g, K, N) -> (g, M, N), batched on g
    o_ref[...] = jax.lax.dot_general(
        a_ref[...], b_ref[...],
        dimension_numbers=(((2,), (1,)), ((0,), (0,))),
        preferred_element_type=jnp.float32,
    )


def _ca_bn_kernel(x_ref, w1t_ref, b1_ref, w2t_ref, b2_ref, ca_ref, bn_ref, *, eps):
    # x: (B, Cb, HW).  One read of x feeds both channel-attention and BN.
    x = x_ref[...]
    # --- squeeze-excite channel attention (1x1 convs on global avg pool) ---
    gap = jnp.mean(x, axis=-1)                                         # (B, Cb)
    h = jnp.dot(gap, w1t_ref[...], preferred_element_type=jnp.float32) + b1_ref[...]
    h = jnp.maximum(h, 0.0)                                            # (B, Cr)
    s = jnp.dot(h, w2t_ref[...], preferred_element_type=jnp.float32) + b2_ref[...]
    s = jax.nn.sigmoid(s)                                              # (B, Cb)
    ca_ref[...] = x * s[:, :, None]
    # --- BatchNorm2d, training-mode batch stats, affine identity at init ---
    mean = jnp.mean(jnp.mean(x, axis=2, keepdims=True), axis=0, keepdims=True)
    d = x - mean
    var = jnp.mean(jnp.mean(d * d, axis=2, keepdims=True), axis=0, keepdims=True)
    bn_ref[...] = d * jax.lax.rsqrt(var + eps)


def _conv_kernel(p_ref, w_ref, o_ref, *, relu):
    # im2col matmul: (Cout, 9*Cin) @ (9*Cin, H*W) -> lane-dense (Cout, H*W)
    out = jnp.dot(w_ref[...], p_ref[0], preferred_element_type=jnp.float32)
    if relu:
        out = jnp.maximum(out, 0.0)
    o_ref[0] = out


def _spectral_kernel(xr_ref, xi_ref, w1rt_ref, w1it_ref, w2rt_ref, w2it_ref,
                     zr_ref, zi_ref):
    # channels-first complex MLP on the spectrum:
    #   Y = relu_split(W1^T X);  Z = W2^T Y      with X, Z (Cb, N), Y (Cf, N)
    xr, xi = xr_ref[...], xi_ref[...]
    w1r, w1i = w1rt_ref[...], w1it_ref[...]
    yr = (jnp.dot(w1r, xr, preferred_element_type=jnp.float32)
          - jnp.dot(w1i, xi, preferred_element_type=jnp.float32))
    yi = (jnp.dot(w1r, xi, preferred_element_type=jnp.float32)
          + jnp.dot(w1i, xr, preferred_element_type=jnp.float32))
    yr = jnp.maximum(yr, 0.0)
    yi = jnp.maximum(yi, 0.0)
    w2r, w2i = w2rt_ref[...], w2it_ref[...]
    zr_ref[...] = (jnp.dot(w2r, yr, preferred_element_type=jnp.float32)
                   - jnp.dot(w2i, yi, preferred_element_type=jnp.float32))
    zi_ref[...] = (jnp.dot(w2r, yi, preferred_element_type=jnp.float32)
                   + jnp.dot(w2i, yr, preferred_element_type=jnp.float32))


def _combine_tail_kernel(y1_ref, y2_ref, x_ref, o_ref, *, c_half):
    # Fused Basic_block epilogue + Matrix_P_update tail, one batch image/program:
    #   out = y1 + y1_max * tanh(y2 / y1_max) + x        (y1_max >= 1, over C)
    #   m1, m2 = out.chunk(2, dim=channel)
    #   P = m1 @ m2^T, then L2-normalize over the flattened (H*H) per (b, c).
    y1 = y1_ref[0]                                            # (Cb, H, W)
    y2 = y2_ref[0]
    x = x_ref[0]
    y1m = jnp.maximum(jnp.max(y1, axis=0, keepdims=True), 1.0)        # (1, H, W)
    out = y1 + y1m * jnp.tanh(y2 * pl.reciprocal(y1m, approx=True)) + x
    m1 = out[:c_half]                                         # (C, H, W)
    m2 = out[c_half:]                                         # (C, H, W)
    p = jax.lax.dot_general(
        m1, m2,
        dimension_numbers=(((2,), (2,)), ((0,), (0,))),       # contract last dims
        preferred_element_type=jnp.float32,
    )                                                         # (C, H, H)
    ssq = jnp.sum(jnp.sum(p * p, axis=2, keepdims=True), axis=1, keepdims=True)
    denom = jnp.maximum(jnp.sqrt(ssq), 1e-12)                 # F.normalize eps
    o_ref[0] = p * (1.0 / denom)


# ----------------------------------------------------------------------------
# kernel wrappers
# ----------------------------------------------------------------------------
def bmm(a, b):
    """Batched matmul a (G,M,K) @ b (G,K,N), G chunked into large blocks."""
    G, M, K = a.shape
    _, _, N = b.shape
    gb = _pick_chunk(G)
    return pl.pallas_call(
        _bmm_kernel,
        out_shape=jax.ShapeDtypeStruct((G, M, N), jnp.float32),
        grid=(G // gb,),
        in_specs=[pl.BlockSpec((gb, M, K), lambda g: (g, 0, 0)),
                  pl.BlockSpec((gb, K, N), lambda g: (g, 0, 0))],
        out_specs=pl.BlockSpec((gb, M, N), lambda g: (g, 0, 0)),
        compiler_params=_PARALLEL,
    )(a, b)


def ca_bn(x_flat, params, eps=1e-5):
    """Fused channel-attention + batch-norm on (B, Cb, HW)."""
    B, Cb, HW = x_flat.shape
    Cr = params["ca_w1t"].shape[1]
    # TODO(synk): tile over HW (with two-pass BN stats) for production sizes
    # that exceed v7x's 64 MiB VMEM; the demo slab is tiny.
    spec_x = pl.BlockSpec((B, Cb, HW), lambda i: (0, 0, 0))
    return pl.pallas_call(
        functools.partial(_ca_bn_kernel, eps=eps),
        out_shape=(jax.ShapeDtypeStruct((B, Cb, HW), jnp.float32),
                   jax.ShapeDtypeStruct((B, Cb, HW), jnp.float32)),
        grid=(1,),
        in_specs=[spec_x,
                  pl.BlockSpec((Cb, Cr), lambda i: (0, 0)),
                  pl.BlockSpec((1, Cr), lambda i: (0, 0)),
                  pl.BlockSpec((Cr, Cb), lambda i: (0, 0)),
                  pl.BlockSpec((1, Cb), lambda i: (0, 0))],
        out_specs=(spec_x, spec_x),
    )(x_flat, params["ca_w1t"], params["ca_b1"],
      params["ca_w2t"], params["ca_b2"])


def conv3x3_same(x_nchw, w_flat, relu=False):
    """3x3 'same' conv, no bias, NCHW, via wrapper im2col + one matmul/image."""
    B, cin, H, W = x_nchw.shape
    cout = w_flat.shape[0]
    K9 = 9 * cin
    HW = H * W
    # TODO(synk): in-kernel halo/im2col (roll + mask) would avoid the 9x patch
    # slab in HBM; kept as XLA glue for robustness at these sizes.
    xp = jnp.pad(x_nchw, ((0, 0), (0, 0), (1, 1), (1, 1)))
    taps = [xp[:, :, dy:dy + H, dx:dx + W] for dy in range(3) for dx in range(3)]
    patches = jnp.stack(taps, axis=1).reshape(B, K9, HW)        # tap-major, then cin
    out = pl.pallas_call(
        functools.partial(_conv_kernel, relu=relu),
        out_shape=jax.ShapeDtypeStruct((B, cout, HW), jnp.float32),
        grid=(B,),
        in_specs=[pl.BlockSpec((1, K9, HW), lambda b: (b, 0, 0)),
                  pl.BlockSpec((cout, K9), lambda b: (0, 0))],
        out_specs=pl.BlockSpec((1, cout, HW), lambda b: (b, 0, 0)),
        compiler_params=_PARALLEL,
    )(patches, w_flat)
    return out.reshape(B, cout, H, W)


def spectral(xr, xi, params):
    """Fused complex matmul -> split ReLU -> complex matmul, channels-first."""
    Cb, N = xr.shape
    Cf = params["w1rt"].shape[0]
    bn, nt = _lane_tiles(N)
    x_spec = pl.BlockSpec((Cb, bn), lambda n: (0, n))
    w1_spec = pl.BlockSpec((Cf, Cb), lambda n: (0, 0))
    w2_spec = pl.BlockSpec((Cb, Cf), lambda n: (0, 0))
    return pl.pallas_call(
        _spectral_kernel,
        out_shape=(jax.ShapeDtypeStruct((Cb, N), jnp.float32),
                   jax.ShapeDtypeStruct((Cb, N), jnp.float32)),
        grid=(nt,),
        in_specs=[x_spec, x_spec, w1_spec, w1_spec, w2_spec, w2_spec],
        out_specs=(x_spec, x_spec),
        compiler_params=_PARALLEL,
    )(xr, xi, params["w1rt"], params["w1it"], params["w2rt"], params["w2it"])


def combine_tail(y1, y2, x, c_half):
    """Fused epilogue: combine + chunk + m1@m2^T + L2 normalize -> (B,C,H,H)."""
    B, Cb, H, W = y1.shape
    spec_in = pl.BlockSpec((1, Cb, H, W), lambda b: (b, 0, 0, 0))
    spec_out = pl.BlockSpec((1, c_half, H, H), lambda b: (b, 0, 0, 0))
    return pl.pallas_call(
        functools.partial(_combine_tail_kernel, c_half=c_half),
        out_shape=jax.ShapeDtypeStruct((B, c_half, H, H), jnp.float32),
        grid=(B,),
        in_specs=[spec_in, spec_in, spec_in],
        out_specs=spec_out,
        compiler_params=_PARALLEL,
    )(y1, y2, x)


# ----------------------------------------------------------------------------
# Parameters (deterministic init; matches __init__ shapes, not a checkpoint)
# ----------------------------------------------------------------------------
def init_params(key, in_channel, ratio_spatial=1, ratio_freq=1, r=3):
    Cb = in_channel * 2
    Cr = Cb // r
    Cf = Cb * ratio_freq
    keys = jax.random.split(key, 8)

    def ku(k, shape, fan_in):
        bound = (6.0 / fan_in) ** 0.5
        return jax.random.uniform(k, shape, jnp.float32, -bound, bound)

    params = {}
    # Channel attention 1x1 convs (stored transposed for right-matmul).
    w1 = ku(keys[0], (Cr, Cb), Cb)                      # (Cout, Cin)
    params["ca_w1t"] = jnp.transpose(w1)                # (Cb, Cr)
    params["ca_b1"] = jax.random.uniform(
        keys[1], (1, Cr), jnp.float32, -1.0 / Cb ** 0.5, 1.0 / Cb ** 0.5)
    w2 = ku(keys[2], (Cb, Cr), Cr)
    params["ca_w2t"] = jnp.transpose(w2)                # (Cr, Cb)
    params["ca_b2"] = jax.random.uniform(
        keys[3], (1, Cb), jnp.float32, -1.0 / Cr ** 0.5, 1.0 / Cr ** 0.5)

    # 3x3 convs, OIHW, bias=False -> pre-flattened to (Cout, 9*Cin), tap-major.
    def flatten_conv(w_oihw):
        cout = w_oihw.shape[0]
        return jnp.transpose(w_oihw, (0, 2, 3, 1)).reshape(cout, -1)

    conv1 = ku(keys[4], (Cb * ratio_spatial, Cb, 3, 3), Cb * 9)
    conv2 = ku(keys[5], (Cb, Cb * ratio_spatial, 3, 3), Cb * ratio_spatial * 9)
    params["conv1_wf"] = flatten_conv(conv1)
    params["conv2_wf"] = flatten_conv(conv2)

    # Spectral weights w1: (2, Cb, Cf), w2: (2, Cf, Cb) -> pre-transposed for
    # the channels-first kernel (y^T = W^T x^T).
    w1c = ku(keys[6], (2, Cb, Cf), Cb)
    w2c = ku(keys[7], (2, Cf, Cb), Cf)
    params["w1rt"] = jnp.transpose(w1c[0])              # (Cf, Cb)
    params["w1it"] = jnp.transpose(w1c[1])
    params["w2rt"] = jnp.transpose(w2c[0])              # (Cb, Cf)
    params["w2it"] = jnp.transpose(w2c[1])
    return params


# ----------------------------------------------------------------------------
# Forward pass (Matrix_P_update)
# ----------------------------------------------------------------------------
def matrix_p_update(u, z, q, params):
    B, C, H, W = u.shape
    assert H == W
    Cb = 2 * C
    HW = H * W
    G = B * C

    # m = u @ q ; x = cat((m, z), dim=1)
    m = bmm(u.reshape(G, H, W), q.reshape(G, H, W)).reshape(B, C, H, W)
    x = jnp.concatenate([m, z], axis=1)                 # (B, Cb, H, W)
    x_flat = x.reshape(B, Cb, HW)

    # ---------------- Basic_block ----------------
    # fused channel attention + batch norm (one read of x)
    y_ca, y_bn = ca_bn(x_flat, params)

    # conv1 -> relu -> conv2 (NCHW im2col matmuls)
    y1 = conv3x3_same(y_ca.reshape(B, Cb, H, W), params["conv1_wf"], relu=True)
    y1 = conv3x3_same(y1, params["conv2_wf"], relu=False)        # (B, Cb, H, W)

    # spectral branch
    # TODO(synk): rfft2/irfft2 have no Pallas primitive; FFTs stay in plain JAX.
    spec = jnp.fft.rfft2(y_bn.reshape(B, Cb, H, W), axes=(-2, -1))
    Wf = spec.shape[-1]
    spec_cf = jnp.transpose(spec, (1, 0, 2, 3)).reshape(Cb, B * H * Wf)
    zr, zi = spectral(jnp.real(spec_cf).astype(jnp.float32),
                      jnp.imag(spec_cf).astype(jnp.float32), params)
    spec2 = (zr + 1j * zi).reshape(Cb, B, H, Wf)
    spec2 = jnp.transpose(spec2, (1, 0, 2, 3))                   # (B, Cb, H, Wf)
    y2 = jnp.fft.irfft2(spec2, s=(H, W), axes=(-2, -1)).astype(jnp.float32)

    # ---------------- fused epilogue + tail ----------------
    # out = y1 + y1_max*tanh(y2/y1_max) + x ; m1,m2 = chunk(out) ;
    # P = normalize(m1 @ m2^T) — all in one kernel, `out` never touches HBM.
    P = combine_tail(y1, y2, x, C)                               # (B, C, H, H)
    return P


# ----------------------------------------------------------------------------
if __name__ == "__main__":
    key = jax.random.PRNGKey(0)
    k_u, k_z, k_q, k_p = jax.random.split(key, 4)
    B, C, H = 2, 4, 16
    u = jax.random.normal(k_u, (B, C, H, H), jnp.float32)
    z = jax.random.normal(k_z, (B, C, H, H), jnp.float32)
    q = jax.random.normal(k_q, (B, C, H, H), jnp.float32)
    params = init_params(k_p, C, ratio_spatial=1, ratio_freq=1)

    fwd = jax.jit(lambda u, z, q: matrix_p_update(u, z, q, params))
    P = fwd(u, z, q)
    jax.block_until_ready(P)
    assert P.shape == (B, C, H, H) and P.dtype == jnp.float32
    print("KERNEL_OK")
</pallas_src>

<mosaic_0001>
module attributes {stable_mosaic.version = 11 : i64} {
  func.func @_bmm_kernel(%arg0: i32, %arg1: memref<8x16x16xf32, #tpu.memory_space<vmem>>, %arg2: memref<8x16x16xf32, #tpu.memory_space<vmem>>, %arg3: memref<8x16x16xf32, #tpu.memory_space<vmem>>) attributes {dimension_semantics = [#tpu.dimension_semantics<parallel>], iteration_bounds = array<i64: 1>, scalar_prefetch = 0 : i64, scratch_operands = 0 : i64, tpu.core_type = #tpu.core_type<tc>, window_params = [{transform_indices = @transform_0, window_bounds = array<i64: 8, 16, 16>}, {transform_indices = @transform_1, window_bounds = array<i64: 8, 16, 16>}, {transform_indices = @transform_2, window_bounds = array<i64: 8, 16, 16>}]} {
    %c0 = arith.constant 0 : index
    %c0_0 = arith.constant 0 : index
    %c0_1 = arith.constant 0 : index
    %0 = vector.load %arg1[%c0, %c0_0, %c0_1] : memref<8x16x16xf32, #tpu.memory_space<vmem>>, vector<8x16x16xf32>
    %c0_2 = arith.constant 0 : index
    %c0_3 = arith.constant 0 : index
    %c0_4 = arith.constant 0 : index
    %1 = vector.load %arg2[%c0_2, %c0_3, %c0_4] : memref<8x16x16xf32, #tpu.memory_space<vmem>>, vector<8x16x16xf32>
    %cst = arith.constant dense<0.000000e+00> : vector<8x16x16xf32>
    %2 = tpu.matmul %0, %1, %cst {dimension_numbers = #tpu.dot_dimension_numbers<[2], [1], [1], [2], [0, 0, 0, 1, 1, 2], [0], [0]>} : vector<8x16x16xf32>, vector<8x16x16xf32>, vector<8x16x16xf32> -> vector<8x16x16xf32>
    %c0_5 = arith.constant 0 : index
    %c0_6 = arith.constant 0 : index
    %c0_7 = arith.constant 0 : index
    %3 = vector.load %arg3[%c0_5, %c0_6, %c0_7] : memref<8x16x16xf32, #tpu.memory_space<vmem>>, vector<8x16x16xf32>
    tpu.vector_store %arg3[%c0_5, %c0_6, %c0_7], %2 {strides = array<i32>} : memref<8x16x16xf32, #tpu.memory_space<vmem>>, vector<8x16x16xf32>,
    return
  }
  func.func @transform_0(%arg0: i32) -> (i32, i32, i32) {
    %c0_i32 = arith.constant 0 : i32
    %c0_i32_0 = arith.constant 0 : i32
    %c0_i32_1 = arith.constant 0 : i32
    return %arg0, %c0_i32, %c0_i32_0 : i32, i32, i32
  }
  func.func @transform_1(%arg0: i32) -> (i32, i32, i32) {
    %c0_i32 = arith.constant 0 : i32
    %c0_i32_0 = arith.constant 0 : i32
    %c0_i32_1 = arith.constant 0 : i32
    return %arg0, %c0_i32, %c0_i32_0 : i32, i32, i32
  }
  func.func @transform_2(%arg0: i32) -> (i32, i32, i32) {
    %c0_i32 = arith.constant 0 : i32
    %c0_i32_0 = arith.constant 0 : i32
    %c0_i32_1 = arith.constant 0 : i32
    return %arg0, %c0_i32, %c0_i32_0 : i32, i32, i32
  }
}

module attributes {stable_mosaic.version = 11 : i64} {
  func.func @_ca_bn_kernel(%arg0: i32, %arg1: memref<2x8x256xf32, #tpu.memory_space<vmem>>, %arg2: memref<8x2xf32, #tpu.memory_space<vmem>>, %arg3: memref<1x2xf32, #tpu.memory_space<vmem>>, %arg4: memref<2x8xf32, #tpu.memory_space<vmem>>, %arg5: memref<1x8xf32, #tpu.memory_space<vmem>>, %arg6: memref<2x8x256xf32, #tpu.memory_space<vmem>>, %arg7: memref<2x8x256xf32, #tpu.memory_space<vmem>>) attributes {dimension_semantics = [#tpu.dimension_semantics<arbitrary>], iteration_bounds = array<i64: 1>, scalar_prefetch = 0 : i64, scratch_operands = 0 : i64, tpu.core_type = #tpu.core_type<tc>, window_params = [{pipeline_mode = #tpu.pipeline_mode<synchronous>, transform_indices = @transform_0, window_bounds = array<i64: 2, 8, 256>}, {pipeline_mode = #tpu.pipeline_mode<synchronous>, transform_indices = @transform_1, window_bounds = array<i64: 8, 2>}, {pipeline_mode = #tpu.pipeline_mode<synchronous>, transform_indices = @transform_2, window_bounds = array<i64: 1, 2>}, {pipeline_mode = #tpu.pipeline_mode<synchronous>, transform_indices = @transform_3, window_bounds = array<i64: 2, 8>}, {pipeline_mode = #tpu.pipeline_mode<synchronous>, transform_indices = @transform_4, window_bounds = array<i64: 1, 8>}, {pipeline_mode = #tpu.pipeline_mode<synchronous>, transform_indices = @transform_5, window_bounds = array<i64: 2, 8, 256>}, {pipeline_mode = #tpu.pipeline_mode<synchronous>, transform_indices = @transform_6, window_bounds = array<i64: 2, 8, 256>}]} {
    %c0 = arith.constant 0 : index
    %c0_0 = arith.constant 0 : index
    %c0_1 = arith.constant 0 : index
    %0 = vector.load %arg1[%c0, %c0_0, %c0_1] : memref<2x8x256xf32, #tpu.memory_space<vmem>>, vector<2x8x256xf32>
    %cst = arith.constant dense<0.000000e+00> : vector<2x8xf32>
    %1 = vector.multi_reduction <add>, %0, %cst [2] : vector<2x8x256xf32> to vector<2x8xf32>
    %cst_2 = arith.constant 2.560000e+02 : f32
    %2 = vector.broadcast %cst_2 : f32 to vector<2x8xf32>
    %3 = arith.divf %1, %2 : vector<2x8xf32>
    %c0_3 = arith.constant 0 : index
    %c0_4 = arith.constant 0 : index
    %4 = vector.load %arg2[%c0_3, %c0_4] : memref<8x2xf32, #tpu.memory_space<vmem>>, vector<8x2xf32>
    %cst_5 = arith.constant dense<0.000000e+00> : vector<2x2xf32>
    %5 = tpu.matmul %3, %4, %cst_5 {dimension_numbers = #tpu.dot_dimension_numbers<[1], [0], [0], [1], [0, 0, 1, 1], [], []>} : vector<2x8xf32>, vector<8x2xf32>, vector<2x2xf32> -> vector<2x2xf32>
    %c0_6 = arith.constant 0 : index
    %c0_7 = arith.constant 0 : index
    %6 = vector.load %arg3[%c0_6, %c0_7] : memref<1x2xf32, #tpu.memory_space<vmem>>, vector<1x2xf32>
    %7 = vector.broadcast %6 : vector<1x2xf32> to vector<2x2xf32>
    %8 = arith.addf %5, %7 : vector<2x2xf32>
    %cst_8 = arith.constant 0.000000e+00 : f32
    %9 = vector.broadcast %cst_8 : f32 to vector<2x2xf32>
    %10 = arith.maximumf %8, %9 : vector<2x2xf32>
    %c0_9 = arith.constant 0 : index
    %c0_10 = arith.constant 0 : index
    %11 = vector.load %arg4[%c0_9, %c0_10] : memref<2x8xf32, #tpu.memory_space<vmem>>, vector<2x8xf32>
    %cst_11 = arith.constant dense<0.000000e+00> : vector<2x8xf32>
    %12 = tpu.matmul %10, %11, %cst_11 {dimension_numbers = #tpu.dot_dimension_numbers<[1], [0], [0], [1], [0, 0, 1, 1], [], []>} : vector<2x2xf32>, vector<2x8xf32>, vector<2x8xf32> -> vector<2x8xf32>
    %c0_12 = arith.constant 0 : index
    %c0_13 = arith.constant 0 : index
    %13 = vector.load %arg5[%c0_12, %c0_13] : memref<1x8xf32, #tpu.memory_space<vmem>>, vector<1x8xf32>
    %14 = vector.broadcast %13 : vector<1x8xf32> to vector<2x8xf32>
    %15 = arith.addf %12, %14 : vector<2x8xf32>
    %16 = arith.negf %15 : vector<2x8xf32>
    %17 = math.exp %16 : vector<2x8xf32>
    %cst_14 = arith.constant 1.000000e+00 : f32
    %18 = vector.broadcast %cst_14 : f32 to vector<2x8xf32>
    %19 = arith.addf %18, %17 : vector<2x8xf32>
    %20 = arith.divf %18, %19 : vector<2x8xf32>
    %21 = vector.shape_cast %20 : vector<2x8xf32> to vector<2x8x1xf32>
    %22 = vector.broadcast %21 : vector<2x8x1xf32> to vector<2x8x256xf32>
    %23 = arith.mulf %0, %22 : vector<2x8x256xf32>
    %c0_15 = arith.constant 0 : index
    %c0_16 = arith.constant 0 : index
    %c0_17 = arith.constant 0 : index
    %24 = vector.load %arg6[%c0_15, %c0_16, %c0_17] : memref<2x8x256xf32, #tpu.memory_space<vmem>>, vector<2x8x256xf32>
    tpu.vector_store %arg6[%c0_15, %c0_16, %c0_17], %23 {strides = array<i32>} : memref<2x8x256xf32, #tpu.memory_space<vmem>>, vector<2x8x256xf32>,
    %cst_18 = arith.constant dense<0.000000e+00> : vector<2x8xf32>
    %25 = vector.multi_reduction <add>, %0, %cst_18 [2] : vector<2x8x256xf32> to vector<2x8xf32>
    %26 = vector.shape_cast %25 : vector<2x8xf32> to vector<2x8x1xf32>
    %cst_19 = arith.constant 2.560000e+02 : f32
    %27 = vector.broadcast %cst_19 : f32 to vector<2x8x1xf32>
    %28 = arith.divf %26, %27 : vector<2x8x1xf32>
    %cst_20 = arith.constant dense<0.000000e+00> : vector<8x1xf32>
    %29 = vector.multi_reduction <add>, %28, %cst_20 [0] : vector<2x8x1xf32> to vector<8x1xf32>
    %30 = vector.shape_cast %29 : vector<8x1xf32> to vector<1x8x1xf32>
    %cst_21 = arith.constant 2.000000e+00 : f32
    %31 = vector.broadcast %cst_21 : f32 to vector<1x8x1xf32>
    %32 = arith.divf %30, %31 : vector<1x8x1xf32>
    %33 = vector.broadcast %32 : vector<1x8x1xf32> to vector<2x8x256xf32>
    %34 = arith.subf %0, %33 : vector<2x8x256xf32>
    %35 = arith.mulf %34, %34 : vector<2x8x256xf32>
    %cst_22 = arith.constant dense<0.000000e+00> : vector<2x8xf32>
    %36 = vector.multi_reduction <add>, %35, %cst_22 [2] : vector<2x8x256xf32> to vector<2x8xf32>
    %37 = vector.shape_cast %36 : vector<2x8xf32> to vector<2x8x1xf32>
    %cst_23 = arith.constant 2.560000e+02 : f32
    %38 = vector.broadcast %cst_23 : f32 to vector<2x8x1xf32>
    %39 = arith.divf %37, %38 : vector<2x8x1xf32>
    %cst_24 = arith.constant dense<0.000000e+00> : vector<8x1xf32>
    %40 = vector.multi_reduction <add>, %39, %cst_24 [0] : vector<2x8x1xf32> to vector<8x1xf32>
    %41 = vector.shape_cast %40 : vector<8x1xf32> to vector<1x8x1xf32>
    %cst_25 = arith.constant 2.000000e+00 : f32
    %42 = vector.broadcast %cst_25 : f32 to vector<1x8x1xf32>
    %43 = arith.divf %41, %42 : vector<1x8x1xf32>
    %cst_26 = arith.constant 9.99999974E-6 : f32
    %44 = vector.broadcast %cst_26 : f32 to vector<1x8x1xf32>
    %45 = arith.addf %43, %44 : vector<1x8x1xf32>
    %46 = math.rsqrt %45 : vector<1x8x1xf32>
    %47 = vector.broadcast %46 : vector<1x8x1xf32> to vector<2x8x256xf32>
    %48 = arith.mulf %34, %47 : vector<2x8x256xf32>
    %c0_27 = arith.constant 0 : index
    %c0_28 = arith.constant 0 : index
    %c0_29 = arith.constant 0 : index
    %49 = vector.load %arg7[%c0_27, %c0_28, %c0_29] : memref<2x8x256xf32, #tpu.memory_space<vmem>>, vector<2x8x256xf32>
    tpu.vector_store %arg7[%c0_27, %c0_28, %c0_29], %48 {strides = array<i32>} : memref<2x8x256xf32, #tpu.memory_space<vmem>>, vector<2x8x256xf32>,
    return
  }
  func.func @transform_0(%arg0: i32) -> (i32, i32, i32) {
    %c0_i32 = arith.constant 0 : i32
    %c0_i32_0 = arith.constant 0 : i32
    %c0_i32_1 = arith.constant 0 : i32
    %c0_i32_2 = arith.constant 0 : i32
    return %c0_i32, %c0_i32_0, %c0_i32_1 : i32, i32, i32
  }
  func.func @transform_1(%arg0: i32) -> (i32, i32) {
    %c0_i32 = arith.constant 0 : i32
    %c0_i32_0 = arith.constant 0 : i32
    %c0_i32_1 = arith.constant 0 : i32
    return %c0_i32, %c0_i32_0 : i32, i32
  }
  func.func @transform_2(%arg0: i32) -> (i32, i32) {
    %c0_i32 = arith.constant 0 : i32
    %c0_i32_0 = arith.constant 0 : i32
    %c0_i32_1 = arith.constant 0 : i32
    return %c0_i32, %c0_i32_0 : i32, i32
  }
  func.func @transform_3(%arg0: i32) -> (i32, i32) {
    %c0_i32 = arith.constant 0 : i32
    %c0_i32_0 = arith.constant 0 : i32
    %c0_i32_1 = arith.constant 0 : i32
    return %c0_i32, %c0_i32_0 : i32, i32
  }
  func.func @transform_4(%arg0: i32) -> (i32, i32) {
    %c0_i32 = arith.constant 0 : i32
    %c0_i32_0 = arith.constant 0 : i32
    %c0_i32_1 = arith.constant 0 : i32
    return %c0_i32, %c0_i32_0 : i32, i32
  }
  func.func @transform_5(%arg0: i32) -> (i32, i32, i32) {
    %c0_i32 = arith.constant 0 : i32
    %c0_i32_0 = arith.constant 0 : i32
    %c0_i32_1 = arith.constant 0 : i32
    %c0_i32_2 = arith.constant 0 : i32
    return %c0_i32, %c0_i32_0, %c0_i32_1 : i32, i32, i32
  }
  func.func @transform_6(%arg0: i32) -> (i32, i32, i32) {
    %c0_i32 = arith.constant 0 : i32
    %c0_i32_0 = arith.constant 0 : i32
    %c0_i32_1 = arith.constant 0 : i32
    %c0_i32_2 = arith.constant 0 : i32
    return %c0_i32, %c0_i32_0, %c0_i32_1 : i32, i32, i32
  }
}

module attributes {stable_mosaic.version = 11 : i64} {
  func.func @_conv_kernel(%arg0: i32, %arg1: memref<1x72x256xf32, #tpu.memory_space<vmem>>, %arg2: memref<8x72xf32, #tpu.memory_space<vmem>>, %arg3: memref<1x8x256xf32, #tpu.memory_space<vmem>>) attributes {dimension_semantics = [#tpu.dimension_semantics<parallel>], iteration_bounds = array<i64: 2>, scalar_prefetch = 0 : i64, scratch_operands = 0 : i64, tpu.core_type = #tpu.core_type<tc>, window_params = [{transform_indices = @transform_0, window_bounds = array<i64: 1, 72, 256>}, {pipeline_mode = #tpu.pipeline_mode<synchronous>, transform_indices = @transform_1, window_bounds = array<i64: 8, 72>}, {transform_indices = @transform_2, window_bounds = array<i64: 1, 8, 256>}]} {
    %c0 = arith.constant 0 : index
    %c0_0 = arith.constant 0 : index
    %0 = vector.load %arg2[%c0, %c0_0] : memref<8x72xf32, #tpu.memory_space<vmem>>, vector<8x72xf32>
    %c0_1 = arith.constant 0 : index
    %c0_2 = arith.constant 0 : index
    %c0_3 = arith.constant 0 : index
    %1 = vector.load %arg1[%c0_1, %c0_2, %c0_3] : memref<1x72x256xf32, #tpu.memory_space<vmem>>, vector<1x72x256xf32>
    %2 = vector.shape_cast %1 : vector<1x72x256xf32> to vector<72x256xf32>
    %cst = arith.constant dense<0.000000e+00> : vector<8x256xf32>
    %3 = tpu.matmul %0, %2, %cst {dimension_numbers = #tpu.dot_dimension_numbers<[1], [0], [0], [1], [0, 0, 1, 1], [], []>} : vector<8x72xf32>, vector<72x256xf32>, vector<8x256xf32> -> vector<8x256xf32>
    %cst_4 = arith.constant 0.000000e+00 : f32
    %4 = vector.broadcast %cst_4 : f32 to vector<8x256xf32>
    %5 = arith.maximumf %3, %4 : vector<8x256xf32>
    %c0_5 = arith.constant 0 : index
    %c0_6 = arith.constant 0 : index
    %c0_7 = arith.constant 0 : index
    %6 = vector.load %arg3[%c0_5, %c0_6, %c0_7] : memref<1x8x256xf32, #tpu.memory_space<vmem>>, vector<1x8x256xf32>
    %7 = vector.shape_cast %6 : vector<1x8x256xf32> to vector<8x256xf32>
    %8 = vector.shape_cast %5 : vector<8x256xf32> to vector<1x8x256xf32>
    tpu.vector_store %arg3[%c0_5, %c0_6, %c0_7], %8 {strides = array<i32>} : memref<1x8x256xf32, #tpu.memory_space<vmem>>, vector<1x8x256xf32>,
    return
  }
  func.func @transform_0(%arg0: i32) -> (i32, i32, i32) {
    %c0_i32 = arith.constant 0 : i32
    %c0_i32_0 = arith.constant 0 : i32
    %c0_i32_1 = arith.constant 0 : i32
    return %arg0, %c0_i32, %c0_i32_0 : i32, i32, i32
  }
  func.func @transform_1(%arg0: i32) -> (i32, i32) {
    %c0_i32 = arith.constant 0 : i32
    %c0_i32_0 = arith.constant 0 : i32
    %c0_i32_1 = arith.constant 0 : i32
    return %c0_i32, %c0_i32_0 : i32, i32
  }
  func.func @transform_2(%arg0: i32) -> (i32, i32, i32) {
    %c0_i32 = arith.constant 0 : i32
    %c0_i32_0 = arith.constant 0 : i32
    %c0_i32_1 = arith.constant 0 : i32
    return %arg0, %c0_i32, %c0_i32_0 : i32, i32, i32
  }
}

module attributes {stable_mosaic.version = 11 : i64} {
  func.func @_conv_kernel(%arg0: i32, %arg1: memref<1x72x256xf32, #tpu.memory_space<vmem>>, %arg2: memref<8x72xf32, #tpu.memory_space<vmem>>, %arg3: memref<1x8x256xf32, #tpu.memory_space<vmem>>) attributes {dimension_semantics = [#tpu.dimension_semantics<parallel>], iteration_bounds = array<i64: 2>, scalar_prefetch = 0 : i64, scratch_operands = 0 : i64, tpu.core_type = #tpu.core_type<tc>, window_params = [{transform_indices = @transform_0, window_bounds = array<i64: 1, 72, 256>}, {pipeline_mode = #tpu.pipeline_mode<synchronous>, transform_indices = @transform_1, window_bounds = array<i64: 8, 72>}, {transform_indices = @transform_2, window_bounds = array<i64: 1, 8, 256>}]} {
    %c0 = arith.constant 0 : index
    %c0_0 = arith.constant 0 : index
    %0 = vector.load %arg2[%c0, %c0_0] : memref<8x72xf32, #tpu.memory_space<vmem>>, vector<8x72xf32>
    %c0_1 = arith.constant 0 : index
    %c0_2 = arith.constant 0 : index
    %c0_3 = arith.constant 0 : index
    %1 = vector.load %arg1[%c0_1, %c0_2, %c0_3] : memref<1x72x256xf32, #tpu.memory_space<vmem>>, vector<1x72x256xf32>
    %2 = vector.shape_cast %1 : vector<1x72x256xf32> to vector<72x256xf32>
    %cst = arith.constant dense<0.000000e+00> : vector<8x256xf32>
    %3 = tpu.matmul %0, %2, %cst {dimension_numbers = #tpu.dot_dimension_numbers<[1], [0], [0], [1], [0, 0, 1, 1], [], []>} : vector<8x72xf32>, vector<72x256xf32>, vector<8x256xf32> -> vector<8x256xf32>
    %c0_4 = arith.constant 0 : index
    %c0_5 = arith.constant 0 : index
    %c0_6 = arith.constant 0 : index
    %4 = vector.load %arg3[%c0_4, %c0_5, %c0_6] : memref<1x8x256xf32, #tpu.memory_space<vmem>>, vector<1x8x256xf32>
    %5 = vector.shape_cast %4 : vector<1x8x256xf32> to vector<8x256xf32>
    %6 = vector.shape_cast %3 : vector<8x256xf32> to vector<1x8x256xf32>
    tpu.vector_store %arg3[%c0_4, %c0_5, %c0_6], %6 {strides = array<i32>} : memref<1x8x256xf32, #tpu.memory_space<vmem>>, vector<1x8x256xf32>,
    return
  }
  func.func @transform_0(%arg0: i32) -> (i32, i32, i32) {
    %c0_i32 = arith.constant 0 : i32
    %c0_i32_0 = arith.constant 0 : i32
    %c0_i32_1 = arith.constant 0 : i32
    return %arg0, %c0_i32, %c0_i32_0 : i32, i32, i32
  }
  func.func @transform_1(%arg0: i32) -> (i32, i32) {
    %c0_i32 = arith.constant 0 : i32
    %c0_i32_0 = arith.constant 0 : i32
    %c0_i32_1 = arith.constant 0 : i32
    return %c0_i32, %c0_i32_0 : i32, i32
  }
  func.func @transform_2(%arg0: i32) -> (i32, i32, i32) {
    %c0_i32 = arith.constant 0 : i32
    %c0_i32_0 = arith.constant 0 : i32
    %c0_i32_1 = arith.constant 0 : i32
    return %arg0, %c0_i32, %c0_i32_0 : i32, i32, i32
  }
}

module attributes {stable_mosaic.version = 11 : i64} {
  func.func @_spectral_kernel(%arg0: i32, %arg1: memref<8x288xf32, #tpu.memory_space<vmem>>, %arg2: memref<8x288xf32, #tpu.memory_space<vmem>>, %arg3: memref<8x8xf32, #tpu.memory_space<vmem>>, %arg4: memref<8x8xf32, #tpu.memory_space<vmem>>, %arg5: memref<8x8xf32, #tpu.memory_space<vmem>>, %arg6: memref<8x8xf32, #tpu.memory_space<vmem>>, %arg7: memref<8x288xf32, #tpu.memory_space<vmem>>, %arg8: memref<8x288xf32, #tpu.memory_space<vmem>>) attributes {dimension_semantics = [#tpu.dimension_semantics<parallel>], iteration_bounds = array<i64: 1>, scalar_prefetch = 0 : i64, scratch_operands = 0 : i64, tpu.core_type = #tpu.core_type<tc>, window_params = [{transform_indices = @transform_0, window_bounds = array<i64: 8, 288>}, {transform_indices = @transform_1, window_bounds = array<i64: 8, 288>}, {pipeline_mode = #tpu.pipeline_mode<synchronous>, transform_indices = @transform_2, window_bounds = array<i64: 8, 8>}, {pipeline_mode = #tpu.pipeline_mode<synchronous>, transform_indices = @transform_3, window_bounds = array<i64: 8, 8>}, {pipeline_mode = #tpu.pipeline_mode<synchronous>, transform_indices = @transform_4, window_bounds = array<i64: 8, 8>}, {pipeline_mode = #tpu.pipeline_mode<synchronous>, transform_indices = @transform_5, window_bounds = array<i64: 8, 8>}, {transform_indices = @transform_6, window_bounds = array<i64: 8, 288>}, {transform_indices = @transform_7, window_bounds = array<i64: 8, 288>}]} {
    %c0 = arith.constant 0 : index
    %c0_0 = arith.constant 0 : index
    %0 = vector.load %arg1[%c0, %c0_0] : memref<8x288xf32, #tpu.memory_space<vmem>>, vector<8x288xf32>
    %c0_1 = arith.constant 0 : index
    %c0_2 = arith.constant 0 : index
    %1 = vector.load %arg2[%c0_1, %c0_2] : memref<8x288xf32, #tpu.memory_space<vmem>>, vector<8x288xf32>
    %c0_3 = arith.constant 0 : index
    %c0_4 = arith.constant 0 : index
    %2 = vector.load %arg3[%c0_3, %c0_4] : memref<8x8xf32, #tpu.memory_space<vmem>>, vector<8x8xf32>
    %c0_5 = arith.constant 0 : index
    %c0_6 = arith.constant 0 : index
    %3 = vector.load %arg4[%c0_5, %c0_6] : memref<8x8xf32, #tpu.memory_space<vmem>>, vector<8x8xf32>
    %cst = arith.constant dense<0.000000e+00> : vector<8x288xf32>
    %4 = tpu.matmul %2, %0, %cst {dimension_numbers = #tpu.dot_dimension_numbers<[1], [0], [0], [1], [0, 0, 1, 1], [], []>} : vector<8x8xf32>, vector<8x288xf32>, vector<8x288xf32> -> vector<8x288xf32>
    %cst_7 = arith.constant dense<0.000000e+00> : vector<8x288xf32>
    %5 = tpu.matmul %3, %1, %cst_7 {dimension_numbers = #tpu.dot_dimension_numbers<[1], [0], [0], [1], [0, 0, 1, 1], [], []>} : vector<8x8xf32>, vector<8x288xf32>, vector<8x288xf32> -> vector<8x288xf32>
    %6 = arith.subf %4, %5 : vector<8x288xf32>
    %cst_8 = arith.constant dense<0.000000e+00> : vector<8x288xf32>
    %7 = tpu.matmul %2, %1, %cst_8 {dimension_numbers = #tpu.dot_dimension_numbers<[1], [0], [0], [1], [0, 0, 1, 1], [], []>} : vector<8x8xf32>, vector<8x288xf32>, vector<8x288xf32> -> vector<8x288xf32>
    %cst_9 = arith.constant dense<0.000000e+00> : vector<8x288xf32>
    %8 = tpu.matmul %3, %0, %cst_9 {dimension_numbers = #tpu.dot_dimension_numbers<[1], [0], [0], [1], [0, 0, 1, 1], [], []>} : vector<8x8xf32>, vector<8x288xf32>, vector<8x288xf32> -> vector<8x288xf32>
    %9 = arith.addf %7, %8 : vector<8x288xf32>
    %cst_10 = arith.constant 0.000000e+00 : f32
    %10 = vector.broadcast %cst_10 : f32 to vector<8x288xf32>
    %11 = arith.maximumf %6, %10 : vector<8x288xf32>
    %cst_11 = arith.constant 0.000000e+00 : f32
    %12 = vector.broadcast %cst_11 : f32 to vector<8x288xf32>
    %13 = arith.maximumf %9, %12 : vector<8x288xf32>
    %c0_12 = arith.constant 0 : index
    %c0_13 = arith.constant 0 : index
    %14 = vector.load %arg5[%c0_12, %c0_13] : memref<8x8xf32, #tpu.memory_space<vmem>>, vector<8x8xf32>
    %c0_14 = arith.constant 0 : index
    %c0_15 = arith.constant 0 : index
    %15 = vector.load %arg6[%c0_14, %c0_15] : memref<8x8xf32, #tpu.memory_space<vmem>>, vector<8x8xf32>
    %cst_16 = arith.constant dense<0.000000e+00> : vector<8x288xf32>
    %16 = tpu.matmul %14, %11, %cst_16 {dimension_numbers = #tpu.dot_dimension_numbers<[1], [0], [0], [1], [0, 0, 1, 1], [], []>} : vector<8x8xf32>, vector<8x288xf32>, vector<8x288xf32> -> vector<8x288xf32>
    %cst_17 = arith.constant dense<0.000000e+00> : vector<8x288xf32>
    %17 = tpu.matmul %15, %13, %cst_17 {dimension_numbers = #tpu.dot_dimension_numbers<[1], [0], [0], [1], [0, 0, 1, 1], [], []>} : vector<8x8xf32>, vector<8x288xf32>, vector<8x288xf32> -> vector<8x288xf32>
    %18 = arith.subf %16, %17 : vector<8x288xf32>
    %c0_18 = arith.constant 0 : index
    %c0_19 = arith.constant 0 : index
    %19 = vector.load %arg7[%c0_18, %c0_19] : memref<8x288xf32, #tpu.memory_space<vmem>>, vector<8x288xf32>
    tpu.vector_store %arg7[%c0_18, %c0_19], %18 {strides = array<i32>} : memref<8x288xf32, #tpu.memory_space<vmem>>, vector<8x288xf32>,
    %cst_20 = arith.constant dense<0.000000e+00> : vector<8x288xf32>
    %20 = tpu.matmul %14, %13, %cst_20 {dimension_numbers = #tpu.dot_dimension_numbers<[1], [0], [0], [1], [0, 0, 1, 1], [], []>} : vector<8x8xf32>, vector<8x288xf32>, vector<8x288xf32> -> vector<8x288xf32>
    %cst_21 = arith.constant dense<0.000000e+00> : vector<8x288xf32>
    %21 = tpu.matmul %15, %11, %cst_21 {dimension_numbers = #tpu.dot_dimension_numbers<[1], [0], [0], [1], [0, 0, 1, 1], [], []>} : vector<8x8xf32>, vector<8x288xf32>, vector<8x288xf32> -> vector<8x288xf32>
    %22 = arith.addf %20, %21 : vector<8x288xf32>
    %c0_22 = arith.constant 0 : index
    %c0_23 = arith.constant 0 : index
    %23 = vector.load %arg8[%c0_22, %c0_23] : memref<8x288xf32, #tpu.memory_space<vmem>>, vector<8x288xf32>
    tpu.vector_store %arg8[%c0_22, %c0_23], %22 {strides = array<i32>} : memref<8x288xf32, #tpu.memory_space<vmem>>, vector<8x288xf32>,
    return
  }
  func.func @transform_0(%arg0: i32) -> (i32, i32) {
    %c0_i32 = arith.constant 0 : i32
    %c0_i32_0 = arith.constant 0 : i32
    return %c0_i32, %arg0 : i32, i32
  }
  func.func @transform_1(%arg0: i32) -> (i32, i32) {
    %c0_i32 = arith.constant 0 : i32
    %c0_i32_0 = arith.constant 0 : i32
    return %c0_i32, %arg0 : i32, i32
  }
  func.func @transform_2(%arg0: i32) -> (i32, i32) {
    %c0_i32 = arith.constant 0 : i32
    %c0_i32_0 = arith.constant 0 : i32
    %c0_i32_1 = arith.constant 0 : i32
    return %c0_i32, %c0_i32_0 : i32, i32
  }
  func.func @transform_3(%arg0: i32) -> (i32, i32) {
    %c0_i32 = arith.constant 0 : i32
    %c0_i32_0 = arith.constant 0 : i32
    %c0_i32_1 = arith.constant 0 : i32
    return %c0_i32, %c0_i32_0 : i32, i32
  }
  func.func @transform_4(%arg0: i32) -> (i32, i32) {
    %c0_i32 = arith.constant 0 : i32
    %c0_i32_0 = arith.constant 0 : i32
    %c0_i32_1 = arith.constant 0 : i32
    return %c0_i32, %c0_i32_0 : i32, i32
  }
  func.func @transform_5(%arg0: i32) -> (i32, i32) {
    %c0_i32 = arith.constant 0 : i32
    %c0_i32_0 = arith.constant 0 : i32
    %c0_i32_1 = arith.constant 0 : i32
    return %c0_i32, %c0_i32_0 : i32, i32
  }
  func.func @transform_6(%arg0: i32) -> (i32, i32) {
    %c0_i32 = arith.constant 0 : i32
    %c0_i32_0 = arith.constant 0 : i32
    return %c0_i32, %arg0 : i32, i32
  }
  func.func @transform_7(%arg0: i32) -> (i32, i32) {
    %c0_i32 = arith.constant 0 : i32
    %c0_i32_0 = arith.constant 0 : i32
    return %c0_i32, %arg0 : i32, i32
  }
}

module attributes {stable_mosaic.version = 11 : i64} {
  func.func @_combine_tail_kernel(%arg0: i32, %arg1: memref<1x8x16x16xf32, #tpu.memory_space<vmem>>, %arg2: memref<1x8x16x16xf32, #tpu.memory_space<vmem>>, %arg3: memref<1x8x16x16xf32, #tpu.memory_space<vmem>>, %arg4: memref<1x4x16x16xf32, #tpu.memory_space<vmem>>) attributes {dimension_semantics = [#tpu.dimension_semantics<parallel>], iteration_bounds = array<i64: 2>, scalar_prefetch = 0 : i64, scratch_operands = 0 : i64, tpu.core_type = #tpu.core_type<tc>, window_params = [{transform_indices = @transform_0, window_bounds = array<i64: 1, 8, 16, 16>}, {transform_indices = @transform_1, window_bounds = array<i64: 1, 8, 16, 16>}, {transform_indices = @transform_2, window_bounds = array<i64: 1, 8, 16, 16>}, {transform_indices = @transform_3, window_bounds = array<i64: 1, 4, 16, 16>}]} {
    %c0 = arith.constant 0 : index
    %c0_0 = arith.constant 0 : index
    %c0_1 = arith.constant 0 : index
    %c0_2 = arith.constant 0 : index
    %0 = vector.load %arg1[%c0, %c0_0, %c0_1, %c0_2] : memref<1x8x16x16xf32, #tpu.memory_space<vmem>>, vector<1x8x16x16xf32>
    %1 = vector.shape_cast %0 : vector<1x8x16x16xf32> to vector<8x16x16xf32>
    %c0_3 = arith.constant 0 : index
    %c0_4 = arith.constant 0 : index
    %c0_5 = arith.constant 0 : index
    %c0_6 = arith.constant 0 : index
    %2 = vector.load %arg2[%c0_3, %c0_4, %c0_5, %c0_6] : memref<1x8x16x16xf32, #tpu.memory_space<vmem>>, vector<1x8x16x16xf32>
    %3 = vector.shape_cast %2 : vector<1x8x16x16xf32> to vector<8x16x16xf32>
    %c0_7 = arith.constant 0 : index
    %c0_8 = arith.constant 0 : index
    %c0_9 = arith.constant 0 : index
    %c0_10 = arith.constant 0 : index
    %4 = vector.load %arg3[%c0_7, %c0_8, %c0_9, %c0_10] : memref<1x8x16x16xf32, #tpu.memory_space<vmem>>, vector<1x8x16x16xf32>
    %5 = vector.shape_cast %4 : vector<1x8x16x16xf32> to vector<8x16x16xf32>
    %cst = arith.constant dense<0xFF800000> : vector<16x16xf32>
    %6 = vector.multi_reduction <maximumf>, %1, %cst [0] : vector<8x16x16xf32> to vector<16x16xf32>
    %7 = vector.shape_cast %6 : vector<16x16xf32> to vector<1x16x16xf32>
    %cst_11 = arith.constant 1.000000e+00 : f32
    %8 = vector.broadcast %cst_11 : f32 to vector<1x16x16xf32>
    %9 = arith.maximumf %7, %8 : vector<1x16x16xf32>
    %10 = tpu.reciprocal %9 {approx = true} : vector<1x16x16xf32> -> vector<1x16x16xf32>
    %11 = vector.broadcast %10 : vector<1x16x16xf32> to vector<8x16x16xf32>
    %12 = arith.mulf %3, %11 : vector<8x16x16xf32>
    %13 = math.tanh %12 : vector<8x16x16xf32>
    %14 = vector.broadcast %9 : vector<1x16x16xf32> to vector<8x16x16xf32>
    %15 = arith.mulf %14, %13 : vector<8x16x16xf32>
    %16 = arith.addf %1, %15 : vector<8x16x16xf32>
    %17 = arith.addf %16, %5 : vector<8x16x16xf32>
    %18 = vector.extract_strided_slice %17 {offsets = [0, 0, 0], sizes = [4, 16, 16], strides = [1, 1, 1]} : vector<8x16x16xf32> to vector<4x16x16xf32>
    %19 = vector.extract_strided_slice %17 {offsets = [4, 0, 0], sizes = [4, 16, 16], strides = [1, 1, 1]} : vector<8x16x16xf32> to vector<4x16x16xf32>
    %cst_12 = arith.constant dense<0.000000e+00> : vector<4x16x16xf32>
    %20 = tpu.matmul %18, %19, %cst_12 {dimension_numbers = #tpu.dot_dimension_numbers<[2], [2], [1], [1], [0, 0, 0, 1, 1, 1], [0], [0]>} : vector<4x16x16xf32>, vector<4x16x16xf32>, vector<4x16x16xf32> -> vector<4x16x16xf32>
    %21 = arith.mulf %20, %20 : vector<4x16x16xf32>
    %cst_13 = arith.constant dense<0.000000e+00> : vector<4x16xf32>
    %22 = vector.multi_reduction <add>, %21, %cst_13 [2] : vector<4x16x16xf32> to vector<4x16xf32>
    %23 = vector.shape_cast %22 : vector<4x16xf32> to vector<4x16x1xf32>
    %cst_14 = arith.constant dense<0.000000e+00> : vector<4x1xf32>
    %24 = vector.multi_reduction <add>, %23, %cst_14 [1] : vector<4x16x1xf32> to vector<4x1xf32>
    %25 = vector.shape_cast %24 : vector<4x1xf32> to vector<4x1x1xf32>
    %26 = math.sqrt %25 : vector<4x1x1xf32>
    %cst_15 = arith.constant 9.99999996E-13 : f32
    %27 = vector.broadcast %cst_15 : f32 to vector<4x1x1xf32>
    %28 = arith.maximumf %26, %27 : vector<4x1x1xf32>
    %cst_16 = arith.constant 1.000000e+00 : f32
    %29 = vector.broadcast %cst_16 : f32 to vector<4x1x1xf32>
    %30 = arith.divf %29, %28 : vector<4x1x1xf32>
    %31 = vector.broadcast %30 : vector<4x1x1xf32> to vector<4x16x16xf32>
    %32 = arith.mulf %20, %31 : vector<4x16x16xf32>
    %c0_17 = arith.constant 0 : index
    %c0_18 = arith.constant 0 : index
    %c0_19 = arith.constant 0 : index
    %c0_20 = arith.constant 0 : index
    %33 = vector.load %arg4[%c0_17, %c0_18, %c0_19, %c0_20] : memref<1x4x16x16xf32, #tpu.memory_space<vmem>>, vector<1x4x16x16xf32>
    %34 = vector.shape_cast %33 : vector<1x4x16x16xf32> to vector<4x16x16xf32>
    %35 = vector.shape_cast %32 : vector<4x16x16xf32> to vector<1x4x16x16xf32>
    tpu.vector_store %arg4[%c0_17, %c0_18, %c0_19, %c0_20], %35 {strides = array<i32>} : memref<1x4x16x16xf32, #tpu.memory_space<vmem>>, vector<1x4x16x16xf32>,
    return
  }
  func.func @transform_0(%arg0: i32) -> (i32, i32, i32, i32) {
    %c0_i32 = arith.constant 0 : i32
    %c0_i32_0 = arith.constant 0 : i32
    %c0_i32_1 = arith.constant 0 : i32
    %c0_i32_2 = arith.constant 0 : i32
    return %arg0, %c0_i32, %c0_i32_0, %c0_i32_1 : i32, i32, i32, i32
  }
  func.func @transform_1(%arg0: i32) -> (i32, i32, i32, i32) {
    %c0_i32 = arith.constant 0 : i32
    %c0_i32_0 = arith.constant 0 : i32
    %c0_i32_1 = arith.constant 0 : i32
    %c0_i32_2 = arith.constant 0 : i32
    return %arg0, %c0_i32, %c0_i32_0, %c0_i32_1 : i32, i32, i32, i32
  }
  func.func @transform_2(%arg0: i32) -> (i32, i32, i32, i32) {
    %c0_i32 = arith.constant 0 : i32
    %c0_i32_0 = arith.constant 0 : i32
    %c0_i32_1 = arith.constant 0 : i32
    %c0_i32_2 = arith.constant 0 : i32
    return %arg0, %c0_i32, %c0_i32_0, %c0_i32_1 : i32, i32, i32, i32
  }
  func.func @transform_3(%arg0: i32) -> (i32, i32, i32, i32) {
    %c0_i32 = arith.constant 0 : i32
    %c0_i32_0 = arith.constant 0 : i32
    %c0_i32_1 = arith.constant 0 : i32
    %c0_i32_2 = arith.constant 0 : i32
    return %arg0, %c0_i32, %c0_i32_0, %c0_i32_1 : i32, i32, i32, i32
  }
}

</mosaic_0001>

<llo_original>
// kernel: _lambda_.6
$region0: #{_lambda_.6}
  #allocation0 [shape = 'u32[]', space=smem, size = 0x4, offset = 0x4, fixed_abs, tag = 'smem constant byte address 0x4 - core index']
  #allocation1 [shape = 'u32[144,128]{1,0:T(1,128)}', space=vmem, size = 0x12000, scoped, tag = 'internal scratch']
  %s0 = inlined_call_operand.hbm [shape: f32[8,16,16], index: 0, kind: input, shape index: {}]
  %s1 = inlined_call_operand.hbm [shape: f32[8,16,16], index: 1, kind: input, shape index: {}]
  %s2 = inlined_call_operand.vmem [shape: f32[8,16,16], index: 2, kind: output, shape index: {}]
  %s3 = sld [smem:[#allocation0]]
  $region26: #{_lambda_.6} parent=0
    _
  %s5 = ssub.s32 1, %s3
  %s6 = scalar_select 0, %s5, %s3
  $region1: #{_lambda_.6} parent=0
    #allocation2 [shape = 'u8[65536]{0}', space=vmem, size = 0x10000, scoped, tag = 'input window, operand 0, single buffered']
    #allocation3 [shape = 's32[1]{0}', space=sflag, size = 0x4, scoped, tag = 'scoped memory for _lambda_.6']
    #allocation4 [shape = 'u8[65536]{0}', space=vmem, size = 0x10000, scoped, tag = 'input window, operand 1, single buffered']
    #allocation5 [shape = 's32[1]{0}', space=sflag, size = 0x4, scoped, tag = 'scoped memory for _lambda_.6']
    %7 = vsyncpa [#allocation3], 0
    %8 = vsyncpa [#allocation5], 0
    // Predicated region
    $region2: #{_lambda_.6} parent=1 // pred_check
      _
    $region3: #{_lambda_.6} parent=1 // pred_check_branch
      %10 = sbr.rel (0) target = $region5
    $region4: #{_lambda_.6} parent=1 // pred_region
      %s12 = ssub.s32 2048, 2048
      %13 = vsyncadd [#allocation3], %s12
      %s14 = sshll.u32 [#allocation2], 4
      %s15 = int_to_ptr.vmem [resolvable:$true] %s14
      %20 = dma.hbm_to_vmem [thread:$0]  %s0, 2048, %s15, [#allocation3], 128, 128, 8
    $region5: #{_lambda_.6} parent=1 // pred_fallthru
      _
    // Predicated region
    $region6: #{_lambda_.6} parent=1 // pred_check
      _
    $region7: #{_lambda_.6} parent=1 // pred_check_branch
      %22 = sbr.rel (0) target = $region9
    $region8: #{_lambda_.6} parent=1 // pred_region
      %s24 = ssub.s32 2048, 2048
      %25 = vsyncadd [#allocation5], %s24
      %s26 = sshll.u32 [#allocation4], 4
      %s27 = int_to_ptr.vmem [resolvable:$true] %s26
      %32 = dma.hbm_to_vmem [thread:$0]  %s1, 2048, %s27, [#allocation5], 128, 128, 8
    $region9: #{_lambda_.6} parent=1 // pred_fallthru
      _
    // Predicated region
    $region10: #{_lambda_.6} parent=1 // pred_check
      _
    $region11: #{_lambda_.6} parent=1 // pred_check_branch
      %34 = sbr.rel (0) target = $region13
    $region12: #{_lambda_.6} parent=1 // pred_region
      %35 = dma.done [#allocation3], 2048
    $region13: #{_lambda_.6} parent=1 // pred_fallthru
      _
    // Predicated region
    $region14: #{_lambda_.6} parent=1 // pred_check
      _
    $region15: #{_lambda_.6} parent=1 // pred_check_branch
      %37 = sbr.rel (0) target = $region17
    $region16: #{_lambda_.6} parent=1 // pred_region
      %38 = dma.done [#allocation5], 2048
    $region17: #{_lambda_.6} parent=1 // pred_fallthru
      _
    %v39 = vld [vmem:[#allocation2] sm:$0xff]
    %v40 = vld [vmem:[#allocation2 + $0x8] sm:$0xff]
    %v41 = vld [vmem:[#allocation2 + $0x10] sm:$0xff]
    %v42 = vld [vmem:[#allocation2 + $0x18] sm:$0xff]
    %v43 = vld [vmem:[#allocation2 + $0x20] sm:$0xff]
    %v44 = vld [vmem:[#allocation2 + $0x28] sm:$0xff]
    %v45 = vld [vmem:[#allocation2 + $0x30] sm:$0xff]
    %v46 = vld [vmem:[#allocation2 + $0x38] sm:$0xff]
    %v47 = vld [vmem:[#allocation2 + $0x40] sm:$0xff]
    %v48 = vld [vmem:[#allocation2 + $0x48] sm:$0xff]
    %v49 = vld [vmem:[#allocation2 + $0x50] sm:$0xff]
    %v50 = vld [vmem:[#allocation2 + $0x58] sm:$0xff]
    %v51 = vld [vmem:[#allocation2 + $0x60] sm:$0xff]
    %v52 = vld [vmem:[#allocation2 + $0x68] sm:$0xff]
    %v53 = vld [vmem:[#allocation2 + $0x70] sm:$0xff]
    %v54 = vld [vmem:[#allocation2 + $0x78] sm:$0xff]
    %v55 = vld [vmem:[#allocation4] sm:$0xff]
    %v56 = vld [vmem:[#allocation4 + $0x8] sm:$0xff]
    %v57 = vld [vmem:[#allocation4 + $0x10] sm:$0xff]
    %v58 = vld [vmem:[#allocation4 + $0x18] sm:$0xff]
    %v59 = vld [vmem:[#allocation4 + $0x20] sm:$0xff]
    %v60 = vld [vmem:[#allocation4 + $0x28] sm:$0xff]
    %v61 = vld [vmem:[#allocation4 + $0x30] sm:$0xff]
    %v62 = vld [vmem:[#allocation4 + $0x38] sm:$0xff]
    %v63 = vld [vmem:[#allocation4 + $0x40] sm:$0xff]
    %v64 = vld [vmem:[#allocation4 + $0x48] sm:$0xff]
    %v65 = vld [vmem:[#allocation4 + $0x50] sm:$0xff]
    %v66 = vld [vmem:[#allocation4 + $0x58] sm:$0xff]
    %v67 = vld [vmem:[#allocation4 + $0x60] sm:$0xff]
    %v68 = vld [vmem:[#allocation4 + $0x68] sm:$0xff]
    %v69 = vld [vmem:[#allocation4 + $0x70] sm:$0xff]
    %v70 = vld [vmem:[#allocation4 + $0x78] sm:$0xff]
    %vm71 = vcmask 130048
    %v73 = vsel %vm71, %v39, 0
    %v76 = vsel %vm71, %v40, 0
    %78 = vmatprep.subr.mxu0 0.0
    %79 = vmatpush1.msra.mxu0 0.0
    %80 = vmatprep.subr.mxu0 0.0
    %81 = vmatpush1.msra.mxu0 0.0
    %82 = vmatprep.subr.mxu0 0.0
    %83 = vmatpush1.msra.mxu0 0.0
    %84 = vmatprep.subr.mxu0 0.0
    %85 = vmatpush1.msra.mxu0 0.0
    %86 = vmatprep.subr.mxu0 0.0
    %87 = vmatpush1.msra.mxu0 0.0
    %88 = vmatprep.subr.mxu0 0.0
    %89 = vmatpush1.msra.mxu0 0.0
    %90 = vmatprep.subr.mxu0 0.0
    %91 = vmatpush1.msra.mxu0 0.0
    %92 = vmatprep.subr.mxu0 0.0
    %93 = vmatpush1.msra.mxu0 0.0
    %94 = vmatprep.subr.mxu0 0.0
    %95 = vmatpush1.msra.mxu0 0.0
    %96 = vmatprep.subr.mxu0 0.0
    %97 = vmatpush1.msra.mxu0 0.0
    %98 = vmatprep.subr.mxu0 0.0
    %99 = vmatpush1.msra.mxu0 0.0
    %100 = vmatprep.subr.mxu0 0.0
    %101 = vmatpush1.msra.mxu0 0.0
    %102 = vmatprep.subr.mxu0 0.0
    %103 = vmatpush1.msra.mxu0 0.0
    %104 = vmatprep.subr.mxu0 0.0
    %105 = vmatpush1.msra.mxu0 0.0
    %106 = vmatprep.subr.mxu0 0.0
    %107 = vmatpush1.msra.mxu0 %v56
    %108 = vmatprep.subr.mxu0 0.0
    %109 = vmatpush1.msra.mxu0 %v55
    %110 = vmatprep.subr.mxu0 0.0
    %111 = vmatpush2.msra.mxu0 0.0
    %112 = vmatprep.subr.mxu0 0.0
    %113 = vmatpush2.msra.mxu0 0.0
    %114 = vmatprep.subr.mxu0 0.0
    %115 = vmatpush2.msra.mxu0 0.0
    %116 = vmatprep.subr.mxu0 0.0
    %117 = vmatpush2.msra.mxu0 0.0
    %118 = vmatprep.subr.mxu0 0.0
    %119 = vmatpush2.msra.mxu0 0.0
    %120 = vmatprep.subr.mxu0 0.0
    %121 = vmatpush2.msra.mxu0 0.0
    %122 = vmatprep.subr.mxu0 0.0
    %123 = vmatpush2.msra.mxu0 0.0
    %124 = vmatprep.subr.mxu0 0.0
    %125 = vmatpush2.msra.mxu0 0.0
    %126 = vmatprep.subr.mxu0 0.0
    %127 = vmatpush2.msra.mxu0 0.0
    %128 = vmatprep.subr.mxu0 0.0
    %129 = vmatpush2.msra.mxu0 0.0
    %130 = vmatprep.subr.mxu0 0.0
    %131 = vmatpush2.msra.mxu0 0.0
    %132 = vmatprep.subr.mxu0 0.0
    %133 = vmatpush2.msra.mxu0 0.0
    %134 = vmatprep.subr.mxu0 0.0
    %135 = vmatpush2.msra.mxu0 0.0
    %136 = vmatprep.subr.mxu0 0.0
    %137 = vmatpush2.msra.mxu0 0.0
    %138 = vmatprep.subr.mxu0 0.0
    %139 = vmatpush2.msra.mxu0 0.0
    %140 = vmatprep.subr.mxu0 0.0
    %141 = vmatpush2.msra.mxu0 0.0
    %142 = vmatprep.mubr.f32.mxu0 0.0
    %143 = vmatmul.mubr.f32.gmra.mxu0 %v73
    %v144 = vpop.f32.mrf.mxu0
    %v145 = vadd.f32 0.0, %v144
    %v146 = vpop.f32.mrf.mxu0
    %147 = vmatprep.mubr.f32.mxu0 0.0
    %148 = vmatmul.mubr.f32.gmra.mxu0 %v76
    %v149 = vpop.f32.mrf.mxu0
    %v150 = vadd.f32 0.0, %v149
    %v151 = vpop.f32.mrf.mxu0
    %152 = vdwg.mxu0
    %v154 = vsel %vm71, %v41, 0
    %v157 = vsel %vm71, %v42, 0
    %159 = vmatprep.subr.mxu0 0.0
    %160 = vmatpush1.msra.mxu0 0.0
    %161 = vmatprep.subr.mxu0 0.0
    %162 = vmatpush1.msra.mxu0 0.0
    %163 = vmatprep.subr.mxu0 0.0
    %164 = vmatpush1.msra.mxu0 0.0
    %165 = vmatprep.subr.mxu0 0.0
    %166 = vmatpush1.msra.mxu0 0.0
    %167 = vmatprep.subr.mxu0 0.0
    %168 = vmatpush1.msra.mxu0 0.0
    %169 = vmatprep.subr.mxu0 0.0
    %170 = vmatpush1.msra.mxu0 0.0
    %171 = vmatprep.subr.mxu0 0.0
    %172 = vmatpush1.msra.mxu0 0.0
    %173 = vmatprep.subr.mxu0 0.0
    %174 = vmatpush1.msra.mxu0 0.0
    %175 = vmatprep.subr.mxu0 0.0
    %176 = vmatpush1.msra.mxu0 0.0
    %177 = vmatprep.subr.mxu0 0.0
    %178 = vmatpush1.msra.mxu0 0.0
    %179 = vmatprep.subr.mxu0 0.0
    %180 = vmatpush1.msra.mxu0 0.0
    %181 = vmatprep.subr.mxu0 0.0
    %182 = vmatpush1.msra.mxu0 0.0
    %183 = vmatprep.subr.mxu0 0.0
    %184 = vmatpush1.msra.mxu0 0.0
    %185 = vmatprep.subr.mxu0 0.0
    %186 = vmatpush1.msra.mxu0 0.0
    %187 = vmatprep.subr.mxu0 0.0
    %188 = vmatpush1.msra.mxu0 %v58
    %189 = vmatprep.subr.mxu0 0.0
    %190 = vmatpush1.msra.mxu0 %v57
    %191 = vmatprep.subr.mxu0 0.0
    %192 = vmatpush2.msra.mxu0 0.0
    %193 = vmatprep.subr.mxu0 0.0
    %194 = vmatpush2.msra.mxu0 0.0
    %195 = vmatprep.subr.mxu0 0.0
    %196 = vmatpush2.msra.mxu0 0.0
    %197 = vmatprep.subr.mxu0 0.0
    %198 = vmatpush2.msra.mxu0 0.0
    %199 = vmatprep.subr.mxu0 0.0
    %200 = vmatpush2.msra.mxu0 0.0
    %201 = vmatprep.subr.mxu0 0.0
    %202 = vmatpush2.msra.mxu0 0.0
    %203 = vmatprep.subr.mxu0 0.0
    %204 = vmatpush2.msra.mxu0 0.0
    %205 = vmatprep.subr.mxu0 0.0
    %206 = vmatpush2.msra.mxu0 0.0
    %207 = vmatprep.subr.mxu0 0.0
    %208 = vmatpush2.msra.mxu0 0.0
    %209 = vmatprep.subr.mxu0 0.0
    %210 = vmatpush2.msra.mxu0 0.0
    %211 = vmatprep.subr.mxu0 0.0
    %212 = vmatpush2.msra.mxu0 0.0
    %213 = vmatprep.subr.mxu0 0.0
    %214 = vmatpush2.msra.mxu0 0.0
    %215 = vmatprep.subr.mxu0 0.0
    %216 = vmatpush2.msra.mxu0 0.0
    %217 = vmatprep.subr.mxu0 0.0
    %218 = vmatpush2.msra.mxu0 0.0
    %219 = vmatprep.subr.mxu0 0.0
    %220 = vmatpush2.msra.mxu0 0.0
    %221 = vmatprep.subr.mxu0 0.0
    %222 = vmatpush2.msra.mxu0 0.0
    %223 = vmatprep.mubr.f32.mxu0 0.0
    %224 = vmatmul.mubr.f32.gmra.mxu0 %v154
    %v225 = vpop.f32.mrf.mxu0
    %v226 = vadd.f32 0.0, %v225
    %v227 = vpop.f32.mrf.mxu0
    %228 = vmatprep.mubr.f32.mxu0 0.0
    %229 = vmatmul.mubr.f32.gmra.mxu0 %v157
    %v230 = vpop.f32.mrf.mxu0
    %v231 = vadd.f32 0.0, %v230
    %v232 = vpop.f32.mrf.mxu0
    %233 = vdwg.mxu0
    %v235 = vsel %vm71, %v43, 0
    %v238 = vsel %vm71, %v44, 0
    %240 = vmatprep.subr.mxu0 0.0
    %241 = vmatpush1.msra.mxu0 0.0
    %242 = vmatprep.subr.mxu0 0.0
    %243 = vmatpush1.msra.mxu0 0.0
    %244 = vmatprep.subr.mxu0 0.0
    %245 = vmatpush1.msra.mxu0 0.0
    %246 = vmatprep.subr.mxu0 0.0
    %247 = vmatpush1.msra.mxu0 0.0
    %248 = vmatprep.subr.mxu0 0.0
    %249 = vmatpush1.msra.mxu0 0.0
    %250 = vmatprep.subr.mxu0 0.0
    %251 = vmatpush1.msra.mxu0 0.0
    %252 = vmatprep.subr.mxu0 0.0
    %253 = vmatpush1.msra.mxu0 0.0
    %254 = vmatprep.subr.mxu0 0.0
    %255 = vmatpush1.msra.mxu0 0.0
    %256 = vmatprep.subr.mxu0 0.0
    %257 = vmatpush1.msra.mxu0 0.0
    %258 = vmatprep.subr.mxu0 0.0
    %259 = vmatpush1.msra.mxu0 0.0
    %260 = vmatprep.subr.mxu0 0.0
    %261 = vmatpush1.msra.mxu0 0.0
    %262 = vmatprep.subr.mxu0 0.0
    %263 = vmatpush1.msra.mxu0 0.0
    %264 = vmatprep.subr.mxu0 0.0
    %265 = vmatpush1.msra.mxu0 0.0
    %266 = vmatprep.subr.mxu0 0.0
    %267 = vmatpush1.msra.mxu0 0.0
    %268 = vmatprep.subr.mxu0 0.0
    %269 = vmatpush1.msra.mxu0 %v60
    %270 = vmatprep.subr.mxu0 0.0
    %271 = vmatpush1.msra.mxu0 %v59
    %272 = vmatprep.subr.mxu0 0.0
    %273 = vmatpush2.msra.mxu0 0.0
    %274 = vmatprep.subr.mxu0 0.0
    %275 = vmatpush2.msra.mxu0 0.0
    %276 = vmatprep.subr.mxu0 0.0
    %277 = vmatpush2.msra.mxu0 0.0
    %278 = vmatprep.subr.mxu0 0.0
    %279 = vmatpush2.msra.mxu0 0.0
    %280 = vmatprep.subr.mxu0 0.0
    %281 = vmatpush2.msra.mxu0 0.0
    %282 = vmatprep.subr.mxu0 0.0
    %283 = vmatpush2.msra.mxu0 0.0
    %284 = vmatprep.subr.mxu0 0.0
    %285 = vmatpush2.msra.mxu0 0.0
    %286 = vmatprep.subr.mxu0 0.0
    %287 = vmatpush2.msra.mxu0 0.0
    %288 = vmatprep.subr.mxu0 0.0
    %289 = vmatpush2.msra.mxu0 0.0
    %290 = vmatprep.subr.mxu0 0.0
    %291 = vmatpush2.msra.mxu0 0.0
    %292 = vmatprep.subr.mxu0 0.0
    %293 = vmatpush2.msra.mxu0 0.0
    %294 = vmatprep.subr.mxu0 0.0
    %295 = vmatpush2.msra.mxu0 0.0
    %296 = vmatprep.subr.mxu0 0.0
    %297 = vmatpush2.msra.mxu0 0.0
    %298 = vmatprep.subr.mxu0 0.0
    %299 = vmatpush2.msra.mxu0 0.0
    %300 = vmatprep.subr.mxu0 0.0
    %301 = vmatpush2.msra.mxu0 0.0
    %302 = vmatprep.subr.mxu0 0.0
    %303 = vmatpush2.msra.mxu0 0.0
    %304 = vmatprep.mubr.f32.mxu0 0.0
    %305 = vmatmul.mubr.f32.gmra.mxu0 %v235
    %v306 = vpop.f32.mrf.mxu0
    %v307 = vadd.f32 0.0, %v306
    %v308 = vpop.f32.mrf.mxu0
    %309 = vmatprep.mubr.f32.mxu0 0.0
    %310 = vmatmul.mubr.f32.gmra.mxu0 %v238
    %v311 = vpop.f32.mrf.mxu0
    %v312 = vadd.f32 0.0, %v311
    %v313 = vpop.f32.mrf.mxu0
    %314 = vdwg.mxu0
    %v316 = vsel %vm71, %v45, 0
    %v319 = vsel %vm71, %v46, 0
    %321 = vmatprep.subr.mxu0 0.0
    %322 = vmatpush1.msra.mxu0 0.0
    %323 = vmatprep.subr.mxu0 0.0
    %324 = vmatpush1.msra.mxu0 0.0
    %325 = vmatprep.subr.mxu0 0.0
    %326 = vmatpush1.msra.mxu0 0.0
    %327 = vmatprep.subr.mxu0 0.0
    %328 = vmatpush1.msra.mxu0 0.0
    %329 = vmatprep.subr.mxu0 0.0
    %330 = vmatpush1.msra.mxu0 0.0
    %331 = vmatprep.subr.mxu0 0.0
    %332 = vmatpush1.msra.mxu0 0.0
    %333 = vmatprep.subr.mxu0 0.0
    %334 = vmatpush1.msra.mxu0 0.0
    %335 = vmatprep.subr.mxu0 0.0
    %336 = vmatpush1.msra.mxu0 0.0
    %337 = vmatprep.subr.mxu0 0.0
    %338 = vmatpush1.msra.mxu0 0.0
    %339 = vmatprep.subr.mxu0 0.0
    %340 = vmatpush1.msra.mxu0 0.0
    %341 = vmatprep.subr.mxu0 0.0
    %342 = vmatpush1.msra.mxu0 0.0
    %343 = vmatprep.subr.mxu0 0.0
    %344 = vmatpush1.msra.mxu0 0.0
    %345 = vmatprep.subr.mxu0 0.0
    %346 = vmatpush1.msra.mxu0 0.0
    %347 = vmatprep.subr.mxu0 0.0
    %348 = vmatpush1.msra.mxu0 0.0
    %349 = vmatprep.subr.mxu0 0.0
    %350 = vmatpush1.msra.mxu0 %v62
    %351 = vmatprep.subr.mxu0 0.0
    %352 = vmatpush1.msra.mxu0 %v61
    %353 = vmatprep.subr.mxu0 0.0
    %354 = vmatpush2.msra.mxu0 0.0
    %355 = vmatprep.subr.mxu0 0.0
    %356 = vmatpush2.msra.mxu0 0.0
    %357 = vmatprep.subr.mxu0 0.0
    %358 = vmatpush2.msra.mxu0 0.0
    %359 = vmatprep.subr.mxu0 0.0
    %360 = vmatpush2.msra.mxu0 0.0
    %361 = vmatprep.subr.mxu0 0.0
    %362 = vmatpush2.msra.mxu0 0.0
    %363 = vmatprep.subr.mxu0 0.0
    %364 = vmatpush2.msra.mxu0 0.0
    %365 = vmatprep.subr.mxu0 0.0
    %366 = vmatpush2.msra.mxu0 0.0
    %367 = vmatprep.subr.mxu0 0.0
    %368 = vmatpush2.msra.mxu0 0.0
    %369 = vmatprep.subr.mxu0 0.0
    %370 = vmatpush2.msra.mxu0 0.0
    %371 = vmatprep.subr.mxu0 0.0
    %372 = vmatpush2.msra.mxu0 0.0
    %373 = vmatprep.subr.mxu0 0.0
    %374 = vmatpush2.msra.mxu0 0.0
    %375 = vmatprep.subr.mxu0 0.0
    %376 = vmatpush2.msra.mxu0 0.0
    %377 = vmatprep.subr.mxu0 0.0
    %378 = vmatpush2.msra.mxu0 0.0
    %379 = vmatprep.subr.mxu0 0.0
    %380 = vmatpush2.msra.mxu0 0.0
    %381 = vmatprep.subr.mxu0 0.0
    %382 = vmatpush2.msra.mxu0 0.0
    %383 = vmatprep.subr.mxu0 0.0
    %384 = vmatpush2.msra.mxu0 0.0
    %385 = vmatprep.mubr.f32.mxu0 0.0
    %386 = vmatmul.mubr.f32.gmra.mxu0 %v316
    %v387 = vpop.f32.mrf.mxu0
    %v388 = vadd.f32 0.0, %v387
    %v389 = vpop.f32.mrf.mxu0
    %390 = vmatprep.mubr.f32.mxu0 0.0
    %391 = vmatmul.mubr.f32.gmra.mxu0 %v319
    %v392 = vpop.f32.mrf.mxu0
    %v393 = vadd.f32 0.0, %v392
    %v394 = vpop.f32.mrf.mxu0
    %395 = vdwg.mxu0
    %v397 = vsel %vm71, %v47, 0
    %v400 = vsel %vm71, %v48, 0
    %402 = vmatprep.subr.mxu0 0.0
    %403 = vmatpush1.msra.mxu0 0.0
    %404 = vmatprep.subr.mxu0 0.0
    %405 = vmatpush1.msra.mxu0 0.0
    %406 = vmatprep.subr.mxu0 0.0
    %407 = vmatpush1.msra.mxu0 0.0
    %408 = vmatprep.subr.mxu0 0.0
    %409 = vmatpush1.msra.mxu0 0.0
    %410 = vmatprep.subr.mxu0 0.0
    %411 = vmatpush1.msra.mxu0 0.0
    %412 = vmatprep.subr.mxu0 0.0
    %413 = vmatpush1.msra.mxu0 0.0
    %414 = vmatprep.subr.mxu0 0.0
    %415 = vmatpush1.msra.mxu0 0.0
    %416 = vmatprep.subr.mxu0 0.0
    %417 = vmatpush1.msra.mxu0 0.0
    %418 = vmatprep.subr.mxu0 0.0
    %419 = vmatpush1.msra.mxu0 0.0
    %420 = vmatprep.subr.mxu0 0.0
    %421 = vmatpush1.msra.mxu0 0.0
    %422 = vmatprep.subr.mxu0 0.0
    %423 = vmatpush1.msra.mxu0 0.0
    %424 = vmatprep.subr.mxu0 0.0
    %425 = vmatpush1.msra.mxu0 0.0
    %426 = vmatprep.subr.mxu0 0.0
    %427 = vmatpush1.msra.mxu0 0.0
    %428 = vmatprep.subr.mxu0 0.0
    %429 = vmatpush1.msra.mxu0 0.0
    %430 = vmatprep.subr.mxu0 0.0
    %431 = vmatpush1.msra.mxu0 %v64
    %432 = vmatprep.subr.mxu0 0.0
    %433 = vmatpush1.msra.mxu0 %v63
    %434 = vmatprep.subr.mxu0 0.0
    %435 = vmatpush2.msra.mxu0 0.0
    %436 = vmatprep.subr.mxu0 0.0
    %437 = vmatpush2.msra.mxu0 0.0
    %438 = vmatprep.subr.mxu0 0.0
    %439 = vmatpush2.msra.mxu0 0.0
    %440 = vmatprep.subr.mxu0 0.0
    %441 = vmatpush2.msra.mxu0 0.0
    %442 = vmatprep.subr.mxu0 0.0
    %443 = vmatpush2.msra.mxu0 0.0
    %444 = vmatprep.subr.mxu0 0.0
    %445 = vmatpush2.msra.mxu0 0.0
    %446 = vmatprep.subr.mxu0 0.0
    %447 = vmatpush2.msra.mxu0 0.0
    %448 = vmatprep.subr.mxu0 0.0
    %449 = vmatpush2.msra.mxu0 0.0
    %450 = vmatprep.subr.mxu0 0.0
    %451 = vmatpush2.msra.mxu0 0.0
    %452 = vmatprep.subr.mxu0 0.0
    %453 = vmatpush2.msra.mxu0 0.0
    %454 = vmatprep.subr.mxu0 0.0
    %455 = vmatpush2.msra.mxu0 0.0
    %456 = vmatprep.subr.mxu0 0.0
    %457 = vmatpush2.msra.mxu0 0.0
    %458 = vmatprep.subr.mxu0 0.0
    %459 = vmatpush2.msra.mxu0 0.0
    %460 = vmatprep.subr.mxu0 0.0
    %461 = vmatpush2.msra.mxu0 0.0
    %462 = vmatprep.subr.mxu0 0.0
    %463 = vmatpush2.msra.mxu0 0.0
    %464 = vmatprep.subr.mxu0 0.0
    %465 = vmatpush2.msra.mxu0 0.0
    %466 = vmatprep.mubr.f32.mxu0 0.0
    %467 = vmatmul.mubr.f32.gmra.mxu0 %v397
    %v468 = vpop.f32.mrf.mxu0
    %v469 = vadd.f32 0.0, %v468
    %v470 = vpop.f32.mrf.mxu0
    %471 = vmatprep.mubr.f32.mxu0 0.0
    %472 = vmatmul.mubr.f32.gmra.mxu0 %v400
    %v473 = vpop.f32.mrf.mxu0
    %v474 = vadd.f32 0.0, %v473
    %v475 = vpop.f32.mrf.mxu0
    %476 = vdwg.mxu0
    %v478 = vsel %vm71, %v49, 0
    %v481 = vsel %vm71, %v50, 0
    %483 = vmatprep.subr.mxu0 0.0
    %484 = vmatpush1.msra.mxu0 0.0
    %485 = vmatprep.subr.mxu0 0.0
    %486 = vmatpush1.msra.mxu0 0.0
    %487 = vmatprep.subr.mxu0 0.0
    %488 = vmatpush1.msra.mxu0 0.0
    %489 = vmatprep.subr.mxu0 0.0
    %490 = vmatpush1.msra.mxu0 0.0
    %491 = vmatprep.subr.mxu0 0.0
    %492 = vmatpush1.msra.mxu0 0.0
    %493 = vmatprep.subr.mxu0 0.0
    %494 = vmatpush1.msra.mxu0 0.0
    %495 = vmatprep.subr.mxu0 0.0
    %496 = vmatpush1.msra.mxu0 0.0
    %497 = vmatprep.subr.mxu0 0.0
    %498 = vmatpush1.msra.mxu0 0.0
    %499 = vmatprep.subr.mxu0 0.0
    %500 = vmatpush1.msra.mxu0 0.0
    %501 = vmatprep.subr.mxu0 0.0
    %502 = vmatpush1.msra.mxu0 0.0
    %503 = vmatprep.subr.mxu0 0.0
    %504 = vmatpush1.msra.mxu0 0.0
    %505 = vmatprep.subr.mxu0 0.0
    %506 = vmatpush1.msra.mxu0 0.0
    %507 = vmatprep.subr.mxu0 0.0
    %508 = vmatpush1.msra.mxu0 0.0
    %509 = vmatprep.subr.mxu0 0.0
    %510 = vmatpush1.msra.mxu0 0.0
    %511 = vmatprep.subr.mxu0 0.0
    %512 = vmatpush1.msra.mxu0 %v66
    %513 = vmatprep.subr.mxu0 0.0
    %514 = vmatpush1.msra.mxu0 %v65
    %515 = vmatprep.subr.mxu0 0.0
    %516 = vmatpush2.msra.mxu0 0.0
    %517 = vmatprep.subr.mxu0 0.0
    %518 = vmatpush2.msra.mxu0 0.0
    %519 = vmatprep.subr.mxu0 0.0
    %520 = vmatpush2.msra.mxu0 0.0
    %521 = vmatprep.subr.mxu0 0.0
    %522 = vmatpush2.msra.mxu0 0.0
    %523 = vmatprep.subr.mxu0 0.0
    %524 = vmatpush2.msra.mxu0 0.0
    %525 = vmatprep.subr.mxu0 0.0
    %526 = vmatpush2.msra.mxu0 0.0
    %527 = vmatprep.subr.mxu0 0.0
    %528 = vmatpush2.msra.mxu0 0.0
    %529 = vmatprep.subr.mxu0 0.0
    %530 = vmatpush2.msra.mxu0 0.0
    %531 = vmatprep.subr.mxu0 0.0
    %532 = vmatpush2.msra.mxu0 0.0
    %533 = vmatprep.subr.mxu0 0.0
    %534 = vmatpush2.msra.mxu0 0.0
    %535 = vmatprep.subr.mxu0 0.0
    %536 = vmatpush2.msra.mxu0 0.0
    %537 = vmatprep.subr.mxu0 0.0
    %538 = vmatpush2.msra.mxu0 0.0
    %539 = vmatprep.subr.mxu0 0.0
    %540 = vmatpush2.msra.mxu0 0.0
    %541 = vmatprep.subr.mxu0 0.0
    %542 = vmatpush2.msra.mxu0 0.0
    %543 = vmatprep.subr.mxu0 0.0
    %544 = vmatpush2.msra.mxu0 0.0
    %545 = vmatprep.subr.mxu0 0.0
    %546 = vmatpush2.msra.mxu0 0.0
    %547 = vmatprep.mubr.f32.mxu0 0.0
    %548 = vmatmul.mubr.f32.gmra.mxu0 %v478
    %v549 = vpop.f32.mrf.mxu0
    %v550 = vadd.f32 0.0, %v549
    %v551 = vpop.f32.mrf.mxu0
    %552 = vmatprep.mubr.f32.mxu0 0.0
    %553 = vmatmul.mubr.f32.gmra.mxu0 %v481
    %v554 = vpop.f32.mrf.mxu0
    %v555 = vadd.f32 0.0, %v554
    %v556 = vpop.f32.mrf.mxu0
    %557 = vdwg.mxu0
    %v559 = vsel %vm71, %v51, 0
    %v562 = vsel %vm71, %v52, 0
    %564 = vmatprep.subr.mxu0 0.0
    %565 = vmatpush1.msra.mxu0 0.0
    %566 = vmatprep.subr.mxu0 0.0
    %567 = vmatpush1.msra.mxu0 0.0
    %568 = vmatprep.subr.mxu0 0.0
    %569 = vmatpush1.msra.mxu0 0.0
    %570 = vmatprep.subr.mxu0 0.0
    %571 = vmatpush1.msra.mxu0 0.0
    %572 = vmatprep.subr.mxu0 0.0
    %573 = vmatpush1.msra.mxu0 0.0
    %574 = vmatprep.subr.mxu0 0.0
    %575 = vmatpush1.msra.mxu0 0.0
    %576 = vmatprep.subr.mxu0 0.0
    %577 = vmatpush1.msra.mxu0 0.0
    %578 = vmatprep.subr.mxu0 0.0
    %579 = vmatpush1.msra.mxu0 0.0
    %580 = vmatprep.subr.mxu0 0.0
    %581 = vmatpush1.msra.mxu0 0.0
    %582 = vmatprep.subr.mxu0 0.0
    %583 = vmatpush1.msra.mxu0 0.0
    %584 = vmatprep.subr.mxu0 0.0
    %585 = vmatpush1.msra.mxu0 0.0
    %586 = vmatprep.subr.mxu0 0.0
    %587 = vmatpush1.msra.mxu0 0.0
    %588 = vmatprep.subr.mxu0 0.0
    %589 = vmatpush1.msra.mxu0 0.0
    %590 = vmatprep.subr.mxu0 0.0
    %591 = vmatpush1.msra.mxu0 0.0
    %592 = vmatprep.subr.mxu0 0.0
    %593 = vmatpush1.msra.mxu0 %v68
    %594 = vmatprep.subr.mxu0 0.0
    %595 = vmatpush1.msra.mxu0 %v67
    %596 = vmatprep.subr.mxu0 0.0
    %597 = vmatpush2.msra.mxu0 0.0
    %598 = vmatprep.subr.mxu0 0.0
    %599 = vmatpush2.msra.mxu0 0.0
    %600 = vmatprep.subr.mxu0 0.0
    %601 = vmatpush2.msra.mxu0 0.0
    %602 = vmatprep.subr.mxu0 0.0
    %603 = vmatpush2.msra.mxu0 0.0
    %604 = vmatprep.subr.mxu0 0.0
    %605 = vmatpush2.msra.mxu0 0.0
    %606 = vmatprep.subr.mxu0 0.0
    %607 = vmatpush2.msra.mxu0 0.0
    %608 = vmatprep.subr.mxu0 0.0
    %609 = vmatpush2.msra.mxu0 0.0
    %610 = vmatprep.subr.mxu0 0.0
    %611 = vmatpush2.msra.mxu0 0.0
    %612 = vmatprep.subr.mxu0 0.0
    %613 = vmatpush2.msra.mxu0 0.0
    %614 = vmatprep.subr.mxu0 0.0
    %615 = vmatpush2.msra.mxu0 0.0
    %616 = vmatprep.subr.mxu0 0.0
    %617 = vmatpush2.msra.mxu0 0.0
    %618 = vmatprep.subr.mxu0 0.0
    %619 = vmatpush2.msra.mxu0 0.0
    %620 = vmatprep.subr.mxu0 0.0
    %621 = vmatpush2.msra.mxu0 0.0
    %622 = vmatprep.subr.mxu0 0.0
    %623 = vmatpush2.msra.mxu0 0.0
    %624 = vmatprep.subr.mxu0 0.0
    %625 = vmatpush2.msra.mxu0 0.0
    %626 = vmatprep.subr.mxu0 0.0
    %627 = vmatpush2.msra.mxu0 0.0
    %628 = vmatprep.mubr.f32.mxu0 0.0
    %629 = vmatmul.mubr.f32.gmra.mxu0 %v559
    %v630 = vpop.f32.mrf.mxu0
    %v631 = vadd.f32 0.0, %v630
    %v632 = vpop.f32.mrf.mxu0
    %633 = vmatprep.mubr.f32.mxu0 0.0
    %634 = vmatmul.mubr.f32.gmra.mxu0 %v562
    %v635 = vpop.f32.mrf.mxu0
    %v636 = vadd.f32 0.0, %v635
    %v637 = vpop.f32.mrf.mxu0
    %638 = vdwg.mxu0
    %v640 = vsel %vm71, %v53, 0
    %v643 = vsel %vm71, %v54, 0
    %645 = vmatprep.subr.mxu0 0.0
    %646 = vmatpush1.msra.mxu0 0.0
    %647 = vmatprep.subr.mxu0 0.0
    %648 = vmatpush1.msra.mxu0 0.0
    %649 = vmatprep.subr.mxu0 0.0
    %650 = vmatpush1.msra.mxu0 0.0
    %651 = vmatprep.subr.mxu0 0.0
    %652 = vmatpush1.msra.mxu0 0.0
    %653 = vmatprep.subr.mxu0 0.0
    %654 = vmatpush1.msra.mxu0 0.0
    %655 = vmatprep.subr.mxu0 0.0
    %656 = vmatpush1.msra.mxu0 0.0
    %657 = vmatprep.subr.mxu0 0.0
    %658 = vmatpush1.msra.mxu0 0.0
    %659 = vmatprep.subr.mxu0 0.0
    %660 = vmatpush1.msra.mxu0 0.0
    %661 = vmatprep.subr.mxu0 0.0
    %662 = vmatpush1.msra.mxu0 0.0
    %663 = vmatprep.subr.mxu0 0.0
    %664 = vmatpush1.msra.mxu0 0.0
    %665 = vmatprep.subr.mxu0 0.0
    %666 = vmatpush1.msra.mxu0 0.0
    %667 = vmatprep.subr.mxu0 0.0
    %668 = vmatpush1.msra.mxu0 0.0
    %669 = vmatprep.subr.mxu0 0.0
    %670 = vmatpush1.msra.mxu0 0.0
    %671 = vmatprep.subr.mxu0 0.0
    %672 = vmatpush1.msra.mxu0 0.0
    %673 = vmatprep.subr.mxu0 0.0
    %674 = vmatpush1.msra.mxu0 %v70
    %675 = vmatprep.subr.mxu0 0.0
    %676 = vmatpush1.msra.mxu0 %v69
    %677 = vmatprep.subr.mxu0 0.0
    %678 = vmatpush2.msra.mxu0 0.0
    %679 = vmatprep.subr.mxu0 0.0
    %680 = vmatpush2.msra.mxu0 0.0
    %681 = vmatprep.subr.mxu0 0.0
    %682 = vmatpush2.msra.mxu0 0.0
    %683 = vmatprep.subr.mxu0 0.0
    %684 = vmatpush2.msra.mxu0 0.0
    %685 = vmatprep.subr.mxu0 0.0
    %686 = vmatpush2.msra.mxu0 0.0
    %687 = vmatprep.subr.mxu0 0.0
    %688 = vmatpush2.msra.mxu0 0.0
    %689 = vmatprep.subr.mxu0 0.0
    %690 = vmatpush2.msra.mxu0 0.0
    %691 = vmatprep.subr.mxu0 0.0
    %692 = vmatpush2.msra.mxu0 0.0
    %693 = vmatprep.subr.mxu0 0.0
    %694 = vmatpush2.msra.mxu0 0.0
    %695 = vmatprep.subr.mxu0 0.0
    %696 = vmatpush2.msra.mxu0 0.0
    %697 = vmatprep.subr.mxu0 0.0
    %698 = vmatpush2.msra.mxu0 0.0
    %699 = vmatprep.subr.mxu0 0.0
    %700 = vmatpush2.msra.mxu0 0.0
    %701 = vmatprep.subr.mxu0 0.0
    %702 = vmatpush2.msra.mxu0 0.0
    %703 = vmatprep.subr.mxu0 0.0
    %704 = vmatpush2.msra.mxu0 0.0
    %705 = vmatprep.subr.mxu0 0.0
    %706 = vmatpush2.msra.mxu0 0.0
    %707 = vmatprep.subr.mxu0 0.0
    %708 = vmatpush2.msra.mxu0 0.0
    %709 = vmatprep.mubr.f32.mxu0 0.0
    %710 = vmatmul.mubr.f32.gmra.mxu0 %v640
    %v711 = vpop.f32.mrf.mxu0
    %v712 = vadd.f32 0.0, %v711
    %v713 = vpop.f32.mrf.mxu0
    %714 = vmatprep.mubr.f32.mxu0 0.0
    %715 = vmatmul.mubr.f32.gmra.mxu0 %v643
    %v716 = vpop.f32.mrf.mxu0
    %v717 = vadd.f32 0.0, %v716
    %v718 = vpop.f32.mrf.mxu0
    %719 = vdwg.mxu0
    %720 = vst.msk [vmem:[%s2] sm:$0xff] %vm71, %v145
    %721 = vst.msk [vmem:[%s2 + $0x8] sm:$0xff] %vm71, %v150
    %722 = vst.msk [vmem:[%s2 + $0x10] sm:$0xff] %vm71, %v226
    %723 = vst.msk [vmem:[%s2 + $0x18] sm:$0xff] %vm71, %v231
    %724 = vst.msk [vmem:[%s2 + $0x20] sm:$0xff] %vm71, %v307
    %725 = vst.msk [vmem:[%s2 + $0x28] sm:$0xff] %vm71, %v312
    %726 = vst.msk [vmem:[%s2 + $0x30] sm:$0xff] %vm71, %v388
    %727 = vst.msk [vmem:[%s2 + $0x38] sm:$0xff] %vm71, %v393
    %728 = vst.msk [vmem:[%s2 + $0x40] sm:$0xff] %vm71, %v469
    %729 = vst.msk [vmem:[%s2 + $0x48] sm:$0xff] %vm71, %v474
    %730 = vst.msk [vmem:[%s2 + $0x50] sm:$0xff] %vm71, %v550
    %731 = vst.msk [vmem:[%s2 + $0x58] sm:$0xff] %vm71, %v555
    %732 = vst.msk [vmem:[%s2 + $0x60] sm:$0xff] %vm71, %v631
    %733 = vst.msk [vmem:[%s2 + $0x68] sm:$0xff] %vm71, %v636
    %734 = vst.msk [vmem:[%s2 + $0x70] sm:$0xff] %vm71, %v712
    %735 = vst.msk [vmem:[%s2 + $0x78] sm:$0xff] %vm71, %v717
    // Predicated region
    $region18: #{_lambda_.6} parent=1 // pred_check
      _
    $region19: #{_lambda_.6} parent=1 // pred_check_branch
      %737 = sbr.rel (0) target = $region21
    $region20: #{_lambda_.6} parent=1 // pred_region
      _
    $region21: #{_lambda_.6} parent=1 // pred_fallthru
      _
    // Predicated region
    $region22: #{_lambda_.6} parent=1 // pred_check
      _
    $region23: #{_lambda_.6} parent=1 // pred_check_branch
      %739 = sbr.rel (0) target = $region25
    $region24: #{_lambda_.6} parent=1 // pred_region
      _
    $region25: #{_lambda_.6} parent=1 // pred_fallthru
      _
    %740 = vsyncpa [#allocation3], 1
    %741 = vsyncpa [#allocation5], 1

// kernel: _lambda_.7
$region0: #{_lambda_.7}
  #allocation0 [shape = 'u32[]', space=smem, size = 0x4, offset = 0x4, fixed_abs, tag = 'smem constant byte address 0x4 - core index']
  #allocation1 [shape = 'u32[144,128]{1,0:T(1,128)}', space=vmem, size = 0x12000, scoped, tag = 'internal scratch']
  %s0 = inlined_call_operand.vmem [shape: f32[2,8,256], index: 0, kind: input, shape index: {}]
  %s1 = inlined_call_operand.hbm [shape: f32[8,2], index: 1, kind: input, shape index: {}]
  %s2 = inlined_call_operand.hbm [shape: f32[1,2], index: 2, kind: input, shape index: {}]
  %s3 = inlined_call_operand.hbm [shape: f32[2,8], index: 3, kind: input, shape index: {}]
  %s4 = inlined_call_operand.hbm [shape: f32[1,8], index: 4, kind: input, shape index: {}]
  %s5 = inlined_call_operand.vmem [shape: f32[2,8,256], index: 5, kind: output, shape index: {0}]
  %s6 = inlined_call_operand.vmem [shape: f32[2,8,256], index: 6, kind: output, shape index: {1}]
  %7 = xla_tuple %s5, %s6
  %s8 = sld [smem:[#allocation0]]
  $region54: #{_lambda_.7} parent=0
    _
  %s10 = ssub.s32 1, %s8
  %s11 = scalar_select 0, %s10, %s8
  $region1: #{_lambda_.7} parent=0
    #allocation2 [shape = 'u8[4096]{0}', space=vmem, size = 0x1000, scoped, tag = 'input window, operand 1, single buffered']
    #allocation3 [shape = 's32[1]{0}', space=sflag, size = 0x4, scoped, tag = 'scoped memory for _lambda_.7']
    #allocation4 [shape = 'u8[512]{0}', space=vmem, size = 0x400, scoped, tag = 'input window, operand 2, single buffered']
    #allocation5 [shape = 's32[1]{0}', space=sflag, size = 0x4, scoped, tag = 'scoped memory for _lambda_.7']
    #allocation6 [shape = 'u8[1024]{0}', space=vmem, size = 0x400, scoped, tag = 'input window, operand 3, single buffered']
    #allocation7 [shape = 'u8[512]{0}', space=vmem, size = 0x400, scoped, tag = 'input window, operand 4, single buffered']
    #allocation8 [shape = 's32[1]{0}', space=sflag, size = 0x4, scoped, tag = 'scoped memory for _lambda_.7']
    %12 = vsyncpa [#allocation3], 0
    %13 = vsyncpa [#allocation5], 0
    %14 = vsyncpa [#allocation8], 0
    // Predicated region
    $region2: #{_lambda_.7} parent=1 // pred_check
      _
    $region3: #{_lambda_.7} parent=1 // pred_check_branch
      %16 = sbr.rel (0) target = $region5
    $region4: #{_lambda_.7} parent=1 // pred_region
      _
    $region5: #{_lambda_.7} parent=1 // pred_fallthru
      _
    // Predicated region
    $region6: #{_lambda_.7} parent=1 // pred_check
      _
    $region7: #{_lambda_.7} parent=1 // pred_check_branch
      %18 = sbr.rel (0) target = $region9
    $region8: #{_lambda_.7} parent=1 // pred_region
      %s20 = ssub.s32 128, 128
      %21 = vsyncadd [#allocation3], %s20
      %s23 = sshll.u32 [#allocation2], 4
      %s24 = int_to_ptr.vmem [resolvable:$true] %s23
      %26 = dma.hbm_to_vmem [thread:$0]  %s1, 128, %s24, [#allocation3]
    $region9: #{_lambda_.7} parent=1 // pred_fallthru
      _
    // Predicated region
    $region10: #{_lambda_.7} parent=1 // pred_check
      _
    $region11: #{_lambda_.7} parent=1 // pred_check_branch
      %28 = sbr.rel (0) target = $region13
    $region12: #{_lambda_.7} parent=1 // pred_region
      %s30 = ssub.s32 16, 16
      %31 = vsyncadd [#allocation5], %s30
      %s33 = sshll.u32 [#allocation4], 4
      %s34 = int_to_ptr.vmem [resolvable:$true] %s33
      %36 = dma.hbm_to_vmem [thread:$0]  %s2, 16, %s34, [#allocation5]
    $region13: #{_lambda_.7} parent=1 // pred_fallthru
      _
    // Predicated region
    $region14: #{_lambda_.7} parent=1 // pred_check
      _
    $region15: #{_lambda_.7} parent=1 // pred_check_branch
      %38 = sbr.rel (0) target = $region17
    $region16: #{_lambda_.7} parent=1 // pred_region
      %s40 = ssub.s32 32, 32
      %41 = vsyncadd [#allocation5], %s40
      %s43 = sshll.u32 [#allocation6], 4
      %s44 = int_to_ptr.vmem [resolvable:$true] %s43
      %46 = dma.hbm_to_vmem [thread:$0]  %s3, 32, %s44, [#allocation5]
    $region17: #{_lambda_.7} parent=1 // pred_fallthru
      _
    // Predicated region
    $region18: #{_lambda_.7} parent=1 // pred_check
      _
    $region19: #{_lambda_.7} parent=1 // pred_check_branch
      %48 = sbr.rel (0) target = $region21
    $region20: #{_lambda_.7} parent=1 // pred_region
      %s50 = ssub.s32 16, 16
      %51 = vsyncadd [#allocation8], %s50
      %s53 = sshll.u32 [#allocation7], 4
      %s54 = int_to_ptr.vmem [resolvable:$true] %s53
      %56 = dma.hbm_to_vmem [thread:$0]  %s4, 16, %s54, [#allocation8]
    $region21: #{_lambda_.7} parent=1 // pred_fallthru
      _
    // Predicated region
    $region22: #{_lambda_.7} parent=1 // pred_check
      _
    $region23: #{_lambda_.7} parent=1 // pred_check_branch
      %58 = sbr.rel (0) target = $region25
    $region24: #{_lambda_.7} parent=1 // pred_region
      %59 = dma.done [#allocation3], 128
    $region25: #{_lambda_.7} parent=1 // pred_fallthru
      _
    // Predicated region
    $region26: #{_lambda_.7} parent=1 // pred_check
      _
    $region27: #{_lambda_.7} parent=1 // pred_check_branch
      %61 = sbr.rel (0) target = $region29
    $region28: #{_lambda_.7} parent=1 // pred_region
      %62 = dma.done [#allocation5], 16
    $region29: #{_lambda_.7} parent=1 // pred_fallthru
      _
    // Predicated region
    $region30: #{_lambda_.7} parent=1 // pred_check
      _
    $region31: #{_lambda_.7} parent=1 // pred_check_branch
      %64 = sbr.rel (0) target = $region33
    $region32: #{_lambda_.7} parent=1 // pred_region
      %65 = dma.done [#allocation5], 32
    $region33: #{_lambda_.7} parent=1 // pred_fallthru
      _
    // Predicated region
    $region34: #{_lambda_.7} parent=1 // pred_check
      _
    $region35: #{_lambda_.7} parent=1 // pred_check_branch
      %67 = sbr.rel (0) target = $region37
    $region36: #{_lambda_.7} parent=1 // pred_region
      %68 = dma.done [#allocation8], 16
    $region37: #{_lambda_.7} parent=1 // pred_fallthru
      _
    %v69 = vld [vmem:[%s0] sm:$0xff]
    %v70 = vld [vmem:[%s0 + $0x8] sm:$0xff]
    %v71 = vld [vmem:[%s0 + $0x10] sm:$0xff]
    %v72 = vld [vmem:[%s0 + $0x18] sm:$0xff]
    %v73 = vadd.f32 %v69, %v70
    %74 = vadd.xlane.f32.xlu0 %v73
    %v75 = vpop.xlane.xlu0 %74
    %v76 = vadd.f32 %v71, %v72
    %77 = vadd.xlane.f32.xlu0 %v76
    %v78 = vpop.xlane.xlu0 %77
    %v79 = vrcp.pop 256.0
    %v80 = vmul.f32 %v75, %v79
    %v81 = vmul.f32 %v78, %v79
    %v82 = vld [vmem:[#allocation2] sm:$0xff]
    %v83 = vld [vmem:[#allocation4] sm:$0x1]
    %v85 = vlaneseq
    %v86 = vshrl.u32 %v85, 7
    %v87 = vsub.s32 0, %v86
    %v88 = vrot.slane %v83, %v87
    %v92 = vlaneseq
    %v93 = vand.u32 %v92, 127
    %v94 = vlaneseq
    %v95 = vshrl.u32 %v94, 7
    %v96 = vsub.s32 %v93, %v95
    %v97 = vrot.slane %v80, %v96
    %v98 = vlaneseq
    %v99 = vshrl.u32 %v98, 7
    %v100 = vsub.s32 %v93, %v99
    %v101 = vrot.slane %v81, %v100
    %vm102 = vcmask 1041409
    %v103 = vsel %vm102, %v101, %v97
    %vm104 = vcmask 64512
    %v105 = vsel %vm104, %v103, 0
    %107 = vmatprep.subr.mxu0 0.0
    %108 = vmatpush1.msra.mxu0 0.0
    %109 = vmatprep.subr.mxu0 0.0
    %110 = vmatpush1.msra.mxu0 0.0
    %111 = vmatprep.subr.mxu0 0.0
    %112 = vmatpush1.msra.mxu0 0.0
    %113 = vmatprep.subr.mxu0 0.0
    %114 = vmatpush1.msra.mxu0 0.0
    %115 = vmatprep.subr.mxu0 0.0
    %116 = vmatpush1.msra.mxu0 0.0
    %117 = vmatprep.subr.mxu0 0.0
    %118 = vmatpush1.msra.mxu0 0.0
    %119 = vmatprep.subr.mxu0 0.0
    %120 = vmatpush1.msra.mxu0 0.0
    %121 = vmatprep.subr.mxu0 0.0
    %122 = vmatpush1.msra.mxu0 0.0
    %123 = vmatprep.subr.mxu0 0.0
    %124 = vmatpush1.msra.mxu0 0.0
    %125 = vmatprep.subr.mxu0 0.0
    %126 = vmatpush1.msra.mxu0 0.0
    %127 = vmatprep.subr.mxu0 0.0
    %128 = vmatpush1.msra.mxu0 0.0
    %129 = vmatprep.subr.mxu0 0.0
    %130 = vmatpush1.msra.mxu0 0.0
    %131 = vmatprep.subr.mxu0 0.0
    %132 = vmatpush1.msra.mxu0 0.0
    %133 = vmatprep.subr.mxu0 0.0
    %134 = vmatpush1.msra.mxu0 0.0
    %135 = vmatprep.subr.mxu0 0.0
    %136 = vmatpush1.msra.mxu0 0.0
    %137 = vmatprep.subr.mxu0 0.0
    %138 = vmatpush1.msra.mxu0 %v82
    %139 = vmatprep.subr.mxu0 0.0
    %140 = vmatpush2.msra.mxu0 0.0
    %141 = vmatprep.subr.mxu0 0.0
    %142 = vmatpush2.msra.mxu0 0.0
    %143 = vmatprep.subr.mxu0 0.0
    %144 = vmatpush2.msra.mxu0 0.0
    %145 = vmatprep.subr.mxu0 0.0
    %146 = vmatpush2.msra.mxu0 0.0
    %147 = vmatprep.subr.mxu0 0.0
    %148 = vmatpush2.msra.mxu0 0.0
    %149 = vmatprep.subr.mxu0 0.0
    %150 = vmatpush2.msra.mxu0 0.0
    %151 = vmatprep.subr.mxu0 0.0
    %152 = vmatpush2.msra.mxu0 0.0
    %153 = vmatprep.subr.mxu0 0.0
    %154 = vmatpush2.msra.mxu0 0.0
    %155 = vmatprep.subr.mxu0 0.0
    %156 = vmatpush2.msra.mxu0 0.0
    %157 = vmatprep.subr.mxu0 0.0
    %158 = vmatpush2.msra.mxu0 0.0
    %159 = vmatprep.subr.mxu0 0.0
    %160 = vmatpush2.msra.mxu0 0.0
    %161 = vmatprep.subr.mxu0 0.0
    %162 = vmatpush2.msra.mxu0 0.0
    %163 = vmatprep.subr.mxu0 0.0
    %164 = vmatpush2.msra.mxu0 0.0
    %165 = vmatprep.subr.mxu0 0.0
    %166 = vmatpush2.msra.mxu0 0.0
    %167 = vmatprep.subr.mxu0 0.0
    %168 = vmatpush2.msra.mxu0 0.0
    %169 = vmatprep.subr.mxu0 0.0
    %170 = vmatpush2.msra.mxu0 0.0
    %171 = vmatprep.mubr.f32.mxu0 0.0
    %172 = vmatmul.mubr.f32.gmra.mxu0 %v105
    %v173 = vpop.f32.mrf.mxu0
    %v174 = vadd.f32 %v88, %v173
    %v175 = vpop.f32.mrf.mxu0
    %176 = vdwg.mxu0
    %v177 = vmax.f32 %v174, 0.0
    %v178 = vld [vmem:[#allocation6] sm:$0x3]
    %v179 = vld [vmem:[#allocation7] sm:$0x1]
    %v181 = vlaneseq
    %v182 = vshrl.u32 %v181, 7
    %v183 = vsub.s32 0, %v182
    %v184 = vrot.slane %v179, %v183
    %vm186 = vcmask 15360
    %v188 = vsel %vm186, %v177, 0
    %vm190 = vcmask 1041408
    %v192 = vsel %vm190, %v178, 0
    %194 = vmatprep.subr.mxu0 0.0
    %195 = vmatpush1.msra.mxu0 0.0
    %196 = vmatprep.subr.mxu0 0.0
    %197 = vmatpush1.msra.mxu0 0.0
    %198 = vmatprep.subr.mxu0 0.0
    %199 = vmatpush1.msra.mxu0 0.0
    %200 = vmatprep.subr.mxu0 0.0
    %201 = vmatpush1.msra.mxu0 0.0
    %202 = vmatprep.subr.mxu0 0.0
    %203 = vmatpush1.msra.mxu0 0.0
    %204 = vmatprep.subr.mxu0 0.0
    %205 = vmatpush1.msra.mxu0 0.0
    %206 = vmatprep.subr.mxu0 0.0
    %207 = vmatpush1.msra.mxu0 0.0
    %208 = vmatprep.subr.mxu0 0.0
    %209 = vmatpush1.msra.mxu0 0.0
    %210 = vmatprep.subr.mxu0 0.0
    %211 = vmatpush1.msra.mxu0 0.0
    %212 = vmatprep.subr.mxu0 0.0
    %213 = vmatpush1.msra.mxu0 0.0
    %214 = vmatprep.subr.mxu0 0.0
    %215 = vmatpush1.msra.mxu0 0.0
    %216 = vmatprep.subr.mxu0 0.0
    %217 = vmatpush1.msra.mxu0 0.0
    %218 = vmatprep.subr.mxu0 0.0
    %219 = vmatpush1.msra.mxu0 0.0
    %220 = vmatprep.subr.mxu0 0.0
    %221 = vmatpush1.msra.mxu0 0.0
    %222 = vmatprep.subr.mxu0 0.0
    %223 = vmatpush1.msra.mxu0 0.0
    %224 = vmatprep.subr.mxu0 0.0
    %225 = vmatpush1.msra.mxu0 %v192
    %226 = vmatprep.subr.mxu0 0.0
    %227 = vmatpush2.msra.mxu0 0.0
    %228 = vmatprep.subr.mxu0 0.0
    %229 = vmatpush2.msra.mxu0 0.0
    %230 = vmatprep.subr.mxu0 0.0
    %231 = vmatpush2.msra.mxu0 0.0
    %232 = vmatprep.subr.mxu0 0.0
    %233 = vmatpush2.msra.mxu0 0.0
    %234 = vmatprep.subr.mxu0 0.0
    %235 = vmatpush2.msra.mxu0 0.0
    %236 = vmatprep.subr.mxu0 0.0
    %237 = vmatpush2.msra.mxu0 0.0
    %238 = vmatprep.subr.mxu0 0.0
    %239 = vmatpush2.msra.mxu0 0.0
    %240 = vmatprep.subr.mxu0 0.0
    %241 = vmatpush2.msra.mxu0 0.0
    %242 = vmatprep.subr.mxu0 0.0
    %243 = vmatpush2.msra.mxu0 0.0
    %244 = vmatprep.subr.mxu0 0.0
    %245 = vmatpush2.msra.mxu0 0.0
    %246 = vmatprep.subr.mxu0 0.0
    %247 = vmatpush2.msra.mxu0 0.0
    %248 = vmatprep.subr.mxu0 0.0
    %249 = vmatpush2.msra.mxu0 0.0
    %250 = vmatprep.subr.mxu0 0.0
    %251 = vmatpush2.msra.mxu0 0.0
    %252 = vmatprep.subr.mxu0 0.0
    %253 = vmatpush2.msra.mxu0 0.0
    %254 = vmatprep.subr.mxu0 0.0
    %255 = vmatpush2.msra.mxu0 0.0
    %256 = vmatprep.subr.mxu0 0.0
    %257 = vmatpush2.msra.mxu0 0.0
    %258 = vmatprep.mubr.f32.mxu0 0.0
    %259 = vmatmul.mubr.f32.gmra.mxu0 %v188
    %v260 = vpop.f32.mrf.mxu0
    %v261 = vadd.f32 %v184, %v260
    %v262 = vpop.f32.mrf.mxu0
    %263 = vdwg.mxu0
    %v264 = vxor.u32 %v261, 2147483648
    %v265 = vmul.f32 %v264, 1.442695
    %v266 = vpow.pop %v265
    %v267 = vadd.f32 %v266, 1.0
    %v268 = vrcp.pop %v267
    %v269 = vmul.f32 1.0, %v268
    %v270 = vlaneseq
    %v271 = vshrl.u32 %v270, 7
    %v272 = vsub.s32 0, %v271
    %v273 = vrot.slane %v269, %v272
    %275 = vbcast.lane.b32.xlu0 %v273, 256
    %v276 = vpop.permute.xlu0 %275
    %v277 = vlaneseq
    %v278 = vshrl.u32 %v277, 7
    %v279 = vsub.s32 1, %v278
    %v280 = vrot.slane %v269, %v279
    %282 = vbcast.lane.b32.xlu0 %v280, 256
    %v283 = vpop.permute.xlu0 %282
    %v284 = vmul.f32 %v69, %v276
    %v285 = vmul.f32 %v70, %v276
    %v286 = vmul.f32 %v71, %v283
    %v287 = vmul.f32 %v72, %v283
    %288 = vst [vmem:[%s5] sm:$0xff] %v284
    %289 = vst [vmem:[%s5 + $0x8] sm:$0xff] %v285
    %290 = vst [vmem:[%s5 + $0x10] sm:$0xff] %v286
    %291 = vst [vmem:[%s5 + $0x18] sm:$0xff] %v287
    %v292 = vadd.f32 %v80, %v81
    %v293 = vrcp.pop 2.0
    %v294 = vmul.f32 %v292, %v293
    %v295 = vsub.f32 %v69, %v294
    %v296 = vsub.f32 %v70, %v294
    %v297 = vsub.f32 %v71, %v294
    %v298 = vsub.f32 %v72, %v294
    %v299 = vmul.f32 %v295, %v295
    %v300 = vmul.f32 %v296, %v296
    %v301 = vmul.f32 %v297, %v297
    %v302 = vmul.f32 %v298, %v298
    %v303 = vadd.f32 %v299, %v300
    %304 = vadd.xlane.f32.xlu0 %v303
    %v305 = vpop.xlane.xlu0 %304
    %v306 = vadd.f32 %v301, %v302
    %307 = vadd.xlane.f32.xlu0 %v306
    %v308 = vpop.xlane.xlu0 %307
    %v309 = vmul.f32 %v305, %v79
    %v310 = vmul.f32 %v308, %v79
    %v311 = vadd.f32 %v309, %v310
    %v312 = vmul.f32 %v311, %v293
    %v313 = vadd.f32 %v312, 1e-05
    %v314 = vrsqrt.pop %v313
    %v315 = vmul.f32 %v295, %v314
    %v316 = vmul.f32 %v296, %v314
    %v317 = vmul.f32 %v297, %v314
    %v318 = vmul.f32 %v298, %v314
    %319 = vst [vmem:[%s6] sm:$0xff] %v315
    %320 = vst [vmem:[%s6 + $0x8] sm:$0xff] %v316
    %321 = vst [vmem:[%s6 + $0x10] sm:$0xff] %v317
    %322 = vst [vmem:[%s6 + $0x18] sm:$0xff] %v318
    // Predicated region
    $region38: #{_lambda_.7} parent=1 // pred_check
      _
    $region39: #{_lambda_.7} parent=1 // pred_check_branch
      %324 = sbr.rel (0) target = $region41
    $region40: #{_lambda_.7} parent=1 // pred_region
      _
    $region41: #{_lambda_.7} parent=1 // pred_fallthru
      _
    // Predicated region
    $region42: #{_lambda_.7} parent=1 // pred_check
      _
    $region43: #{_lambda_.7} parent=1 // pred_check_branch
      %326 = sbr.rel (0) target = $region45
    $region44: #{_lambda_.7} parent=1 // pred_region
      _
    $region45: #{_lambda_.7} parent=1 // pred_fallthru
      _
    // Predicated region
    $region46: #{_lambda_.7} parent=1 // pred_check
      _
    $region47: #{_lambda_.7} parent=1 // pred_check_branch
      %328 = sbr.rel (0) target = $region49
    $region48: #{_lambda_.7} parent=1 // pred_region
      _
    $region49: #{_lambda_.7} parent=1 // pred_fallthru
      _
    // Predicated region
    $region50: #{_lambda_.7} parent=1 // pred_check
      _
    $region51: #{_lambda_.7} parent=1 // pred_check_branch
      %330 = sbr.rel (0) target = $region53
    $region52: #{_lambda_.7} parent=1 // pred_region
      _
    $region53: #{_lambda_.7} parent=1 // pred_fallthru
      _
    %331 = vsyncpa [#allocation3], 1
    %332 = vsyncpa [#allocation5], 1
    %333 = vsyncpa [#allocation8], 1

// kernel: _lambda_.8
$region0: #{_lambda_.8}
  #allocation0 [shape = 'u32[]', space=smem, size = 0x4, offset = 0x4, fixed_abs, tag = 'smem constant byte address 0x4 - core index']
  #allocation1 [shape = 'u32[144,128]{1,0:T(1,128)}', space=vmem, size = 0x12000, scoped, tag = 'internal scratch']
  %s0 = inlined_call_operand.vmem [shape: f32[2,72,256], index: 0, kind: input, shape index: {}]
  %s1 = inlined_call_operand.vmem [shape: f32[8,72], index: 1, kind: input, shape index: {}]
  %s2 = inlined_call_operand.vmem [shape: f32[2,8,256], index: 2, kind: output, shape index: {}]
  %s3 = sld [smem:[#allocation0]]
  $region41: #{_lambda_.8} parent=0
    _
  %s5 = ssub.s32 1, %s3
  %s6 = scalar_select 0, %s5, %s3
  loop: start=0, step=1, limit=4
  $region2: #{_lambda_.8} parent=0 // loop_pre_header
    _
  $region3: #{_lambda_.8} parent=0 // loop_header
    %s8 = sphi 0, %s12
    %p9 = scmp.ge.s32.totalorder %s8, 4
    %s18 = sphi 0, %s20
    %s21 = sphi 0, %s18
    %s22 = sphi 0, %s21
    %s38 = sphi 0, %s22
    %s42 = sphi 0, %s42
    %s44 = sphi 0, %s42
    %s45 = sphi 0, %s44
    %s59 = sphi 0, %s45
    %s65 = sphi 0, %s67
    %s68 = sphi 0, %s65
    %s69 = sphi 0, %s68
    %s85 = sphi 0, %s69
  $region4: #{_lambda_.8} parent=0 // loop_header_branch
    %11 = sbr.rel (%p9) target = $region8
  $region5: #{_lambda_.8} parent=0 // loop_body
    %s13 = ssub.s32 %s8, 1
    %s14 = ssub.s32 %s8, 2
    %s15 = sadd.s32 %s8, 1
    %s16 = ssub.s32 %s8, %s15
    %p17 = scmp.eq.s32.totalorder %s16, 0
    %s19 = sadd.s32 %s18, 1
    %s20 = scalar_select %p17, %s18, %s19
    %p23 = pneg %p17
    %p24 = scmp.eq.s32.totalorder %s8, 1
    %p25 = por %p23, %p24
    %p26 = scmp.ne.s32.totalorder %s18, %s21
    %p27 = scmp.eq.s32.totalorder %s8, 0
    %p28 = por %p26, %p27
    %p29 = scmp.ne.s32.totalorder %s18, %s21
    %p30 = scmp.eq.s32.totalorder %s13, 1
    %p31 = por %p29, %p30
    %p32 = scmp.ne.s32.totalorder %s21, %s22
    %p33 = scmp.eq.s32.totalorder %s13, 0
    %p34 = por %p32, %p33
    %p35 = scmp.ne.s32.totalorder %s21, %s22
    %p36 = scmp.eq.s32.totalorder %s14, 1
    %p37 = por %p35, %p36
    %p39 = scmp.ne.s32.totalorder %s22, %s38
    %p40 = scmp.eq.s32.totalorder %s14, 0
    %p41 = por %p39, %p40
    %s43 = sadd.s32 %s42, 1
    %p46 = scmp.eq.s32.totalorder %s8, 1
    %p47 = scmp.ne.s32.totalorder %s42, %s44
    %p48 = scmp.eq.s32.totalorder %s8, 0
    %p49 = por %p47, %p48
    %p50 = scmp.ne.s32.totalorder %s42, %s44
    %p51 = scmp.eq.s32.totalorder %s13, 1
    %p52 = por %p50, %p51
    %p53 = scmp.ne.s32.totalorder %s44, %s45
    %p54 = scmp.eq.s32.totalorder %s13, 0
    %p55 = por %p53, %p54
    %p56 = scmp.ne.s32.totalorder %s44, %s45
    %p57 = scmp.eq.s32.totalorder %s14, 1
    %p58 = por %p56, %p57
    %p60 = scmp.ne.s32.totalorder %s45, %s59
    %p61 = scmp.eq.s32.totalorder %s14, 0
    %p62 = por %p60, %p61
    %s63 = ssub.s32 %s8, %s15
    %p64 = scmp.eq.s32.totalorder %s63, 0
    %s66 = sadd.s32 %s65, 1
    %s67 = scalar_select %p64, %s65, %s66
    %p70 = pneg %p64
    %p71 = scmp.eq.s32.totalorder %s8, 1
    %p72 = por %p70, %p71
    %p73 = scmp.ne.s32.totalorder %s65, %s68
    %p74 = scmp.eq.s32.totalorder %s8, 0
    %p75 = por %p73, %p74
    %p76 = scmp.ne.s32.totalorder %s65, %s68
    %p77 = scmp.eq.s32.totalorder %s13, 1
    %p78 = por %p76, %p77
    %p79 = scmp.ne.s32.totalorder %s68, %s69
    %p80 = scmp.eq.s32.totalorder %s13, 0
    %p81 = por %p79, %p80
    %p82 = scmp.ne.s32.totalorder %s68, %s69
    %p83 = scmp.eq.s32.totalorder %s14, 1
    %p84 = por %p82, %p83
    %p86 = scmp.ne.s32.totalorder %s69, %s85
    %p87 = scmp.eq.s32.totalorder %s14, 0
    %p88 = por %p86, %p87
    %p89 = scmp.le.s32.totalorder 1, %s8
    %p90 = scmp.lt.s32.totalorder %s8, 3
    %p91 = pnand %p89, %p90
    %p92 = pneg %p91
    // Predicated region
    $region9: #{_lambda_.8} parent=5 // pred_check
      _
    $region10: #{_lambda_.8} parent=5 // pred_check_branch
      %94 = sbr.rel (%p91) target = $region12
    $region11: #{_lambda_.8} parent=5 // pred_region
      %s95 = ssub.s32 %s8, 1
      // Predicated region
      $region13: #{_lambda_.8} parent=11 // pred_check
        %p96 = pneg %p55
      $region14: #{_lambda_.8} parent=11 // pred_check_branch
        %98 = sbr.rel (%p96) target = $region16
      $region15: #{_lambda_.8} parent=11 // pred_region
        _
      $region16: #{_lambda_.8} parent=11 // pred_fallthru
        _
    $region12: #{_lambda_.8} parent=5 // pred_fallthru
      _
    %p99 = scmp.lt.s32.totalorder %s8, 2
    // Predicated region
    $region17: #{_lambda_.8} parent=5 // pred_check
      %p100 = pneg %p99
    $region18: #{_lambda_.8} parent=5 // pred_check_branch
      %102 = sbr.rel (%p100) target = $region20
    $region19: #{_lambda_.8} parent=5 // pred_region
      // Predicated region
      $region21: #{_lambda_.8} parent=19 // pred_check
        %p103 = pneg %p28
      $region22: #{_lambda_.8} parent=19 // pred_check_branch
        %105 = sbr.rel (%p103) target = $region24
      $region23: #{_lambda_.8} parent=19 // pred_region
        %p106 = scmp.lt.s32.totalorder %s8, 1
        %s107 = scalar_select %p106, %s8, 1
        %s108 = smul.addr %s107, 18
        %s109 = smul.addr %s108, 8
        %s110 = scalar_lea.vmem %s0, %s109
      $region24: #{_lambda_.8} parent=19 // pred_fallthru
        _
    $region20: #{_lambda_.8} parent=5 // pred_fallthru
      _
    %p111 = scmp.le.s32.totalorder 1, %s8
    %p112 = scmp.lt.s32.totalorder %s8, 3
    %p113 = pnand %p111, %p112
    %p114 = pneg %p113
    // Predicated region
    $region25: #{_lambda_.8} parent=5 // pred_check
      _
    $region26: #{_lambda_.8} parent=5 // pred_check_branch
      %116 = sbr.rel (%p113) target = $region28
    $region27: #{_lambda_.8} parent=5 // pred_region
      %s117 = ssub.s32 %s8, 1
      %p118 = scmp.lt.s32.totalorder %s13, 1
      %s119 = scalar_select %p118, %s13, 1
      %s120 = smul.addr %s119, 18
      %s121 = smul.addr %s120, 8
      %s122 = scalar_lea.vmem %s0, %s121
      %p123 = pneg %p34
      %p124 = pneg %p31
      %p125 = pneg %p55
      %p126 = pneg %p52
      %p127 = pneg %p81
      %p128 = pneg %p78
      %p129 = scmp.lt.s32.totalorder %s13, 1
      %s130 = scalar_select %p129, %s13, 1
      %s131 = smul.addr %s130, 2
      %s132 = smul.addr %s131, 8
      %s133 = scalar_lea.vmem %s2, %s132
      %p134 = scmp.lt.s32.totalorder %s13, 1
      %s135 = scalar_select %p134, %s13, 1
      %s136 = smul.addr %s135, 18
      %s137 = smul.addr %s136, 8
      %s138 = scalar_lea.vmem %s0, %s137
      %p139 = scmp.lt.s32.totalorder %s13, 1
      %s140 = scalar_select %p139, %s13, 1
      %s141 = smul.addr %s140, 2
      %s142 = smul.addr %s141, 8
      %s143 = scalar_lea.vmem %s2, %s142
      %v144 = vld [vmem:[%s1] sm:$0xff]
      %v145 = vld [vmem:[%s138] sm:$0xff]
      %v146 = vld [vmem:[%s138 + $0x8] sm:$0xff]
      %v147 = vld [vmem:[%s138 + $0x10] sm:$0xff]
      %v148 = vld [vmem:[%s138 + $0x18] sm:$0xff]
      %v149 = vld [vmem:[%s138 + $0x20] sm:$0xff]
      %v150 = vld [vmem:[%s138 + $0x28] sm:$0xff]
      %v151 = vld [vmem:[%s138 + $0x30] sm:$0xff]
      %v152 = vld [vmem:[%s138 + $0x38] sm:$0xff]
      %v153 = vld [vmem:[%s138 + $0x40] sm:$0xff]
      %v154 = vld [vmem:[%s138 + $0x48] sm:$0xff]
      %v155 = vld [vmem:[%s138 + $0x50] sm:$0xff]
      %v156 = vld [vmem:[%s138 + $0x58] sm:$0xff]
      %v157 = vld [vmem:[%s138 + $0x60] sm:$0xff]
      %v158 = vld [vmem:[%s138 + $0x68] sm:$0xff]
      %v159 = vld [vmem:[%s138 + $0x70] sm:$0xff]
      %v160 = vld [vmem:[%s138 + $0x78] sm:$0xff]
      %v161 = vld [vmem:[%s138 + $0x80] sm:$0xff]
      %v162 = vld [vmem:[%s138 + $0x88] sm:$0xff]
      %vm163 = vcmask 588800
      %v165 = vsel %vm163, %v144, 0
      %167 = vmatprep.subr.mxu0 0.0
      %168 = vmatpush1.msra.mxu0 0.0
      %169 = vmatprep.subr.mxu0 0.0
      %170 = vmatpush1.msra.mxu0 0.0
      %171 = vmatprep.subr.mxu0 0.0
      %172 = vmatpush1.msra.mxu0 0.0
      %173 = vmatprep.subr.mxu0 0.0
      %174 = vmatpush1.msra.mxu0 0.0
      %175 = vmatprep.subr.mxu0 0.0
      %176 = vmatpush1.msra.mxu0 0.0
      %177 = vmatprep.subr.mxu0 0.0
      %178 = vmatpush1.msra.mxu0 0.0
      %179 = vmatprep.subr.mxu0 0.0
      %180 = vmatpush1.msra.mxu0 0.0
      %181 = vmatprep.subr.mxu0 %v162
      %182 = vmatpush1.msra.mxu0 %v161
      %183 = vmatprep.subr.mxu0 %v160
      %184 = vmatpush1.msra.mxu0 %v159
      %185 = vmatprep.subr.mxu0 %v158
      %186 = vmatpush1.msra.mxu0 %v157
      %187 = vmatprep.subr.mxu0 %v156
      %188 = vmatpush1.msra.mxu0 %v155
      %189 = vmatprep.subr.mxu0 %v154
      %190 = vmatpush1.msra.mxu0 %v153
      %191 = vmatprep.subr.mxu0 %v152
      %192 = vmatpush1.msra.mxu0 %v151
      %193 = vmatprep.subr.mxu0 %v150
      %194 = vmatpush1.msra.mxu0 %v149
      %195 = vmatprep.subr.mxu0 %v148
      %196 = vmatpush1.msra.mxu0 %v147
      %197 = vmatprep.subr.mxu0 %v146
      %198 = vmatpush1.msra.mxu0 %v145
      %199 = vmatprep.subr.mxu0 0.0
      %200 = vmatpush2.msra.mxu0 0.0
      %201 = vmatprep.subr.mxu0 0.0
      %202 = vmatpush2.msra.mxu0 0.0
      %203 = vmatprep.subr.mxu0 0.0
      %204 = vmatpush2.msra.mxu0 0.0
      %205 = vmatprep.subr.mxu0 0.0
      %206 = vmatpush2.msra.mxu0 0.0
      %207 = vmatprep.subr.mxu0 0.0
      %208 = vmatpush2.msra.mxu0 0.0
      %209 = vmatprep.subr.mxu0 0.0
      %210 = vmatpush2.msra.mxu0 0.0
      %211 = vmatprep.subr.mxu0 0.0
      %212 = vmatpush2.msra.mxu0 0.0
      %213 = vmatprep.subr.mxu0 0.0
      %214 = vmatpush2.msra.mxu0 0.0
      %215 = vmatprep.subr.mxu0 0.0
      %216 = vmatpush2.msra.mxu0 0.0
      %217 = vmatprep.subr.mxu0 0.0
      %218 = vmatpush2.msra.mxu0 0.0
      %219 = vmatprep.subr.mxu0 0.0
      %220 = vmatpush2.msra.mxu0 0.0
      %221 = vmatprep.subr.mxu0 0.0
      %222 = vmatpush2.msra.mxu0 0.0
      %223 = vmatprep.subr.mxu0 0.0
      %224 = vmatpush2.msra.mxu0 0.0
      %225 = vmatprep.subr.mxu0 0.0
      %226 = vmatpush2.msra.mxu0 0.0
      %227 = vmatprep.subr.mxu0 0.0
      %228 = vmatpush2.msra.mxu0 0.0
      %229 = vmatprep.subr.mxu0 0.0
      %230 = vmatpush2.msra.mxu0 0.0
      %231 = vmatprep.mubr.f32.mxu0 0.0
      %232 = vmatmul.mubr.f32.gmra.mxu0 %v165
      %v233 = vpop.f32.mrf.mxu0
      %v234 = vadd.f32 0.0, %v233
      %v235 = vpop.f32.mrf.mxu0
      %v236 = vadd.f32 0.0, %v235
      %237 = vdwg.mxu0
      %v238 = vmax.f32 %v234, 0.0
      %v239 = vmax.f32 %v236, 0.0
      %240 = vst [vmem:[%s143] sm:$0xff] %v238
      %241 = vst [vmem:[%s143 + $0x8] sm:$0xff] %v239
      %p242 = scmp.lt.s32.totalorder %s13, 1
      %s243 = scalar_select %p242, %s13, 1
      %s244 = smul.addr %s243, 2
      %s245 = smul.addr %s244, 8
      %s246 = scalar_lea.vmem %s2, %s245
      // Predicated region
      $region29: #{_lambda_.8} parent=27 // pred_check
        %p247 = pneg %p78
      $region30: #{_lambda_.8} parent=27 // pred_check_branch
        %249 = sbr.rel (%p247) target = $region32
      $region31: #{_lambda_.8} parent=27 // pred_region
        _
      $region32: #{_lambda_.8} parent=27 // pred_fallthru
        _
    $region28: #{_lambda_.8} parent=5 // pred_fallthru
      _
    %p250 = scmp.le.s32.totalorder 2, %s8
    // Predicated region
    $region33: #{_lambda_.8} parent=5 // pred_check
      %p251 = pneg %p250
    $region34: #{_lambda_.8} parent=5 // pred_check_branch
      %253 = sbr.rel (%p251) target = $region36
    $region35: #{_lambda_.8} parent=5 // pred_region
      %s254 = ssub.s32 %s8, 2
      // Predicated region
      $region37: #{_lambda_.8} parent=35 // pred_check
        %p255 = pneg %p84
      $region38: #{_lambda_.8} parent=35 // pred_check_branch
        %257 = sbr.rel (%p255) target = $region40
      $region39: #{_lambda_.8} parent=35 // pred_region
        %p258 = scmp.lt.s32.totalorder %s14, 1
        %s259 = scalar_select %p258, %s14, 1
        %s260 = smul.addr %s259, 2
        %s261 = smul.addr %s260, 8
        %s262 = scalar_lea.vmem %s2, %s261
      $region40: #{_lambda_.8} parent=35 // pred_fallthru
        _
    $region36: #{_lambda_.8} parent=5 // pred_fallthru
      _
  $region6: #{_lambda_.8} parent=0 // loop_footer
    %s12 = sadd.s32 1, %s8
  $region7: #{_lambda_.8} parent=0 // loop_footer_branch
    %7 = sbr.rel target = $region3
  $region8: #{_lambda_.8} parent=0 // loop_exit
    _

// kernel: _lambda_.9
$region0: #{_lambda_.9}
  #allocation0 [shape = 'u32[]', space=smem, size = 0x4, offset = 0x4, fixed_abs, tag = 'smem constant byte address 0x4 - core index']
  #allocation1 [shape = 'u32[144,128]{1,0:T(1,128)}', space=vmem, size = 0x12000, scoped, tag = 'internal scratch']
  %s0 = inlined_call_operand.vmem [shape: f32[2,72,256], index: 0, kind: input, shape index: {}]
  %s1 = inlined_call_operand.vmem [shape: f32[8,72], index: 1, kind: input, shape index: {}]
  %s2 = inlined_call_operand.vmem [shape: f32[2,8,256], index: 2, kind: output, shape index: {}]
  %s3 = sld [smem:[#allocation0]]
  $region41: #{_lambda_.9} parent=0
    _
  %s5 = ssub.s32 1, %s3
  %s6 = scalar_select 0, %s5, %s3
  loop: start=0, step=1, limit=4
  $region2: #{_lambda_.9} parent=0 // loop_pre_header
    _
  $region3: #{_lambda_.9} parent=0 // loop_header
    %s8 = sphi 0, %s12
    %p9 = scmp.ge.s32.totalorder %s8, 4
    %s18 = sphi 0, %s20
    %s21 = sphi 0, %s18
    %s22 = sphi 0, %s21
    %s38 = sphi 0, %s22
    %s42 = sphi 0, %s42
    %s44 = sphi 0, %s42
    %s45 = sphi 0, %s44
    %s59 = sphi 0, %s45
    %s65 = sphi 0, %s67
    %s68 = sphi 0, %s65
    %s69 = sphi 0, %s68
    %s85 = sphi 0, %s69
  $region4: #{_lambda_.9} parent=0 // loop_header_branch
    %11 = sbr.rel (%p9) target = $region8
  $region5: #{_lambda_.9} parent=0 // loop_body
    %s13 = ssub.s32 %s8, 1
    %s14 = ssub.s32 %s8, 2
    %s15 = sadd.s32 %s8, 1
    %s16 = ssub.s32 %s8, %s15
    %p17 = scmp.eq.s32.totalorder %s16, 0
    %s19 = sadd.s32 %s18, 1
    %s20 = scalar_select %p17, %s18, %s19
    %p23 = pneg %p17
    %p24 = scmp.eq.s32.totalorder %s8, 1
    %p25 = por %p23, %p24
    %p26 = scmp.ne.s32.totalorder %s18, %s21
    %p27 = scmp.eq.s32.totalorder %s8, 0
    %p28 = por %p26, %p27
    %p29 = scmp.ne.s32.totalorder %s18, %s21
    %p30 = scmp.eq.s32.totalorder %s13, 1
    %p31 = por %p29, %p30
    %p32 = scmp.ne.s32.totalorder %s21, %s22
    %p33 = scmp.eq.s32.totalorder %s13, 0
    %p34 = por %p32, %p33
    %p35 = scmp.ne.s32.totalorder %s21, %s22
    %p36 = scmp.eq.s32.totalorder %s14, 1
    %p37 = por %p35, %p36
    %p39 = scmp.ne.s32.totalorder %s22, %s38
    %p40 = scmp.eq.s32.totalorder %s14, 0
    %p41 = por %p39, %p40
    %s43 = sadd.s32 %s42, 1
    %p46 = scmp.eq.s32.totalorder %s8, 1
    %p47 = scmp.ne.s32.totalorder %s42, %s44
    %p48 = scmp.eq.s32.totalorder %s8, 0
    %p49 = por %p47, %p48
    %p50 = scmp.ne.s32.totalorder %s42, %s44
    %p51 = scmp.eq.s32.totalorder %s13, 1
    %p52 = por %p50, %p51
    %p53 = scmp.ne.s32.totalorder %s44, %s45
    %p54 = scmp.eq.s32.totalorder %s13, 0
    %p55 = por %p53, %p54
    %p56 = scmp.ne.s32.totalorder %s44, %s45
    %p57 = scmp.eq.s32.totalorder %s14, 1
    %p58 = por %p56, %p57
    %p60 = scmp.ne.s32.totalorder %s45, %s59
    %p61 = scmp.eq.s32.totalorder %s14, 0
    %p62 = por %p60, %p61
    %s63 = ssub.s32 %s8, %s15
    %p64 = scmp.eq.s32.totalorder %s63, 0
    %s66 = sadd.s32 %s65, 1
    %s67 = scalar_select %p64, %s65, %s66
    %p70 = pneg %p64
    %p71 = scmp.eq.s32.totalorder %s8, 1
    %p72 = por %p70, %p71
    %p73 = scmp.ne.s32.totalorder %s65, %s68
    %p74 = scmp.eq.s32.totalorder %s8, 0
    %p75 = por %p73, %p74
    %p76 = scmp.ne.s32.totalorder %s65, %s68
    %p77 = scmp.eq.s32.totalorder %s13, 1
    %p78 = por %p76, %p77
    %p79 = scmp.ne.s32.totalorder %s68, %s69
    %p80 = scmp.eq.s32.totalorder %s13, 0
    %p81 = por %p79, %p80
    %p82 = scmp.ne.s32.totalorder %s68, %s69
    %p83 = scmp.eq.s32.totalorder %s14, 1
    %p84 = por %p82, %p83
    %p86 = scmp.ne.s32.totalorder %s69, %s85
    %p87 = scmp.eq.s32.totalorder %s14, 0
    %p88 = por %p86, %p87
    %p89 = scmp.le.s32.totalorder 1, %s8
    %p90 = scmp.lt.s32.totalorder %s8, 3
    %p91 = pnand %p89, %p90
    %p92 = pneg %p91
    // Predicated region
    $region9: #{_lambda_.9} parent=5 // pred_check
      _
    $region10: #{_lambda_.9} parent=5 // pred_check_branch
      %94 = sbr.rel (%p91) target = $region12
    $region11: #{_lambda_.9} parent=5 // pred_region
      %s95 = ssub.s32 %s8, 1
      // Predicated region
      $region13: #{_lambda_.9} parent=11 // pred_check
        %p96 = pneg %p55
      $region14: #{_lambda_.9} parent=11 // pred_check_branch
        %98 = sbr.rel (%p96) target = $region16
      $region15: #{_lambda_.9} parent=11 // pred_region
        _
      $region16: #{_lambda_.9} parent=11 // pred_fallthru
        _
    $region12: #{_lambda_.9} parent=5 // pred_fallthru
      _
    %p99 = scmp.lt.s32.totalorder %s8, 2
    // Predicated region
    $region17: #{_lambda_.9} parent=5 // pred_check
      %p100 = pneg %p99
    $region18: #{_lambda_.9} parent=5 // pred_check_branch
      %102 = sbr.rel (%p100) target = $region20
    $region19: #{_lambda_.9} parent=5 // pred_region
      // Predicated region
      $region21: #{_lambda_.9} parent=19 // pred_check
        %p103 = pneg %p28
      $region22: #{_lambda_.9} parent=19 // pred_check_branch
        %105 = sbr.rel (%p103) target = $region24
      $region23: #{_lambda_.9} parent=19 // pred_region
        %p106 = scmp.lt.s32.totalorder %s8, 1
        %s107 = scalar_select %p106, %s8, 1
        %s108 = smul.addr %s107, 18
        %s109 = smul.addr %s108, 8
        %s110 = scalar_lea.vmem %s0, %s109
      $region24: #{_lambda_.9} parent=19 // pred_fallthru
        _
    $region20: #{_lambda_.9} parent=5 // pred_fallthru
      _
    %p111 = scmp.le.s32.totalorder 1, %s8
    %p112 = scmp.lt.s32.totalorder %s8, 3
    %p113 = pnand %p111, %p112
    %p114 = pneg %p113
    // Predicated region
    $region25: #{_lambda_.9} parent=5 // pred_check
      _
    $region26: #{_lambda_.9} parent=5 // pred_check_branch
      %116 = sbr.rel (%p113) target = $region28
    $region27: #{_lambda_.9} parent=5 // pred_region
      %s117 = ssub.s32 %s8, 1
      %p118 = scmp.lt.s32.totalorder %s13, 1
      %s119 = scalar_select %p118, %s13, 1
      %s120 = smul.addr %s119, 18
      %s121 = smul.addr %s120, 8
      %s122 = scalar_lea.vmem %s0, %s121
      %p123 = pneg %p34
      %p124 = pneg %p31
      %p125 = pneg %p55
      %p126 = pneg %p52
      %p127 = pneg %p81
      %p128 = pneg %p78
      %p129 = scmp.lt.s32.totalorder %s13, 1
      %s130 = scalar_select %p129, %s13, 1
      %s131 = smul.addr %s130, 2
      %s132 = smul.addr %s131, 8
      %s133 = scalar_lea.vmem %s2, %s132
      %p134 = scmp.lt.s32.totalorder %s13, 1
      %s135 = scalar_select %p134, %s13, 1
      %s136 = smul.addr %s135, 18
      %s137 = smul.addr %s136, 8
      %s138 = scalar_lea.vmem %s0, %s137
      %p139 = scmp.lt.s32.totalorder %s13, 1
      %s140 = scalar_select %p139, %s13, 1
      %s141 = smul.addr %s140, 2
      %s142 = smul.addr %s141, 8
      %s143 = scalar_lea.vmem %s2, %s142
      %v144 = vld [vmem:[%s1] sm:$0xff]
      %v145 = vld [vmem:[%s138] sm:$0xff]
      %v146 = vld [vmem:[%s138 + $0x8] sm:$0xff]
      %v147 = vld [vmem:[%s138 + $0x10] sm:$0xff]
      %v148 = vld [vmem:[%s138 + $0x18] sm:$0xff]
      %v149 = vld [vmem:[%s138 + $0x20] sm:$0xff]
      %v150 = vld [vmem:[%s138 + $0x28] sm:$0xff]
      %v151 = vld [vmem:[%s138 + $0x30] sm:$0xff]
      %v152 = vld [vmem:[%s138 + $0x38] sm:$0xff]
      %v153 = vld [vmem:[%s138 + $0x40] sm:$0xff]
      %v154 = vld [vmem:[%s138 + $0x48] sm:$0xff]
      %v155 = vld [vmem:[%s138 + $0x50] sm:$0xff]
      %v156 = vld [vmem:[%s138 + $0x58] sm:$0xff]
      %v157 = vld [vmem:[%s138 + $0x60] sm:$0xff]
      %v158 = vld [vmem:[%s138 + $0x68] sm:$0xff]
      %v159 = vld [vmem:[%s138 + $0x70] sm:$0xff]
      %v160 = vld [vmem:[%s138 + $0x78] sm:$0xff]
      %v161 = vld [vmem:[%s138 + $0x80] sm:$0xff]
      %v162 = vld [vmem:[%s138 + $0x88] sm:$0xff]
      %vm163 = vcmask 588800
      %v165 = vsel %vm163, %v144, 0
      %167 = vmatprep.subr.mxu0 0.0
      %168 = vmatpush1.msra.mxu0 0.0
      %169 = vmatprep.subr.mxu0 0.0
      %170 = vmatpush1.msra.mxu0 0.0
      %171 = vmatprep.subr.mxu0 0.0
      %172 = vmatpush1.msra.mxu0 0.0
      %173 = vmatprep.subr.mxu0 0.0
      %174 = vmatpush1.msra.mxu0 0.0
      %175 = vmatprep.subr.mxu0 0.0
      %176 = vmatpush1.msra.mxu0 0.0
      %177 = vmatprep.subr.mxu0 0.0
      %178 = vmatpush1.msra.mxu0 0.0
      %179 = vmatprep.subr.mxu0 0.0
      %180 = vmatpush1.msra.mxu0 0.0
      %181 = vmatprep.subr.mxu0 %v162
      %182 = vmatpush1.msra.mxu0 %v161
      %183 = vmatprep.subr.mxu0 %v160
      %184 = vmatpush1.msra.mxu0 %v159
      %185 = vmatprep.subr.mxu0 %v158
      %186 = vmatpush1.msra.mxu0 %v157
      %187 = vmatprep.subr.mxu0 %v156
      %188 = vmatpush1.msra.mxu0 %v155
      %189 = vmatprep.subr.mxu0 %v154
      %190 = vmatpush1.msra.mxu0 %v153
      %191 = vmatprep.subr.mxu0 %v152
      %192 = vmatpush1.msra.mxu0 %v151
      %193 = vmatprep.subr.mxu0 %v150
      %194 = vmatpush1.msra.mxu0 %v149
      %195 = vmatprep.subr.mxu0 %v148
      %196 = vmatpush1.msra.mxu0 %v147
      %197 = vmatprep.subr.mxu0 %v146
      %198 = vmatpush1.msra.mxu0 %v145
      %199 = vmatprep.subr.mxu0 0.0
      %200 = vmatpush2.msra.mxu0 0.0
      %201 = vmatprep.subr.mxu0 0.0
      %202 = vmatpush2.msra.mxu0 0.0
      %203 = vmatprep.subr.mxu0 0.0
      %204 = vmatpush2.msra.mxu0 0.0
      %205 = vmatprep.subr.mxu0 0.0
      %206 = vmatpush2.msra.mxu0 0.0
      %207 = vmatprep.subr.mxu0 0.0
      %208 = vmatpush2.msra.mxu0 0.0
      %209 = vmatprep.subr.mxu0 0.0
      %210 = vmatpush2.msra.mxu0 0.0
      %211 = vmatprep.subr.mxu0 0.0
      %212 = vmatpush2.msra.mxu0 0.0
      %213 = vmatprep.subr.mxu0 0.0
      %214 = vmatpush2.msra.mxu0 0.0
      %215 = vmatprep.subr.mxu0 0.0
      %216 = vmatpush2.msra.mxu0 0.0
      %217 = vmatprep.subr.mxu0 0.0
      %218 = vmatpush2.msra.mxu0 0.0
      %219 = vmatprep.subr.mxu0 0.0
      %220 = vmatpush2.msra.mxu0 0.0
      %221 = vmatprep.subr.mxu0 0.0
      %222 = vmatpush2.msra.mxu0 0.0
      %223 = vmatprep.subr.mxu0 0.0
      %224 = vmatpush2.msra.mxu0 0.0
      %225 = vmatprep.subr.mxu0 0.0
      %226 = vmatpush2.msra.mxu0 0.0
      %227 = vmatprep.subr.mxu0 0.0
      %228 = vmatpush2.msra.mxu0 0.0
      %229 = vmatprep.subr.mxu0 0.0
      %230 = vmatpush2.msra.mxu0 0.0
      %231 = vmatprep.mubr.f32.mxu0 0.0
      %232 = vmatmul.mubr.f32.gmra.mxu0 %v165
      %v233 = vpop.f32.mrf.mxu0
      %v234 = vadd.f32 0.0, %v233
      %v235 = vpop.f32.mrf.mxu0
      %v236 = vadd.f32 0.0, %v235
      %237 = vdwg.mxu0
      %238 = vst [vmem:[%s143] sm:$0xff] %v234
      %239 = vst [vmem:[%s143 + $0x8] sm:$0xff] %v236
      %p240 = scmp.lt.s32.totalorder %s13, 1
      %s241 = scalar_select %p240, %s13, 1
      %s242 = smul.addr %s241, 2
      %s243 = smul.addr %s242, 8
      %s244 = scalar_lea.vmem %s2, %s243
      // Predicated region
      $region29: #{_lambda_.9} parent=27 // pred_check
        %p245 = pneg %p78
      $region30: #{_lambda_.9} parent=27 // pred_check_branch
        %247 = sbr.rel (%p245) target = $region32
      $region31: #{_lambda_.9} parent=27 // pred_region
        _
      $region32: #{_lambda_.9} parent=27 // pred_fallthru
        _
    $region28: #{_lambda_.9} parent=5 // pred_fallthru
      _
    %p248 = scmp.le.s32.totalorder 2, %s8
    // Predicated region
    $region33: #{_lambda_.9} parent=5 // pred_check
      %p249 = pneg %p248
    $region34: #{_lambda_.9} parent=5 // pred_check_branch
      %251 = sbr.rel (%p249) target = $region36
    $region35: #{_lambda_.9} parent=5 // pred_region
      %s252 = ssub.s32 %s8, 2
      // Predicated region
      $region37: #{_lambda_.9} parent=35 // pred_check
        %p253 = pneg %p84
      $region38: #{_lambda_.9} parent=35 // pred_check_branch
        %255 = sbr.rel (%p253) target = $region40
      $region39: #{_lambda_.9} parent=35 // pred_region
        %p256 = scmp.lt.s32.totalorder %s14, 1
        %s257 = scalar_select %p256, %s14, 1
        %s258 = smul.addr %s257, 2
        %s259 = smul.addr %s258, 8
        %s260 = scalar_lea.vmem %s2, %s259
      $region40: #{_lambda_.9} parent=35 // pred_fallthru
        _
    $region36: #{_lambda_.9} parent=5 // pred_fallthru
      _
  $region6: #{_lambda_.9} parent=0 // loop_footer
    %s12 = sadd.s32 1, %s8
  $region7: #{_lambda_.9} parent=0 // loop_footer_branch
    %7 = sbr.rel target = $region3
  $region8: #{_lambda_.9} parent=0 // loop_exit
    _

// kernel: _lambda_.10
$region0: #{_lambda_.10}
  #allocation0 [shape = 'u32[]', space=smem, size = 0x4, offset = 0x4, fixed_abs, tag = 'smem constant byte address 0x4 - core index']
  #allocation1 [shape = 'u32[144,128]{1,0:T(1,128)}', space=vmem, size = 0x12000, scoped, tag = 'internal scratch']
  %s0 = inlined_call_operand.vmem [shape: f32[8,288], index: 0, kind: input, shape index: {}]
  %s1 = inlined_call_operand.vmem [shape: f32[8,288], index: 1, kind: input, shape index: {}]
  %s2 = inlined_call_operand.vmem [shape: f32[8,8], index: 2, kind: input, shape index: {}]
  %s3 = inlined_call_operand.vmem [shape: f32[8,8], index: 3, kind: input, shape index: {}]
  %s4 = inlined_call_operand.vmem [shape: f32[8,8], index: 4, kind: input, shape index: {}]
  %s5 = inlined_call_operand.vmem [shape: f32[8,8], index: 5, kind: input, shape index: {}]
  %s6 = inlined_call_operand.vmem [shape: f32[8,288], index: 6, kind: output, shape index: {0}]
  %s7 = inlined_call_operand.vmem [shape: f32[8,288], index: 7, kind: output, shape index: {1}]
  %8 = xla_tuple %s6, %s7
  %s9 = sld [smem:[#allocation0]]
  $region42: #{_lambda_.10} parent=0
    _
  %s11 = ssub.s32 1, %s9
  %s12 = scalar_select 0, %s11, %s9
  // Predicated region
  $region2: #{_lambda_.10} parent=0 // pred_check
    _
  $region3: #{_lambda_.10} parent=0 // pred_check_branch
    %14 = sbr.rel (0) target = $region5
  $region4: #{_lambda_.10} parent=0 // pred_region
    _
  $region5: #{_lambda_.10} parent=0 // pred_fallthru
    _
  // Predicated region
  $region6: #{_lambda_.10} parent=0 // pred_check
    _
  $region7: #{_lambda_.10} parent=0 // pred_check_branch
    %16 = sbr.rel (0) target = $region9
  $region8: #{_lambda_.10} parent=0 // pred_region
    _
  $region9: #{_lambda_.10} parent=0 // pred_fallthru
    _
  // Predicated region
  $region10: #{_lambda_.10} parent=0 // pred_check
    _
  $region11: #{_lambda_.10} parent=0 // pred_check_branch
    %18 = sbr.rel (0) target = $region13
  $region12: #{_lambda_.10} parent=0 // pred_region
    _
  $region13: #{_lambda_.10} parent=0 // pred_fallthru
    _
  // Predicated region
  $region14: #{_lambda_.10} parent=0 // pred_check
    _
  $region15: #{_lambda_.10} parent=0 // pred_check_branch
    %20 = sbr.rel (0) target = $region17
  $region16: #{_lambda_.10} parent=0 // pred_region
    _
  $region17: #{_lambda_.10} parent=0 // pred_fallthru
    _
  // Predicated region
  $region18: #{_lambda_.10} parent=0 // pred_check
    _
  $region19: #{_lambda_.10} parent=0 // pred_check_branch
    %22 = sbr.rel (0) target = $region21
  $region20: #{_lambda_.10} parent=0 // pred_region
    _
  $region21: #{_lambda_.10} parent=0 // pred_fallthru
    _
  // Predicated region
  $region22: #{_lambda_.10} parent=0 // pred_check
    _
  $region23: #{_lambda_.10} parent=0 // pred_check_branch
    %24 = sbr.rel (0) target = $region25
  $region24: #{_lambda_.10} parent=0 // pred_region
    _
  $region25: #{_lambda_.10} parent=0 // pred_fallthru
    _
  %v25 = vld [vmem:[%s0] sm:$0xff]
  %v26 = vld [vmem:[%s0 + $0x8] sm:$0xff]
  %v27 = vld [vmem:[%s0 + $0x10] sm:$0xff]
  %v28 = vld [vmem:[%s1] sm:$0xff]
  %v29 = vld [vmem:[%s1 + $0x8] sm:$0xff]
  %v30 = vld [vmem:[%s1 + $0x10] sm:$0xff]
  %v31 = vld [vmem:[%s2] sm:$0xff]
  %v32 = vld [vmem:[%s3] sm:$0xff]
  %vm33 = vcmask 64512
  %v35 = vsel %vm33, %v31, 0
  %37 = vmatprep.subr.mxu0 0.0
  %38 = vmatpush1.msra.mxu0 0.0
  %39 = vmatprep.subr.mxu0 0.0
  %40 = vmatpush1.msra.mxu0 0.0
  %41 = vmatprep.subr.mxu0 0.0
  %42 = vmatpush1.msra.mxu0 0.0
  %43 = vmatprep.subr.mxu0 0.0
  %44 = vmatpush1.msra.mxu0 0.0
  %45 = vmatprep.subr.mxu0 0.0
  %46 = vmatpush1.msra.mxu0 0.0
  %47 = vmatprep.subr.mxu0 0.0
  %48 = vmatpush1.msra.mxu0 0.0
  %49 = vmatprep.subr.mxu0 0.0
  %50 = vmatpush1.msra.mxu0 0.0
  %51 = vmatprep.subr.mxu0 0.0
  %52 = vmatpush1.msra.mxu0 0.0
  %53 = vmatprep.subr.mxu0 0.0
  %54 = vmatpush1.msra.mxu0 0.0
  %55 = vmatprep.subr.mxu0 0.0
  %56 = vmatpush1.msra.mxu0 0.0
  %57 = vmatprep.subr.mxu0 0.0
  %58 = vmatpush1.msra.mxu0 0.0
  %59 = vmatprep.subr.mxu0 0.0
  %60 = vmatpush1.msra.mxu0 0.0
  %61 = vmatprep.subr.mxu0 0.0
  %62 = vmatpush1.msra.mxu0 0.0
  %63 = vmatprep.subr.mxu0 0.0
  %64 = vmatpush1.msra.mxu0 0.0
  %65 = vmatprep.subr.mxu0 0.0
  %66 = vmatpush1.msra.mxu0 0.0
  %67 = vmatprep.subr.mxu0 %v26
  %68 = vmatpush1.msra.mxu0 %v25
  %69 = vmatprep.subr.mxu0 0.0
  %70 = vmatpush2.msra.mxu0 0.0
  %71 = vmatprep.subr.mxu0 0.0
  %72 = vmatpush2.msra.mxu0 0.0
  %73 = vmatprep.subr.mxu0 0.0
  %74 = vmatpush2.msra.mxu0 0.0
  %75 = vmatprep.subr.mxu0 0.0
  %76 = vmatpush2.msra.mxu0 0.0
  %77 = vmatprep.subr.mxu0 0.0
  %78 = vmatpush2.msra.mxu0 0.0
  %79 = vmatprep.subr.mxu0 0.0
  %80 = vmatpush2.msra.mxu0 0.0
  %81 = vmatprep.subr.mxu0 0.0
  %82 = vmatpush2.msra.mxu0 0.0
  %83 = vmatprep.subr.mxu0 0.0
  %84 = vmatpush2.msra.mxu0 0.0
  %85 = vmatprep.subr.mxu0 0.0
  %86 = vmatpush2.msra.mxu0 0.0
  %87 = vmatprep.subr.mxu0 0.0
  %88 = vmatpush2.msra.mxu0 0.0
  %89 = vmatprep.subr.mxu0 0.0
  %90 = vmatpush2.msra.mxu0 0.0
  %91 = vmatprep.subr.mxu0 0.0
  %92 = vmatpush2.msra.mxu0 0.0
  %93 = vmatprep.subr.mxu0 0.0
  %94 = vmatpush2.msra.mxu0 0.0
  %95 = vmatprep.subr.mxu0 0.0
  %96 = vmatpush2.msra.mxu0 0.0
  %97 = vmatprep.subr.mxu0 0.0
  %98 = vmatpush2.msra.mxu0 0.0
  %99 = vmatprep.subr.mxu0 0.0
  %100 = vmatpush2.msra.mxu0 0.0
  %101 = vmatprep.mubr.f32.mxu0 0.0
  %102 = vmatmul.mubr.f32.gmra.mxu0 %v35
  %v103 = vpop.f32.mrf.mxu0
  %v104 = vadd.f32 0.0, %v103
  %v105 = vpop.f32.mrf.mxu0
  %v106 = vadd.f32 0.0, %v105
  %107 = vdwg.mxu0
  %108 = vmatprep.subr.mxu0 0.0
  %109 = vmatpush1.msra.mxu0 0.0
  %110 = vmatprep.subr.mxu0 0.0
  %111 = vmatpush1.msra.mxu0 0.0
  %112 = vmatprep.subr.mxu0 0.0
  %113 = vmatpush1.msra.mxu0 0.0
  %114 = vmatprep.subr.mxu0 0.0
  %115 = vmatpush1.msra.mxu0 0.0
  %116 = vmatprep.subr.mxu0 0.0
  %117 = vmatpush1.msra.mxu0 0.0
  %118 = vmatprep.subr.mxu0 0.0
  %119 = vmatpush1.msra.mxu0 0.0
  %120 = vmatprep.subr.mxu0 0.0
  %121 = vmatpush1.msra.mxu0 0.0
  %122 = vmatprep.subr.mxu0 0.0
  %123 = vmatpush1.msra.mxu0 0.0
  %124 = vmatprep.subr.mxu0 0.0
  %125 = vmatpush1.msra.mxu0 0.0
  %126 = vmatprep.subr.mxu0 0.0
  %127 = vmatpush1.msra.mxu0 0.0
  %128 = vmatprep.subr.mxu0 0.0
  %129 = vmatpush1.msra.mxu0 0.0
  %130 = vmatprep.subr.mxu0 0.0
  %131 = vmatpush1.msra.mxu0 0.0
  %132 = vmatprep.subr.mxu0 0.0
  %133 = vmatpush1.msra.mxu0 0.0
  %134 = vmatprep.subr.mxu0 0.0
  %135 = vmatpush1.msra.mxu0 0.0
  %136 = vmatprep.subr.mxu0 0.0
  %137 = vmatpush1.msra.mxu0 0.0
  %138 = vmatprep.subr.mxu0 0.0
  %139 = vmatpush1.msra.mxu0 %v27
  %140 = vmatprep.subr.mxu0 0.0
  %141 = vmatpush2.msra.mxu0 0.0
  %142 = vmatprep.subr.mxu0 0.0
  %143 = vmatpush2.msra.mxu0 0.0
  %144 = vmatprep.subr.mxu0 0.0
  %145 = vmatpush2.msra.mxu0 0.0
  %146 = vmatprep.subr.mxu0 0.0
  %147 = vmatpush2.msra.mxu0 0.0
  %148 = vmatprep.subr.mxu0 0.0
  %149 = vmatpush2.msra.mxu0 0.0
  %150 = vmatprep.subr.mxu0 0.0
  %151 = vmatpush2.msra.mxu0 0.0
  %152 = vmatprep.subr.mxu0 0.0
  %153 = vmatpush2.msra.mxu0 0.0
  %154 = vmatprep.subr.mxu0 0.0
  %155 = vmatpush2.msra.mxu0 0.0
  %156 = vmatprep.subr.mxu0 0.0
  %157 = vmatpush2.msra.mxu0 0.0
  %158 = vmatprep.subr.mxu0 0.0
  %159 = vmatpush2.msra.mxu0 0.0
  %160 = vmatprep.subr.mxu0 0.0
  %161 = vmatpush2.msra.mxu0 0.0
  %162 = vmatprep.subr.mxu0 0.0
  %163 = vmatpush2.msra.mxu0 0.0
  %164 = vmatprep.subr.mxu0 0.0
  %165 = vmatpush2.msra.mxu0 0.0
  %166 = vmatprep.subr.mxu0 0.0
  %167 = vmatpush2.msra.mxu0 0.0
  %168 = vmatprep.subr.mxu0 0.0
  %169 = vmatpush2.msra.mxu0 0.0
  %170 = vmatprep.subr.mxu0 0.0
  %171 = vmatpush2.msra.mxu0 0.0
  %172 = vmatprep.mubr.f32.mxu0 0.0
  %173 = vmatmul.mubr.f32.gmra.mxu0 %v35
  %v174 = vpop.f32.mrf.mxu0
  %v175 = vadd.f32 0.0, %v174
  %v176 = vpop.f32.mrf.mxu0
  %177 = vdwg.mxu0
  %v179 = vsel %vm33, %v32, 0
  %181 = vmatprep.subr.mxu0 0.0
  %182 = vmatpush1.msra.mxu0 0.0
  %183 = vmatprep.subr.mxu0 0.0
  %184 = vmatpush1.msra.mxu0 0.0
  %185 = vmatprep.subr.mxu0 0.0
  %186 = vmatpush1.msra.mxu0 0.0
  %187 = vmatprep.subr.mxu0 0.0
  %188 = vmatpush1.msra.mxu0 0.0
  %189 = vmatprep.subr.mxu0 0.0
  %190 = vmatpush1.msra.mxu0 0.0
  %191 = vmatprep.subr.mxu0 0.0
  %192 = vmatpush1.msra.mxu0 0.0
  %193 = vmatprep.subr.mxu0 0.0
  %194 = vmatpush1.msra.mxu0 0.0
  %195 = vmatprep.subr.mxu0 0.0
  %196 = vmatpush1.msra.mxu0 0.0
  %197 = vmatprep.subr.mxu0 0.0
  %198 = vmatpush1.msra.mxu0 0.0
  %199 = vmatprep.subr.mxu0 0.0
  %200 = vmatpush1.msra.mxu0 0.0
  %201 = vmatprep.subr.mxu0 0.0
  %202 = vmatpush1.msra.mxu0 0.0
  %203 = vmatprep.subr.mxu0 0.0
  %204 = vmatpush1.msra.mxu0 0.0
  %205 = vmatprep.subr.mxu0 0.0
  %206 = vmatpush1.msra.mxu0 0.0
  %207 = vmatprep.subr.mxu0 0.0
  %208 = vmatpush1.msra.mxu0 0.0
  %209 = vmatprep.subr.mxu0 0.0
  %210 = vmatpush1.msra.mxu0 0.0
  %211 = vmatprep.subr.mxu0 %v29
  %212 = vmatpush1.msra.mxu0 %v28
  %213 = vmatprep.subr.mxu0 0.0
  %214 = vmatpush2.msra.mxu0 0.0
  %215 = vmatprep.subr.mxu0 0.0
  %216 = vmatpush2.msra.mxu0 0.0
  %217 = vmatprep.subr.mxu0 0.0
  %218 = vmatpush2.msra.mxu0 0.0
  %219 = vmatprep.subr.mxu0 0.0
  %220 = vmatpush2.msra.mxu0 0.0
  %221 = vmatprep.subr.mxu0 0.0
  %222 = vmatpush2.msra.mxu0 0.0
  %223 = vmatprep.subr.mxu0 0.0
  %224 = vmatpush2.msra.mxu0 0.0
  %225 = vmatprep.subr.mxu0 0.0
  %226 = vmatpush2.msra.mxu0 0.0
  %227 = vmatprep.subr.mxu0 0.0
  %228 = vmatpush2.msra.mxu0 0.0
  %229 = vmatprep.subr.mxu0 0.0
  %230 = vmatpush2.msra.mxu0 0.0
  %231 = vmatprep.subr.mxu0 0.0
  %232 = vmatpush2.msra.mxu0 0.0
  %233 = vmatprep.subr.mxu0 0.0
  %234 = vmatpush2.msra.mxu0 0.0
  %235 = vmatprep.subr.mxu0 0.0
  %236 = vmatpush2.msra.mxu0 0.0
  %237 = vmatprep.subr.mxu0 0.0
  %238 = vmatpush2.msra.mxu0 0.0
  %239 = vmatprep.subr.mxu0 0.0
  %240 = vmatpush2.msra.mxu0 0.0
  %241 = vmatprep.subr.mxu0 0.0
  %242 = vmatpush2.msra.mxu0 0.0
  %243 = vmatprep.subr.mxu0 0.0
  %244 = vmatpush2.msra.mxu0 0.0
  %245 = vmatprep.mubr.f32.mxu0 0.0
  %246 = vmatmul.mubr.f32.gmra.mxu0 %v179
  %v247 = vpop.f32.mrf.mxu0
  %v248 = vadd.f32 0.0, %v247
  %v249 = vpop.f32.mrf.mxu0
  %v250 = vadd.f32 0.0, %v249
  %251 = vdwg.mxu0
  %252 = vmatprep.subr.mxu0 0.0
  %253 = vmatpush1.msra.mxu0 0.0
  %254 = vmatprep.subr.mxu0 0.0
  %255 = vmatpush1.msra.mxu0 0.0
  %256 = vmatprep.subr.mxu0 0.0
  %257 = vmatpush1.msra.mxu0 0.0
  %258 = vmatprep.subr.mxu0 0.0
  %259 = vmatpush1.msra.mxu0 0.0
  %260 = vmatprep.subr.mxu0 0.0
  %261 = vmatpush1.msra.mxu0 0.0
  %262 = vmatprep.subr.mxu0 0.0
  %263 = vmatpush1.msra.mxu0 0.0
  %264 = vmatprep.subr.mxu0 0.0
  %265 = vmatpush1.msra.mxu0 0.0
  %266 = vmatprep.subr.mxu0 0.0
  %267 = vmatpush1.msra.mxu0 0.0
  %268 = vmatprep.subr.mxu0 0.0
  %269 = vmatpush1.msra.mxu0 0.0
  %270 = vmatprep.subr.mxu0 0.0
  %271 = vmatpush1.msra.mxu0 0.0
  %272 = vmatprep.subr.mxu0 0.0
  %273 = vmatpush1.msra.mxu0 0.0
  %274 = vmatprep.subr.mxu0 0.0
  %275 = vmatpush1.msra.mxu0 0.0
  %276 = vmatprep.subr.mxu0 0.0
  %277 = vmatpush1.msra.mxu0 0.0
  %278 = vmatprep.subr.mxu0 0.0
  %279 = vmatpush1.msra.mxu0 0.0
  %280 = vmatprep.subr.mxu0 0.0
  %281 = vmatpush1.msra.mxu0 0.0
  %282 = vmatprep.subr.mxu0 0.0
  %283 = vmatpush1.msra.mxu0 %v30
  %284 = vmatprep.subr.mxu0 0.0
  %285 = vmatpush2.msra.mxu0 0.0
  %286 = vmatprep.subr.mxu0 0.0
  %287 = vmatpush2.msra.mxu0 0.0
  %288 = vmatprep.subr.mxu0 0.0
  %289 = vmatpush2.msra.mxu0 0.0
  %290 = vmatprep.subr.mxu0 0.0
  %291 = vmatpush2.msra.mxu0 0.0
  %292 = vmatprep.subr.mxu0 0.0
  %293 = vmatpush2.msra.mxu0 0.0
  %294 = vmatprep.subr.mxu0 0.0
  %295 = vmatpush2.msra.mxu0 0.0
  %296 = vmatprep.subr.mxu0 0.0
  %297 = vmatpush2.msra.mxu0 0.0
  %298 = vmatprep.subr.mxu0 0.0
  %299 = vmatpush2.msra.mxu0 0.0
  %300 = vmatprep.subr.mxu0 0.0
  %301 = vmatpush2.msra.mxu0 0.0
  %302 = vmatprep.subr.mxu0 0.0
  %303 = vmatpush2.msra.mxu0 0.0
  %304 = vmatprep.subr.mxu0 0.0
  %305 = vmatpush2.msra.mxu0 0.0
  %306 = vmatprep.subr.mxu0 0.0
  %307 = vmatpush2.msra.mxu0 0.0
  %308 = vmatprep.subr.mxu0 0.0
  %309 = vmatpush2.msra.mxu0 0.0
  %310 = vmatprep.subr.mxu0 0.0
  %311 = vmatpush2.msra.mxu0 0.0
  %312 = vmatprep.subr.mxu0 0.0
  %313 = vmatpush2.msra.mxu0 0.0
  %314 = vmatprep.subr.mxu0 0.0
  %315 = vmatpush2.msra.mxu0 0.0
  %316 = vmatprep.mubr.f32.mxu0 0.0
  %317 = vmatmul.mubr.f32.gmra.mxu0 %v179
  %v318 = vpop.f32.mrf.mxu0
  %v319 = vadd.f32 0.0, %v318
  %v320 = vpop.f32.mrf.mxu0
  %321 = vdwg.mxu0
  %v322 = vsub.f32 %v104, %v248
  %v323 = vsub.f32 %v106, %v250
  %v324 = vsub.f32 %v175, %v319
  %325 = vmatprep.subr.mxu0 0.0
  %326 = vmatpush1.msra.mxu0 0.0
  %327 = vmatprep.subr.mxu0 0.0
  %328 = vmatpush1.msra.mxu0 0.0
  %329 = vmatprep.subr.mxu0 0.0
  %330 = vmatpush1.msra.mxu0 0.0
  %331 = vmatprep.subr.mxu0 0.0
  %332 = vmatpush1.msra.mxu0 0.0
  %333 = vmatprep.subr.mxu0 0.0
  %334 = vmatpush1.msra.mxu0 0.0
  %335 = vmatprep.subr.mxu0 0.0
  %336 = vmatpush1.msra.mxu0 0.0
  %337 = vmatprep.subr.mxu0 0.0
  %338 = vmatpush1.msra.mxu0 0.0
  %339 = vmatprep.subr.mxu0 0.0
  %340 = vmatpush1.msra.mxu0 0.0
  %341 = vmatprep.subr.mxu0 0.0
  %342 = vmatpush1.msra.mxu0 0.0
  %343 = vmatprep.subr.mxu0 0.0
  %344 = vmatpush1.msra.mxu0 0.0
  %345 = vmatprep.subr.mxu0 0.0
  %346 = vmatpush1.msra.mxu0 0.0
  %347 = vmatprep.subr.mxu0 0.0
  %348 = vmatpush1.msra.mxu0 0.0
  %349 = vmatprep.subr.mxu0 0.0
  %350 = vmatpush1.msra.mxu0 0.0
  %351 = vmatprep.subr.mxu0 0.0
  %352 = vmatpush1.msra.mxu0 0.0
  %353 = vmatprep.subr.mxu0 0.0
  %354 = vmatpush1.msra.mxu0 0.0
  %355 = vmatprep.subr.mxu0 %v26
  %356 = vmatpush1.msra.mxu0 %v25
  %357 = vmatprep.subr.mxu0 0.0
  %358 = vmatpush2.msra.mxu0 0.0
  %359 = vmatprep.subr.mxu0 0.0
  %360 = vmatpush2.msra.mxu0 0.0
  %361 = vmatprep.subr.mxu0 0.0
  %362 = vmatpush2.msra.mxu0 0.0
  %363 = vmatprep.subr.mxu0 0.0
  %364 = vmatpush2.msra.mxu0 0.0
  %365 = vmatprep.subr.mxu0 0.0
  %366 = vmatpush2.msra.mxu0 0.0
  %367 = vmatprep.subr.mxu0 0.0
  %368 = vmatpush2.msra.mxu0 0.0
  %369 = vmatprep.subr.mxu0 0.0
  %370 = vmatpush2.msra.mxu0 0.0
  %371 = vmatprep.subr.mxu0 0.0
  %372 = vmatpush2.msra.mxu0 0.0
  %373 = vmatprep.subr.mxu0 0.0
  %374 = vmatpush2.msra.mxu0 0.0
  %375 = vmatprep.subr.mxu0 0.0
  %376 = vmatpush2.msra.mxu0 0.0
  %377 = vmatprep.subr.mxu0 0.0
  %378 = vmatpush2.msra.mxu0 0.0
  %379 = vmatprep.subr.mxu0 0.0
  %380 = vmatpush2.msra.mxu0 0.0
  %381 = vmatprep.subr.mxu0 0.0
  %382 = vmatpush2.msra.mxu0 0.0
  %383 = vmatprep.subr.mxu0 0.0
  %384 = vmatpush2.msra.mxu0 0.0
  %385 = vmatprep.subr.mxu0 0.0
  %386 = vmatpush2.msra.mxu0 0.0
  %387 = vmatprep.subr.mxu0 0.0
  %388 = vmatpush2.msra.mxu0 0.0
  %389 = vmatprep.mubr.f32.mxu0 0.0
  %390 = vmatmul.mubr.f32.gmra.mxu0 %v179
  %v391 = vpop.f32.mrf.mxu0
  %v392 = vadd.f32 0.0, %v391
  %v393 = vpop.f32.mrf.mxu0
  %v394 = vadd.f32 0.0, %v393
  %395 = vdwg.mxu0
  %396 = vmatprep.subr.mxu0 0.0
  %397 = vmatpush1.msra.mxu0 0.0
  %398 = vmatprep.subr.mxu0 0.0
  %399 = vmatpush1.msra.mxu0 0.0
  %400 = vmatprep.subr.mxu0 0.0
  %401 = vmatpush1.msra.mxu0 0.0
  %402 = vmatprep.subr.mxu0 0.0
  %403 = vmatpush1.msra.mxu0 0.0
  %404 = vmatprep.subr.mxu0 0.0
  %405 = vmatpush1.msra.mxu0 0.0
  %406 = vmatprep.subr.mxu0 0.0
  %407 = vmatpush1.msra.mxu0 0.0
  %408 = vmatprep.subr.mxu0 0.0
  %409 = vmatpush1.msra.mxu0 0.0
  %410 = vmatprep.subr.mxu0 0.0
  %411 = vmatpush1.msra.mxu0 0.0
  %412 = vmatprep.subr.mxu0 0.0
  %413 = vmatpush1.msra.mxu0 0.0
  %414 = vmatprep.subr.mxu0 0.0
  %415 = vmatpush1.msra.mxu0 0.0
  %416 = vmatprep.subr.mxu0 0.0
  %417 = vmatpush1.msra.mxu0 0.0
  %418 = vmatprep.subr.mxu0 0.0
  %419 = vmatpush1.msra.mxu0 0.0
  %420 = vmatprep.subr.mxu0 0.0
  %421 = vmatpush1.msra.mxu0 0.0
  %422 = vmatprep.subr.mxu0 0.0
  %423 = vmatpush1.msra.mxu0 0.0
  %424 = vmatprep.subr.mxu0 0.0
  %425 = vmatpush1.msra.mxu0 0.0
  %426 = vmatprep.subr.mxu0 0.0
  %427 = vmatpush1.msra.mxu0 %v27
  %428 = vmatprep.subr.mxu0 0.0
  %429 = vmatpush2.msra.mxu0 0.0
  %430 = vmatprep.subr.mxu0 0.0
  %431 = vmatpush2.msra.mxu0 0.0
  %432 = vmatprep.subr.mxu0 0.0
  %433 = vmatpush2.msra.mxu0 0.0
  %434 = vmatprep.subr.mxu0 0.0
  %435 = vmatpush2.msra.mxu0 0.0
  %436 = vmatprep.subr.mxu0 0.0
  %437 = vmatpush2.msra.mxu0 0.0
  %438 = vmatprep.subr.mxu0 0.0
  %439 = vmatpush2.msra.mxu0 0.0
  %440 = vmatprep.subr.mxu0 0.0
  %441 = vmatpush2.msra.mxu0 0.0
  %442 = vmatprep.subr.mxu0 0.0
  %443 = vmatpush2.msra.mxu0 0.0
  %444 = vmatprep.subr.mxu0 0.0
  %445 = vmatpush2.msra.mxu0 0.0
  %446 = vmatprep.subr.mxu0 0.0
  %447 = vmatpush2.msra.mxu0 0.0
  %448 = vmatprep.subr.mxu0 0.0
  %449 = vmatpush2.msra.mxu0 0.0
  %450 = vmatprep.subr.mxu0 0.0
  %451 = vmatpush2.msra.mxu0 0.0
  %452 = vmatprep.subr.mxu0 0.0
  %453 = vmatpush2.msra.mxu0 0.0
  %454 = vmatprep.subr.mxu0 0.0
  %455 = vmatpush2.msra.mxu0 0.0
  %456 = vmatprep.subr.mxu0 0.0
  %457 = vmatpush2.msra.mxu0 0.0
  %458 = vmatprep.subr.mxu0 0.0
  %459 = vmatpush2.msra.mxu0 0.0
  %460 = vmatprep.mubr.f32.mxu0 0.0
  %461 = vmatmul.mubr.f32.gmra.mxu0 %v179
  %v462 = vpop.f32.mrf.mxu0
  %v463 = vadd.f32 0.0, %v462
  %v464 = vpop.f32.mrf.mxu0
  %465 = vdwg.mxu0
  %466 = vmatprep.subr.mxu0 0.0
  %467 = vmatpush1.msra.mxu0 0.0
  %468 = vmatprep.subr.mxu0 0.0
  %469 = vmatpush1.msra.mxu0 0.0
  %470 = vmatprep.subr.mxu0 0.0
  %471 = vmatpush1.msra.mxu0 0.0
  %472 = vmatprep.subr.mxu0 0.0
  %473 = vmatpush1.msra.mxu0 0.0
  %474 = vmatprep.subr.mxu0 0.0
  %475 = vmatpush1.msra.mxu0 0.0
  %476 = vmatprep.subr.mxu0 0.0
  %477 = vmatpush1.msra.mxu0 0.0
  %478 = vmatprep.subr.mxu0 0.0
  %479 = vmatpush1.msra.mxu0 0.0
  %480 = vmatprep.subr.mxu0 0.0
  %481 = vmatpush1.msra.mxu0 0.0
  %482 = vmatprep.subr.mxu0 0.0
  %483 = vmatpush1.msra.mxu0 0.0
  %484 = vmatprep.subr.mxu0 0.0
  %485 = vmatpush1.msra.mxu0 0.0
  %486 = vmatprep.subr.mxu0 0.0
  %487 = vmatpush1.msra.mxu0 0.0
  %488 = vmatprep.subr.mxu0 0.0
  %489 = vmatpush1.msra.mxu0 0.0
  %490 = vmatprep.subr.mxu0 0.0
  %491 = vmatpush1.msra.mxu0 0.0
  %492 = vmatprep.subr.mxu0 0.0
  %493 = vmatpush1.msra.mxu0 0.0
  %494 = vmatprep.subr.mxu0 0.0
  %495 = vmatpush1.msra.mxu0 0.0
  %496 = vmatprep.subr.mxu0 %v29
  %497 = vmatpush1.msra.mxu0 %v28
  %498 = vmatprep.subr.mxu0 0.0
  %499 = vmatpush2.msra.mxu0 0.0
  %500 = vmatprep.subr.mxu0 0.0
  %501 = vmatpush2.msra.mxu0 0.0
  %502 = vmatprep.subr.mxu0 0.0
  %503 = vmatpush2.msra.mxu0 0.0
  %504 = vmatprep.subr.mxu0 0.0
  %505 = vmatpush2.msra.mxu0 0.0
  %506 = vmatprep.subr.mxu0 0.0
  %507 = vmatpush2.msra.mxu0 0.0
  %508 = vmatprep.subr.mxu0 0.0
  %509 = vmatpush2.msra.mxu0 0.0
  %510 = vmatprep.subr.mxu0 0.0
  %511 = vmatpush2.msra.mxu0 0.0
  %512 = vmatprep.subr.mxu0 0.0
  %513 = vmatpush2.msra.mxu0 0.0
  %514 = vmatprep.subr.mxu0 0.0
  %515 = vmatpush2.msra.mxu0 0.0
  %516 = vmatprep.subr.mxu0 0.0
  %517 = vmatpush2.msra.mxu0 0.0
  %518 = vmatprep.subr.mxu0 0.0
  %519 = vmatpush2.msra.mxu0 0.0
  %520 = vmatprep.subr.mxu0 0.0
  %521 = vmatpush2.msra.mxu0 0.0
  %522 = vmatprep.subr.mxu0 0.0
  %523 = vmatpush2.msra.mxu0 0.0
  %524 = vmatprep.subr.mxu0 0.0
  %525 = vmatpush2.msra.mxu0 0.0
  %526 = vmatprep.subr.mxu0 0.0
  %527 = vmatpush2.msra.mxu0 0.0
  %528 = vmatprep.subr.mxu0 0.0
  %529 = vmatpush2.msra.mxu0 0.0
  %530 = vmatprep.mubr.f32.mxu0 0.0
  %531 = vmatmul.mubr.f32.gmra.mxu0 %v35
  %v532 = vpop.f32.mrf.mxu0
  %v533 = vadd.f32 %v392, %v532
  %v534 = vpop.f32.mrf.mxu0
  %v535 = vadd.f32 %v394, %v534
  %536 = vdwg.mxu0
  %537 = vmatprep.subr.mxu0 0.0
  %538 = vmatpush1.msra.mxu0 0.0
  %539 = vmatprep.subr.mxu0 0.0
  %540 = vmatpush1.msra.mxu0 0.0
  %541 = vmatprep.subr.mxu0 0.0
  %542 = vmatpush1.msra.mxu0 0.0
  %543 = vmatprep.subr.mxu0 0.0
  %544 = vmatpush1.msra.mxu0 0.0
  %545 = vmatprep.subr.mxu0 0.0
  %546 = vmatpush1.msra.mxu0 0.0
  %547 = vmatprep.subr.mxu0 0.0
  %548 = vmatpush1.msra.mxu0 0.0
  %549 = vmatprep.subr.mxu0 0.0
  %550 = vmatpush1.msra.mxu0 0.0
  %551 = vmatprep.subr.mxu0 0.0
  %552 = vmatpush1.msra.mxu0 0.0
  %553 = vmatprep.subr.mxu0 0.0
  %554 = vmatpush1.msra.mxu0 0.0
  %555 = vmatprep.subr.mxu0 0.0
  %556 = vmatpush1.msra.mxu0 0.0
  %557 = vmatprep.subr.mxu0 0.0
  %558 = vmatpush1.msra.mxu0 0.0
  %559 = vmatprep.subr.mxu0 0.0
  %560 = vmatpush1.msra.mxu0 0.0
  %561 = vmatprep.subr.mxu0 0.0
  %562 = vmatpush1.msra.mxu0 0.0
  %563 = vmatprep.subr.mxu0 0.0
  %564 = vmatpush1.msra.mxu0 0.0
  %565 = vmatprep.subr.mxu0 0.0
  %566 = vmatpush1.msra.mxu0 0.0
  %567 = vmatprep.subr.mxu0 0.0
  %568 = vmatpush1.msra.mxu0 %v30
  %569 = vmatprep.subr.mxu0 0.0
  %570 = vmatpush2.msra.mxu0 0.0
  %571 = vmatprep.subr.mxu0 0.0
  %572 = vmatpush2.msra.mxu0 0.0
  %573 = vmatprep.subr.mxu0 0.0
  %574 = vmatpush2.msra.mxu0 0.0
  %575 = vmatprep.subr.mxu0 0.0
  %576 = vmatpush2.msra.mxu0 0.0
  %577 = vmatprep.subr.mxu0 0.0
  %578 = vmatpush2.msra.mxu0 0.0
  %579 = vmatprep.subr.mxu0 0.0
  %580 = vmatpush2.msra.mxu0 0.0
  %581 = vmatprep.subr.mxu0 0.0
  %582 = vmatpush2.msra.mxu0 0.0
  %583 = vmatprep.subr.mxu0 0.0
  %584 = vmatpush2.msra.mxu0 0.0
  %585 = vmatprep.subr.mxu0 0.0
  %586 = vmatpush2.msra.mxu0 0.0
  %587 = vmatprep.subr.mxu0 0.0
  %588 = vmatpush2.msra.mxu0 0.0
  %589 = vmatprep.subr.mxu0 0.0
  %590 = vmatpush2.msra.mxu0 0.0
  %591 = vmatprep.subr.mxu0 0.0
  %592 = vmatpush2.msra.mxu0 0.0
  %593 = vmatprep.subr.mxu0 0.0
  %594 = vmatpush2.msra.mxu0 0.0
  %595 = vmatprep.subr.mxu0 0.0
  %596 = vmatpush2.msra.mxu0 0.0
  %597 = vmatprep.subr.mxu0 0.0
  %598 = vmatpush2.msra.mxu0 0.0
  %599 = vmatprep.subr.mxu0 0.0
  %600 = vmatpush2.msra.mxu0 0.0
  %601 = vmatprep.mubr.f32.mxu0 0.0
  %602 = vmatmul.mubr.f32.gmra.mxu0 %v35
  %v603 = vpop.f32.mrf.mxu0
  %v604 = vadd.f32 %v463, %v603
  %v605 = vpop.f32.mrf.mxu0
  %606 = vdwg.mxu0
  %v607 = vmax.f32 %v322, 0.0
  %v608 = vmax.f32 %v323, 0.0
  %v609 = vmax.f32 %v324, 0.0
  %v610 = vmax.f32 %v533, 0.0
  %v611 = vmax.f32 %v535, 0.0
  %v612 = vmax.f32 %v604, 0.0
  %v613 = vld [vmem:[%s4] sm:$0xff]
  %v614 = vld [vmem:[%s5] sm:$0xff]
  %v616 = vsel %vm33, %v613, 0
  %618 = vmatprep.subr.mxu0 0.0
  %619 = vmatpush1.msra.mxu0 0.0
  %620 = vmatprep.subr.mxu0 0.0
  %621 = vmatpush1.msra.mxu0 0.0
  %622 = vmatprep.subr.mxu0 0.0
  %623 = vmatpush1.msra.mxu0 0.0
  %624 = vmatprep.subr.mxu0 0.0
  %625 = vmatpush1.msra.mxu0 0.0
  %626 = vmatprep.subr.mxu0 0.0
  %627 = vmatpush1.msra.mxu0 0.0
  %628 = vmatprep.subr.mxu0 0.0
  %629 = vmatpush1.msra.mxu0 0.0
  %630 = vmatprep.subr.mxu0 0.0
  %631 = vmatpush1.msra.mxu0 0.0
  %632 = vmatprep.subr.mxu0 0.0
  %633 = vmatpush1.msra.mxu0 0.0
  %634 = vmatprep.subr.mxu0 0.0
  %635 = vmatpush1.msra.mxu0 0.0
  %636 = vmatprep.subr.mxu0 0.0
  %637 = vmatpush1.msra.mxu0 0.0
  %638 = vmatprep.subr.mxu0 0.0
  %639 = vmatpush1.msra.mxu0 0.0
  %640 = vmatprep.subr.mxu0 0.0
  %641 = vmatpush1.msra.mxu0 0.0
  %642 = vmatprep.subr.mxu0 0.0
  %643 = vmatpush1.msra.mxu0 0.0
  %644 = vmatprep.subr.mxu0 0.0
  %645 = vmatpush1.msra.mxu0 0.0
  %646 = vmatprep.subr.mxu0 0.0
  %647 = vmatpush1.msra.mxu0 0.0
  %648 = vmatprep.subr.mxu0 %v608
  %649 = vmatpush1.msra.mxu0 %v607
  %650 = vmatprep.subr.mxu0 0.0
  %651 = vmatpush2.msra.mxu0 0.0
  %652 = vmatprep.subr.mxu0 0.0
  %653 = vmatpush2.msra.mxu0 0.0
  %654 = vmatprep.subr.mxu0 0.0
  %655 = vmatpush2.msra.mxu0 0.0
  %656 = vmatprep.subr.mxu0 0.0
  %657 = vmatpush2.msra.mxu0 0.0
  %658 = vmatprep.subr.mxu0 0.0
  %659 = vmatpush2.msra.mxu0 0.0
  %660 = vmatprep.subr.mxu0 0.0
  %661 = vmatpush2.msra.mxu0 0.0
  %662 = vmatprep.subr.mxu0 0.0
  %663 = vmatpush2.msra.mxu0 0.0
  %664 = vmatprep.subr.mxu0 0.0
  %665 = vmatpush2.msra.mxu0 0.0
  %666 = vmatprep.subr.mxu0 0.0
  %667 = vmatpush2.msra.mxu0 0.0
  %668 = vmatprep.subr.mxu0 0.0
  %669 = vmatpush2.msra.mxu0 0.0
  %670 = vmatprep.subr.mxu0 0.0
  %671 = vmatpush2.msra.mxu0 0.0
  %672 = vmatprep.subr.mxu0 0.0
  %673 = vmatpush2.msra.mxu0 0.0
  %674 = vmatprep.subr.mxu0 0.0
  %675 = vmatpush2.msra.mxu0 0.0
  %676 = vmatprep.subr.mxu0 0.0
  %677 = vmatpush2.msra.mxu0 0.0
  %678 = vmatprep.subr.mxu0 0.0
  %679 = vmatpush2.msra.mxu0 0.0
  %680 = vmatprep.subr.mxu0 0.0
  %681 = vmatpush2.msra.mxu0 0.0
  %682 = vmatprep.mubr.f32.mxu0 0.0
  %683 = vmatmul.mubr.f32.gmra.mxu0 %v616
  %v684 = vpop.f32.mrf.mxu0
  %v685 = vadd.f32 0.0, %v684
  %v686 = vpop.f32.mrf.mxu0
  %v687 = vadd.f32 0.0, %v686
  %688 = vdwg.mxu0
  %689 = vmatprep.subr.mxu0 0.0
  %690 = vmatpush1.msra.mxu0 0.0
  %691 = vmatprep.subr.mxu0 0.0
  %692 = vmatpush1.msra.mxu0 0.0
  %693 = vmatprep.subr.mxu0 0.0
  %694 = vmatpush1.msra.mxu0 0.0
  %695 = vmatprep.subr.mxu0 0.0
  %696 = vmatpush1.msra.mxu0 0.0
  %697 = vmatprep.subr.mxu0 0.0
  %698 = vmatpush1.msra.mxu0 0.0
  %699 = vmatprep.subr.mxu0 0.0
  %700 = vmatpush1.msra.mxu0 0.0
  %701 = vmatprep.subr.mxu0 0.0
  %702 = vmatpush1.msra.mxu0 0.0
  %703 = vmatprep.subr.mxu0 0.0
  %704 = vmatpush1.msra.mxu0 0.0
  %705 = vmatprep.subr.mxu0 0.0
  %706 = vmatpush1.msra.mxu0 0.0
  %707 = vmatprep.subr.mxu0 0.0
  %708 = vmatpush1.msra.mxu0 0.0
  %709 = vmatprep.subr.mxu0 0.0
  %710 = vmatpush1.msra.mxu0 0.0
  %711 = vmatprep.subr.mxu0 0.0
  %712 = vmatpush1.msra.mxu0 0.0
  %713 = vmatprep.subr.mxu0 0.0
  %714 = vmatpush1.msra.mxu0 0.0
  %715 = vmatprep.subr.mxu0 0.0
  %716 = vmatpush1.msra.mxu0 0.0
  %717 = vmatprep.subr.mxu0 0.0
  %718 = vmatpush1.msra.mxu0 0.0
  %719 = vmatprep.subr.mxu0 0.0
  %720 = vmatpush1.msra.mxu0 %v609
  %721 = vmatprep.subr.mxu0 0.0
  %722 = vmatpush2.msra.mxu0 0.0
  %723 = vmatprep.subr.mxu0 0.0
  %724 = vmatpush2.msra.mxu0 0.0
  %725 = vmatprep.subr.mxu0 0.0
  %726 = vmatpush2.msra.mxu0 0.0
  %727 = vmatprep.subr.mxu0 0.0
  %728 = vmatpush2.msra.mxu0 0.0
  %729 = vmatprep.subr.mxu0 0.0
  %730 = vmatpush2.msra.mxu0 0.0
  %731 = vmatprep.subr.mxu0 0.0
  %732 = vmatpush2.msra.mxu0 0.0
  %733 = vmatprep.subr.mxu0 0.0
  %734 = vmatpush2.msra.mxu0 0.0
  %735 = vmatprep.subr.mxu0 0.0
  %736 = vmatpush2.msra.mxu0 0.0
  %737 = vmatprep.subr.mxu0 0.0
  %738 = vmatpush2.msra.mxu0 0.0
  %739 = vmatprep.subr.mxu0 0.0
  %740 = vmatpush2.msra.mxu0 0.0
  %741 = vmatprep.subr.mxu0 0.0
  %742 = vmatpush2.msra.mxu0 0.0
  %743 = vmatprep.subr.mxu0 0.0
  %744 = vmatpush2.msra.mxu0 0.0
  %745 = vmatprep.subr.mxu0 0.0
  %746 = vmatpush2.msra.mxu0 0.0
  %747 = vmatprep.subr.mxu0 0.0
  %748 = vmatpush2.msra.mxu0 0.0
  %749 = vmatprep.subr.mxu0 0.0
  %750 = vmatpush2.msra.mxu0 0.0
  %751 = vmatprep.subr.mxu0 0.0
  %752 = vmatpush2.msra.mxu0 0.0
  %753 = vmatprep.mubr.f32.mxu0 0.0
  %754 = vmatmul.mubr.f32.gmra.mxu0 %v616
  %v755 = vpop.f32.mrf.mxu0
  %v756 = vadd.f32 0.0, %v755
  %v757 = vpop.f32.mrf.mxu0
  %758 = vdwg.mxu0
  %v760 = vsel %vm33, %v614, 0
  %762 = vmatprep.subr.mxu0 0.0
  %763 = vmatpush1.msra.mxu0 0.0
  %764 = vmatprep.subr.mxu0 0.0
  %765 = vmatpush1.msra.mxu0 0.0
  %766 = vmatprep.subr.mxu0 0.0
  %767 = vmatpush1.msra.mxu0 0.0
  %768 = vmatprep.subr.mxu0 0.0
  %769 = vmatpush1.msra.mxu0 0.0
  %770 = vmatprep.subr.mxu0 0.0
  %771 = vmatpush1.msra.mxu0 0.0
  %772 = vmatprep.subr.mxu0 0.0
  %773 = vmatpush1.msra.mxu0 0.0
  %774 = vmatprep.subr.mxu0 0.0
  %775 = vmatpush1.msra.mxu0 0.0
  %776 = vmatprep.subr.mxu0 0.0
  %777 = vmatpush1.msra.mxu0 0.0
  %778 = vmatprep.subr.mxu0 0.0
  %779 = vmatpush1.msra.mxu0 0.0
  %780 = vmatprep.subr.mxu0 0.0
  %781 = vmatpush1.msra.mxu0 0.0
  %782 = vmatprep.subr.mxu0 0.0
  %783 = vmatpush1.msra.mxu0 0.0
  %784 = vmatprep.subr.mxu0 0.0
  %785 = vmatpush1.msra.mxu0 0.0
  %786 = vmatprep.subr.mxu0 0.0
  %787 = vmatpush1.msra.mxu0 0.0
  %788 = vmatprep.subr.mxu0 0.0
  %789 = vmatpush1.msra.mxu0 0.0
  %790 = vmatprep.subr.mxu0 0.0
  %791 = vmatpush1.msra.mxu0 0.0
  %792 = vmatprep.subr.mxu0 %v611
  %793 = vmatpush1.msra.mxu0 %v610
  %794 = vmatprep.subr.mxu0 0.0
  %795 = vmatpush2.msra.mxu0 0.0
  %796 = vmatprep.subr.mxu0 0.0
  %797 = vmatpush2.msra.mxu0 0.0
  %798 = vmatprep.subr.mxu0 0.0
  %799 = vmatpush2.msra.mxu0 0.0
  %800 = vmatprep.subr.mxu0 0.0
  %801 = vmatpush2.msra.mxu0 0.0
  %802 = vmatprep.subr.mxu0 0.0
  %803 = vmatpush2.msra.mxu0 0.0
  %804 = vmatprep.subr.mxu0 0.0
  %805 = vmatpush2.msra.mxu0 0.0
  %806 = vmatprep.subr.mxu0 0.0
  %807 = vmatpush2.msra.mxu0 0.0
  %808 = vmatprep.subr.mxu0 0.0
  %809 = vmatpush2.msra.mxu0 0.0
  %810 = vmatprep.subr.mxu0 0.0
  %811 = vmatpush2.msra.mxu0 0.0
  %812 = vmatprep.subr.mxu0 0.0
  %813 = vmatpush2.msra.mxu0 0.0
  %814 = vmatprep.subr.mxu0 0.0
  %815 = vmatpush2.msra.mxu0 0.0
  %816 = vmatprep.subr.mxu0 0.0
  %817 = vmatpush2.msra.mxu0 0.0
  %818 = vmatprep.subr.mxu0 0.0
  %819 = vmatpush2.msra.mxu0 0.0
  %820 = vmatprep.subr.mxu0 0.0
  %821 = vmatpush2.msra.mxu0 0.0
  %822 = vmatprep.subr.mxu0 0.0
  %823 = vmatpush2.msra.mxu0 0.0
  %824 = vmatprep.subr.mxu0 0.0
  %825 = vmatpush2.msra.mxu0 0.0
  %826 = vmatprep.mubr.f32.mxu0 0.0
  %827 = vmatmul.mubr.f32.gmra.mxu0 %v760
  %v828 = vpop.f32.mrf.mxu0
  %v829 = vadd.f32 0.0, %v828
  %v830 = vpop.f32.mrf.mxu0
  %v831 = vadd.f32 0.0, %v830
  %832 = vdwg.mxu0
  %833 = vmatprep.subr.mxu0 0.0
  %834 = vmatpush1.msra.mxu0 0.0
  %835 = vmatprep.subr.mxu0 0.0
  %836 = vmatpush1.msra.mxu0 0.0
  %837 = vmatprep.subr.mxu0 0.0
  %838 = vmatpush1.msra.mxu0 0.0
  %839 = vmatprep.subr.mxu0 0.0
  %840 = vmatpush1.msra.mxu0 0.0
  %841 = vmatprep.subr.mxu0 0.0
  %842 = vmatpush1.msra.mxu0 0.0
  %843 = vmatprep.subr.mxu0 0.0
  %844 = vmatpush1.msra.mxu0 0.0
  %845 = vmatprep.subr.mxu0 0.0
  %846 = vmatpush1.msra.mxu0 0.0
  %847 = vmatprep.subr.mxu0 0.0
  %848 = vmatpush1.msra.mxu0 0.0
  %849 = vmatprep.subr.mxu0 0.0
  %850 = vmatpush1.msra.mxu0 0.0
  %851 = vmatprep.subr.mxu0 0.0
  %852 = vmatpush1.msra.mxu0 0.0
  %853 = vmatprep.subr.mxu0 0.0
  %854 = vmatpush1.msra.mxu0 0.0
  %855 = vmatprep.subr.mxu0 0.0
  %856 = vmatpush1.msra.mxu0 0.0
  %857 = vmatprep.subr.mxu0 0.0
  %858 = vmatpush1.msra.mxu0 0.0
  %859 = vmatprep.subr.mxu0 0.0
  %860 = vmatpush1.msra.mxu0 0.0
  %861 = vmatprep.subr.mxu0 0.0
  %862 = vmatpush1.msra.mxu0 0.0
  %863 = vmatprep.subr.mxu0 0.0
  %864 = vmatpush1.msra.mxu0 %v612
  %865 = vmatprep.subr.mxu0 0.0
  %866 = vmatpush2.msra.mxu0 0.0
  %867 = vmatprep.subr.mxu0 0.0
  %868 = vmatpush2.msra.mxu0 0.0
  %869 = vmatprep.subr.mxu0 0.0
  %870 = vmatpush2.msra.mxu0 0.0
  %871 = vmatprep.subr.mxu0 0.0
  %872 = vmatpush2.msra.mxu0 0.0
  %873 = vmatprep.subr.mxu0 0.0
  %874 = vmatpush2.msra.mxu0 0.0
  %875 = vmatprep.subr.mxu0 0.0
  %876 = vmatpush2.msra.mxu0 0.0
  %877 = vmatprep.subr.mxu0 0.0
  %878 = vmatpush2.msra.mxu0 0.0
  %879 = vmatprep.subr.mxu0 0.0
  %880 = vmatpush2.msra.mxu0 0.0
  %881 = vmatprep.subr.mxu0 0.0
  %882 = vmatpush2.msra.mxu0 0.0
  %883 = vmatprep.subr.mxu0 0.0
  %884 = vmatpush2.msra.mxu0 0.0
  %885 = vmatprep.subr.mxu0 0.0
  %886 = vmatpush2.msra.mxu0 0.0
  %887 = vmatprep.subr.mxu0 0.0
  %888 = vmatpush2.msra.mxu0 0.0
  %889 = vmatprep.subr.mxu0 0.0
  %890 = vmatpush2.msra.mxu0 0.0
  %891 = vmatprep.subr.mxu0 0.0
  %892 = vmatpush2.msra.mxu0 0.0
  %893 = vmatprep.subr.mxu0 0.0
  %894 = vmatpush2.msra.mxu0 0.0
  %895 = vmatprep.subr.mxu0 0.0
  %896 = vmatpush2.msra.mxu0 0.0
  %897 = vmatprep.mubr.f32.mxu0 0.0
  %898 = vmatmul.mubr.f32.gmra.mxu0 %v760
  %v899 = vpop.f32.mrf.mxu0
  %v900 = vadd.f32 0.0, %v899
  %v901 = vpop.f32.mrf.mxu0
  %902 = vdwg.mxu0
  %v903 = vsub.f32 %v685, %v829
  %v904 = vsub.f32 %v687, %v831
  %v905 = vsub.f32 %v756, %v900
  %906 = vst [vmem:[%s6] sm:$0xff] %v903
  %907 = vst [vmem:[%s6 + $0x8] sm:$0xff] %v904
  %vm908 = vcmask 261120
  %909 = vst.msk [vmem:[%s6 + $0x10] sm:$0xff] %vm908, %v905
  %910 = vmatprep.subr.mxu0 0.0
  %911 = vmatpush1.msra.mxu0 0.0
  %912 = vmatprep.subr.mxu0 0.0
  %913 = vmatpush1.msra.mxu0 0.0
  %914 = vmatprep.subr.mxu0 0.0
  %915 = vmatpush1.msra.mxu0 0.0
  %916 = vmatprep.subr.mxu0 0.0
  %917 = vmatpush1.msra.mxu0 0.0
  %918 = vmatprep.subr.mxu0 0.0
  %919 = vmatpush1.msra.mxu0 0.0
  %920 = vmatprep.subr.mxu0 0.0
  %921 = vmatpush1.msra.mxu0 0.0
  %922 = vmatprep.subr.mxu0 0.0
  %923 = vmatpush1.msra.mxu0 0.0
  %924 = vmatprep.subr.mxu0 0.0
  %925 = vmatpush1.msra.mxu0 0.0
  %926 = vmatprep.subr.mxu0 0.0
  %927 = vmatpush1.msra.mxu0 0.0
  %928 = vmatprep.subr.mxu0 0.0
  %929 = vmatpush1.msra.mxu0 0.0
  %930 = vmatprep.subr.mxu0 0.0
  %931 = vmatpush1.msra.mxu0 0.0
  %932 = vmatprep.subr.mxu0 0.0
  %933 = vmatpush1.msra.mxu0 0.0
  %934 = vmatprep.subr.mxu0 0.0
  %935 = vmatpush1.msra.mxu0 0.0
  %936 = vmatprep.subr.mxu0 0.0
  %937 = vmatpush1.msra.mxu0 0.0
  %938 = vmatprep.subr.mxu0 0.0
  %939 = vmatpush1.msra.mxu0 0.0
  %940 = vmatprep.subr.mxu0 %v608
  %941 = vmatpush1.msra.mxu0 %v607
  %942 = vmatprep.subr.mxu0 0.0
  %943 = vmatpush2.msra.mxu0 0.0
  %944 = vmatprep.subr.mxu0 0.0
  %945 = vmatpush2.msra.mxu0 0.0
  %946 = vmatprep.subr.mxu0 0.0
  %947 = vmatpush2.msra.mxu0 0.0
  %948 = vmatprep.subr.mxu0 0.0
  %949 = vmatpush2.msra.mxu0 0.0
  %950 = vmatprep.subr.mxu0 0.0
  %951 = vmatpush2.msra.mxu0 0.0
  %952 = vmatprep.subr.mxu0 0.0
  %953 = vmatpush2.msra.mxu0 0.0
  %954 = vmatprep.subr.mxu0 0.0
  %955 = vmatpush2.msra.mxu0 0.0
  %956 = vmatprep.subr.mxu0 0.0
  %957 = vmatpush2.msra.mxu0 0.0
  %958 = vmatprep.subr.mxu0 0.0
  %959 = vmatpush2.msra.mxu0 0.0
  %960 = vmatprep.subr.mxu0 0.0
  %961 = vmatpush2.msra.mxu0 0.0
  %962 = vmatprep.subr.mxu0 0.0
  %963 = vmatpush2.msra.mxu0 0.0
  %964 = vmatprep.subr.mxu0 0.0
  %965 = vmatpush2.msra.mxu0 0.0
  %966 = vmatprep.subr.mxu0 0.0
  %967 = vmatpush2.msra.mxu0 0.0
  %968 = vmatprep.subr.mxu0 0.0
  %969 = vmatpush2.msra.mxu0 0.0
  %970 = vmatprep.subr.mxu0 0.0
  %971 = vmatpush2.msra.mxu0 0.0
  %972 = vmatprep.subr.mxu0 0.0
  %973 = vmatpush2.msra.mxu0 0.0
  %974 = vmatprep.mubr.f32.mxu0 0.0
  %975 = vmatmul.mubr.f32.gmra.mxu0 %v760
  %v976 = vpop.f32.mrf.mxu0
  %v977 = vadd.f32 0.0, %v976
  %v978 = vpop.f32.mrf.mxu0
  %v979 = vadd.f32 0.0, %v978
  %980 = vdwg.mxu0
  %981 = vmatprep.subr.mxu0 0.0
  %982 = vmatpush1.msra.mxu0 0.0
  %983 = vmatprep.subr.mxu0 0.0
  %984 = vmatpush1.msra.mxu0 0.0
  %985 = vmatprep.subr.mxu0 0.0
  %986 = vmatpush1.msra.mxu0 0.0
  %987 = vmatprep.subr.mxu0 0.0
  %988 = vmatpush1.msra.mxu0 0.0
  %989 = vmatprep.subr.mxu0 0.0
  %990 = vmatpush1.msra.mxu0 0.0
  %991 = vmatprep.subr.mxu0 0.0
  %992 = vmatpush1.msra.mxu0 0.0
  %993 = vmatprep.subr.mxu0 0.0
  %994 = vmatpush1.msra.mxu0 0.0
  %995 = vmatprep.subr.mxu0 0.0
  %996 = vmatpush1.msra.mxu0 0.0
  %997 = vmatprep.subr.mxu0 0.0
  %998 = vmatpush1.msra.mxu0 0.0
  %999 = vmatprep.subr.mxu0 0.0
  %1000 = vmatpush1.msra.mxu0 0.0
  %1001 = vmatprep.subr.mxu0 0.0
  %1002 = vmatpush1.msra.mxu0 0.0
  %1003 = vmatprep.subr.mxu0 0.0
  %1004 = vmatpush1.msra.mxu0 0.0
  %1005 = vmatprep.subr.mxu0 0.0
  %1006 = vmatpush1.msra.mxu0 0.0
  %1007 = vmatprep.subr.mxu0 0.0
  %1008 = vmatpush1.msra.mxu0 0.0
  %1009 = vmatprep.subr.mxu0 0.0
  %1010 = vmatpush1.msra.mxu0 0.0
  %1011 = vmatprep.subr.mxu0 0.0
  %1012 = vmatpush1.msra.mxu0 %v609
  %1013 = vmatprep.subr.mxu0 0.0
  %1014 = vmatpush2.msra.mxu0 0.0
  %1015 = vmatprep.subr.mxu0 0.0
  %1016 = vmatpush2.msra.mxu0 0.0
  %1017 = vmatprep.subr.mxu0 0.0
  %1018 = vmatpush2.msra.mxu0 0.0
  %1019 = vmatprep.subr.mxu0 0.0
  %1020 = vmatpush2.msra.mxu0 0.0
  %1021 = vmatprep.subr.mxu0 0.0
  %1022 = vmatpush2.msra.mxu0 0.0
  %1023 = vmatprep.subr.mxu0 0.0
  %1024 = vmatpush2.msra.mxu0 0.0
  %1025 = vmatprep.subr.mxu0 0.0
  %1026 = vmatpush2.msra.mxu0 0.0
  %1027 = vmatprep.subr.mxu0 0.0
  %1028 = vmatpush2.msra.mxu0 0.0
  %1029 = vmatprep.subr.mxu0 0.0
  %1030 = vmatpush2.msra.mxu0 0.0
  %1031 = vmatprep.subr.mxu0 0.0
  %1032 = vmatpush2.msra.mxu0 0.0
  %1033 = vmatprep.subr.mxu0 0.0
  %1034 = vmatpush2.msra.mxu0 0.0
  %1035 = vmatprep.subr.mxu0 0.0
  %1036 = vmatpush2.msra.mxu0 0.0
  %1037 = vmatprep.subr.mxu0 0.0
  %1038 = vmatpush2.msra.mxu0 0.0
  %1039 = vmatprep.subr.mxu0 0.0
  %1040 = vmatpush2.msra.mxu0 0.0
  %1041 = vmatprep.subr.mxu0 0.0
  %1042 = vmatpush2.msra.mxu0 0.0
  %1043 = vmatprep.subr.mxu0 0.0
  %1044 = vmatpush2.msra.mxu0 0.0
  %1045 = vmatprep.mubr.f32.mxu0 0.0
  %1046 = vmatmul.mubr.f32.gmra.mxu0 %v760
  %v1047 = vpop.f32.mrf.mxu0
  %v1048 = vadd.f32 0.0, %v1047
  %v1049 = vpop.f32.mrf.mxu0
  %1050 = vdwg.mxu0
  %1051 = vmatprep.subr.mxu0 0.0
  %1052 = vmatpush1.msra.mxu0 0.0
  %1053 = vmatprep.subr.mxu0 0.0
  %1054 = vmatpush1.msra.mxu0 0.0
  %1055 = vmatprep.subr.mxu0 0.0
  %1056 = vmatpush1.msra.mxu0 0.0
  %1057 = vmatprep.subr.mxu0 0.0
  %1058 = vmatpush1.msra.mxu0 0.0
  %1059 = vmatprep.subr.mxu0 0.0
  %1060 = vmatpush1.msra.mxu0 0.0
  %1061 = vmatprep.subr.mxu0 0.0
  %1062 = vmatpush1.msra.mxu0 0.0
  %1063 = vmatprep.subr.mxu0 0.0
  %1064 = vmatpush1.msra.mxu0 0.0
  %1065 = vmatprep.subr.mxu0 0.0
  %1066 = vmatpush1.msra.mxu0 0.0
  %1067 = vmatprep.subr.mxu0 0.0
  %1068 = vmatpush1.msra.mxu0 0.0
  %1069 = vmatprep.subr.mxu0 0.0
  %1070 = vmatpush1.msra.mxu0 0.0
  %1071 = vmatprep.subr.mxu0 0.0
  %1072 = vmatpush1.msra.mxu0 0.0
  %1073 = vmatprep.subr.mxu0 0.0
  %1074 = vmatpush1.msra.mxu0 0.0
  %1075 = vmatprep.subr.mxu0 0.0
  %1076 = vmatpush1.msra.mxu0 0.0
  %1077 = vmatprep.subr.mxu0 0.0
  %1078 = vmatpush1.msra.mxu0 0.0
  %1079 = vmatprep.subr.mxu0 0.0
  %1080 = vmatpush1.msra.mxu0 0.0
  %1081 = vmatprep.subr.mxu0 %v611
  %1082 = vmatpush1.msra.mxu0 %v610
  %1083 = vmatprep.subr.mxu0 0.0
  %1084 = vmatpush2.msra.mxu0 0.0
  %1085 = vmatprep.subr.mxu0 0.0
  %1086 = vmatpush2.msra.mxu0 0.0
  %1087 = vmatprep.subr.mxu0 0.0
  %1088 = vmatpush2.msra.mxu0 0.0
  %1089 = vmatprep.subr.mxu0 0.0
  %1090 = vmatpush2.msra.mxu0 0.0
  %1091 = vmatprep.subr.mxu0 0.0
  %1092 = vmatpush2.msra.mxu0 0.0
  %1093 = vmatprep.subr.mxu0 0.0
  %1094 = vmatpush2.msra.mxu0 0.0
  %1095 = vmatprep.subr.mxu0 0.0
  %1096 = vmatpush2.msra.mxu0 0.0
  %1097 = vmatprep.subr.mxu0 0.0
  %1098 = vmatpush2.msra.mxu0 0.0
  %1099 = vmatprep.subr.mxu0 0.0
  %1100 = vmatpush2.msra.mxu0 0.0
  %1101 = vmatprep.subr.mxu0 0.0
  %1102 = vmatpush2.msra.mxu0 0.0
  %1103 = vmatprep.subr.mxu0 0.0
  %1104 = vmatpush2.msra.mxu0 0.0
  %1105 = vmatprep.subr.mxu0 0.0
  %1106 = vmatpush2.msra.mxu0 0.0
  %1107 = vmatprep.subr.mxu0 0.0
  %1108 = vmatpush2.msra.mxu0 0.0
  %1109 = vmatprep.subr.mxu0 0.0
  %1110 = vmatpush2.msra.mxu0 0.0
  %1111 = vmatprep.subr.mxu0 0.0
  %1112 = vmatpush2.msra.mxu0 0.0
  %1113 = vmatprep.subr.mxu0 0.0
  %1114 = vmatpush2.msra.mxu0 0.0
  %1115 = vmatprep.mubr.f32.mxu0 0.0
  %1116 = vmatmul.mubr.f32.gmra.mxu0 %v616
  %v1117 = vpop.f32.mrf.mxu0
  %v1118 = vadd.f32 %v977, %v1117
  %v1119 = vpop.f32.mrf.mxu0
  %v1120 = vadd.f32 %v979, %v1119
  %1121 = vdwg.mxu0
  %1122 = vmatprep.subr.mxu0 0.0
  %1123 = vmatpush1.msra.mxu0 0.0
  %1124 = vmatprep.subr.mxu0 0.0
  %1125 = vmatpush1.msra.mxu0 0.0
  %1126 = vmatprep.subr.mxu0 0.0
  %1127 = vmatpush1.msra.mxu0 0.0
  %1128 = vmatprep.subr.mxu0 0.0
  %1129 = vmatpush1.msra.mxu0 0.0
  %1130 = vmatprep.subr.mxu0 0.0
  %1131 = vmatpush1.msra.mxu0 0.0
  %1132 = vmatprep.subr.mxu0 0.0
  %1133 = vmatpush1.msra.mxu0 0.0
  %1134 = vmatprep.subr.mxu0 0.0
  %1135 = vmatpush1.msra.mxu0 0.0
  %1136 = vmatprep.subr.mxu0 0.0
  %1137 = vmatpush1.msra.mxu0 0.0
  %1138 = vmatprep.subr.mxu0 0.0
  %1139 = vmatpush1.msra.mxu0 0.0
  %1140 = vmatprep.subr.mxu0 0.0
  %1141 = vmatpush1.msra.mxu0 0.0
  %1142 = vmatprep.subr.mxu0 0.0
  %1143 = vmatpush1.msra.mxu0 0.0
  %1144 = vmatprep.subr.mxu0 0.0
  %1145 = vmatpush1.msra.mxu0 0.0
  %1146 = vmatprep.subr.mxu0 0.0
  %1147 = vmatpush1.msra.mxu0 0.0
  %1148 = vmatprep.subr.mxu0 0.0
  %1149 = vmatpush1.msra.mxu0 0.0
  %1150 = vmatprep.subr.mxu0 0.0
  %1151 = vmatpush1.msra.mxu0 0.0
  %1152 = vmatprep.subr.mxu0 0.0
  %1153 = vmatpush1.msra.mxu0 %v612
  %1154 = vmatprep.subr.mxu0 0.0
  %1155 = vmatpush2.msra.mxu0 0.0
  %1156 = vmatprep.subr.mxu0 0.0
  %1157 = vmatpush2.msra.mxu0 0.0
  %1158 = vmatprep.subr.mxu0 0.0
  %1159 = vmatpush2.msra.mxu0 0.0
  %1160 = vmatprep.subr.mxu0 0.0
  %1161 = vmatpush2.msra.mxu0 0.0
  %1162 = vmatprep.subr.mxu0 0.0
  %1163 = vmatpush2.msra.mxu0 0.0
  %1164 = vmatprep.subr.mxu0 0.0
  %1165 = vmatpush2.msra.mxu0 0.0
  %1166 = vmatprep.subr.mxu0 0.0
  %1167 = vmatpush2.msra.mxu0 0.0
  %1168 = vmatprep.subr.mxu0 0.0
  %1169 = vmatpush2.msra.mxu0 0.0
  %1170 = vmatprep.subr.mxu0 0.0
  %1171 = vmatpush2.msra.mxu0 0.0
  %1172 = vmatprep.subr.mxu0 0.0
  %1173 = vmatpush2.msra.mxu0 0.0
  %1174 = vmatprep.subr.mxu0 0.0
  %1175 = vmatpush2.msra.mxu0 0.0
  %1176 = vmatprep.subr.mxu0 0.0
  %1177 = vmatpush2.msra.mxu0 0.0
  %1178 = vmatprep.subr.mxu0 0.0
  %1179 = vmatpush2.msra.mxu0 0.0
  %1180 = vmatprep.subr.mxu0 0.0
  %1181 = vmatpush2.msra.mxu0 0.0
  %1182 = vmatprep.subr.mxu0 0.0
  %1183 = vmatpush2.msra.mxu0 0.0
  %1184 = vmatprep.subr.mxu0 0.0
  %1185 = vmatpush2.msra.mxu0 0.0
  %1186 = vmatprep.mubr.f32.mxu0 0.0
  %1187 = vmatmul.mubr.f32.gmra.mxu0 %v616
  %v1188 = vpop.f32.mrf.mxu0
  %v1189 = vadd.f32 %v1048, %v1188
  %v1190 = vpop.f32.mrf.mxu0
  %1191 = vdwg.mxu0
  %1192 = vst [vmem:[%s7] sm:$0xff] %v1118
  %1193 = vst [vmem:[%s7 + $0x8] sm:$0xff] %v1120
  %1194 = vst.msk [vmem:[%s7 + $0x10] sm:$0xff] %vm908, %v1189
  // Predicated region
  $region26: #{_lambda_.10} parent=0 // pred_check
    _
  $region27: #{_lambda_.10} parent=0 // pred_check_branch
    %1196 = sbr.rel (0) target = $region29
  $region28: #{_lambda_.10} parent=0 // pred_region
    _
  $region29: #{_lambda_.10} parent=0 // pred_fallthru
    _
  // Predicated region
  $region30: #{_lambda_.10} parent=0 // pred_check
    _
  $region31: #{_lambda_.10} parent=0 // pred_check_branch
    %1198 = sbr.rel (0) target = $region33
  $region32: #{_lambda_.10} parent=0 // pred_region
    _
  $region33: #{_lambda_.10} parent=0 // pred_fallthru
    _
  // Predicated region
  $region34: #{_lambda_.10} parent=0 // pred_check
    _
  $region35: #{_lambda_.10} parent=0 // pred_check_branch
    %1200 = sbr.rel (0) target = $region37
  $region36: #{_lambda_.10} parent=0 // pred_region
    _
  $region37: #{_lambda_.10} parent=0 // pred_fallthru
    _
  // Predicated region
  $region38: #{_lambda_.10} parent=0 // pred_check
    _
  $region39: #{_lambda_.10} parent=0 // pred_check_branch
    %1202 = sbr.rel (0) target = $region41
  $region40: #{_lambda_.10} parent=0 // pred_region
    _
  $region41: #{_lambda_.10} parent=0 // pred_fallthru
    _

// kernel: reverse.0
$region0: #{reverse.0}
  %s0 = inlined_call_operand.vmem [shape: f32[2,8,16,7], index: 0, kind: input, shape index: {}]
  %s1 = inlined_call_operand.vmem [shape: f32[2,8,16,7], index: 1, kind: output, shape index: {}]
  $region1: #{reverse.0} parent=0
    #allocation0 [shape = 'u8[131072]{0}', space=vmem, size = 0x20000, scoped, tag = 'operand span for operand 0']
    #allocation1 [shape = 'u8[65536]{0}', space=vmem, size = 0x10000, scoped, tag = 'operand span for operand 1']
    %s2 = scalar_lea.vmem [#allocation0], 8
    // Predicated region
    $region2: #{reverse.0} parent=1 // pred_check
      _
    $region3: #{reverse.0} parent=1 // pred_check_branch
      %4 = sbr.rel (0) target = $region5
    $region4: #{reverse.0} parent=1 // pred_region
      // Predicated region
      $region6: #{reverse.0} parent=4 // pred_check
        _
      $region7: #{reverse.0} parent=4 // pred_check_branch
        %6 = sbr.rel (0) target = $region9
      $region8: #{reverse.0} parent=4 // pred_region
        // Predicated region
        $region21: #{reverse.0} parent=8 // pred_check
          _
        $region22: #{reverse.0} parent=8 // pred_check_branch
          %52 = sbr.rel (0) target = $region24
        $region23: #{reverse.0} parent=8 // pred_region
          loop: start=0, step=1, limit=1
          $region25: #{reverse.0} parent=23 // loop_pre_header
            _
          $region26: #{reverse.0} parent=23 // loop_header
            %s54 = sphi 0, %s58
            %p55 = scmp.ge.s32.totalorder %s54, 1
            %s59 = sphi %s0, %s0
            %s60 = sphi %s2, %s2
          $region27: #{reverse.0} parent=23 // loop_header_branch
            %57 = sbr.rel (%p55) target = $region31
          $region28: #{reverse.0} parent=23 // loop_body
            %v61 = vld [vmem:[%s59] sm:$0xff]
            %62 = vst [vmem:[%s60] sm:$0xff] %v61
            %v63 = vld [vmem:[%s59 + $0x8] sm:$0xff]
            %64 = vst [vmem:[%s60 + $0x10] sm:$0xff] %v63
            %v65 = vld [vmem:[%s59 + $0x10] sm:$0xff]
            %66 = vst [vmem:[%s60 + $0x20] sm:$0xff] %v65
            %v67 = vld [vmem:[%s59 + $0x18] sm:$0xff]
            %68 = vst [vmem:[%s60 + $0x30] sm:$0xff] %v67
            %v69 = vld [vmem:[%s59 + $0x20] sm:$0xff]
            %70 = vst [vmem:[%s60 + $0x40] sm:$0xff] %v69
            %v71 = vld [vmem:[%s59 + $0x28] sm:$0xff]
            %72 = vst [vmem:[%s60 + $0x50] sm:$0xff] %v71
            %v73 = vld [vmem:[%s59 + $0x30] sm:$0xff]
            %74 = vst [vmem:[%s60 + $0x60] sm:$0xff] %v73
            %v75 = vld [vmem:[%s59 + $0x38] sm:$0xff]
            %76 = vst [vmem:[%s60 + $0x70] sm:$0xff] %v75
            %v77 = vld [vmem:[%s59 + $0x40] sm:$0xff]
            %78 = vst [vmem:[%s60 + $0x80] sm:$0xff] %v77
            %v79 = vld [vmem:[%s59 + $0x48] sm:$0xff]
            %80 = vst [vmem:[%s60 + $0x90] sm:$0xff] %v79
            %v81 = vld [vmem:[%s59 + $0x50] sm:$0xff]
            %82 = vst [vmem:[%s60 + $0xa0] sm:$0xff] %v81
            %v83 = vld [vmem:[%s59 + $0x58] sm:$0xff]
            %84 = vst [vmem:[%s60 + $0xb0] sm:$0xff] %v83
            %v85 = vld [vmem:[%s59 + $0x60] sm:$0xff]
            %86 = vst [vmem:[%s60 + $0xc0] sm:$0xff] %v85
            %v87 = vld [vmem:[%s59 + $0x68] sm:$0xff]
            %88 = vst [vmem:[%s60 + $0xd0] sm:$0xff] %v87
            %v89 = vld [vmem:[%s59 + $0x70] sm:$0xff]
            %90 = vst [vmem:[%s60 + $0xe0] sm:$0xff] %v89
            %v91 = vld [vmem:[%s59 + $0x78] sm:$0xff]
            %92 = vst [vmem:[%s60 + $0xf0] sm:$0xff] %v91
          $region29: #{reverse.0} parent=23 // loop_footer
            %s58 = sadd.s32 1, %s54
          $region30: #{reverse.0} parent=23 // loop_footer_branch
            %53 = sbr.rel target = $region26
          $region31: #{reverse.0} parent=23 // loop_exit
            _
        $region24: #{reverse.0} parent=8 // pred_fallthru
          _
        // Predicated region
        $region32: #{reverse.0} parent=8 // pred_check
          _
        $region33: #{reverse.0} parent=8 // pred_check_branch
          %94 = sbr.rel target = $region35
        $region34: #{reverse.0} parent=8 // pred_region
          _
        $region35: #{reverse.0} parent=8 // pred_fallthru
          _
      $region9: #{reverse.0} parent=4 // pred_fallthru
        _
      // Predicated region
      $region10: #{reverse.0} parent=4 // pred_check
        _
      $region11: #{reverse.0} parent=4 // pred_check_branch
        %8 = sbr.rel target = $region13
      $region12: #{reverse.0} parent=4 // pred_region
        %s10 = ssub.s32 256, 1
        loop: start=0, step=1, limit=1
        $region14: #{reverse.0} parent=12 // loop_pre_header
          _
        $region15: #{reverse.0} parent=12 // loop_header
          %s12 = sphi 0, %s16
          %p13 = scmp.ge.s32.totalorder %s12, 1
          %s17 = sphi %s0, %s0
          %s18 = sphi %s2, %s2
        $region16: #{reverse.0} parent=12 // loop_header_branch
          %15 = sbr.rel (%p13) target = $region20
        $region17: #{reverse.0} parent=12 // loop_body
          %v19 = vld [vmem:[%s17] sm:%s10]
          %20 = vst [vmem:[%s18] sm:%s10] %v19
          %v21 = vld [vmem:[%s17 + $0x8] sm:%s10]
          %22 = vst [vmem:[%s18 + $0x10] sm:%s10] %v21
          %v23 = vld [vmem:[%s17 + $0x10] sm:%s10]
          %24 = vst [vmem:[%s18 + $0x20] sm:%s10] %v23
          %v25 = vld [vmem:[%s17 + $0x18] sm:%s10]
          %26 = vst [vmem:[%s18 + $0x30] sm:%s10] %v25
          %v27 = vld [vmem:[%s17 + $0x20] sm:%s10]
          %28 = vst [vmem:[%s18 + $0x40] sm:%s10] %v27
          %v29 = vld [vmem:[%s17 + $0x28] sm:%s10]
          %30 = vst [vmem:[%s18 + $0x50] sm:%s10] %v29
          %v31 = vld [vmem:[%s17 + $0x30] sm:%s10]
          %32 = vst [vmem:[%s18 + $0x60] sm:%s10] %v31
          %v33 = vld [vmem:[%s17 + $0x38] sm:%s10]
          %34 = vst [vmem:[%s18 + $0x70] sm:%s10] %v33
          %v35 = vld [vmem:[%s17 + $0x40] sm:%s10]
          %36 = vst [vmem:[%s18 + $0x80] sm:%s10] %v35
          %v37 = vld [vmem:[%s17 + $0x48] sm:%s10]
          %38 = vst [vmem:[%s18 + $0x90] sm:%s10] %v37
          %v39 = vld [vmem:[%s17 + $0x50] sm:%s10]
          %40 = vst [vmem:[%s18 + $0xa0] sm:%s10] %v39
          %v41 = vld [vmem:[%s17 + $0x58] sm:%s10]
          %42 = vst [vmem:[%s18 + $0xb0] sm:%s10] %v41
          %v43 = vld [vmem:[%s17 + $0x60] sm:%s10]
          %44 = vst [vmem:[%s18 + $0xc0] sm:%s10] %v43
          %v45 = vld [vmem:[%s17 + $0x68] sm:%s10]
          %46 = vst [vmem:[%s18 + $0xd0] sm:%s10] %v45
          %v47 = vld [vmem:[%s17 + $0x70] sm:%s10]
          %48 = vst [vmem:[%s18 + $0xe0] sm:%s10] %v47
          %v49 = vld [vmem:[%s17 + $0x78] sm:%s10]
          %50 = vst [vmem:[%s18 + $0xf0] sm:%s10] %v49
        $region18: #{reverse.0} parent=12 // loop_footer
          %s16 = sadd.s32 1, %s12
        $region19: #{reverse.0} parent=12 // loop_footer_branch
          %11 = sbr.rel target = $region15
        $region20: #{reverse.0} parent=12 // loop_exit
          _
      $region13: #{reverse.0} parent=4 // pred_fallthru
        _
    $region5: #{reverse.0} parent=1 // pred_fallthru
      _
    %95 = vnop
    %s96 = scalar_lea.vmem [#allocation0], 7
    %v97 = vld [vmem:[%s96] ss:$-1 sm:$0xff]
    %v98 = vrot.slane %v97, 1
    %99 = vst [vmem:[#allocation1] sm:$0xff] %v98
    %s100 = scalar_lea.vmem [#allocation0], 8
    %s101 = scalar_lea.vmem %s100, 7 [#allocation0]
    %v102 = vld [vmem:[%s101] ss:$-1 sm:$0xff]
    %v103 = vrot.slane %v102, 1
    %v104 = vlaneseq
    %v105 = vshrl.u32 %v104, 7
    %vm106 = vcmp.lt.s32.totalorder %v105, 7
    %107 = vst.msk [vmem:[#allocation1] sm:$0xff] %vm106, %v103
    %s108 = scalar_lea.vmem [#allocation1], 8
    %s109 = scalar_lea.vmem [#allocation0], 16
    %s110 = scalar_lea.vmem %s109, 7 [#allocation0]
    %v111 = vld [vmem:[%s110] ss:$-1 sm:$0xff]
    %v112 = vrot.slane %v111, 1
    %113 = vst [vmem:[%s108] sm:$0xff] %v112
    %s114 = scalar_lea.vmem %s109, 8 [#allocation0]
    %s115 = scalar_lea.vmem %s114, 7 [#allocation0]
    %v116 = vld [vmem:[%s115] ss:$-1 sm:$0xff]
    %v117 = vrot.slane %v116, 1
    %v118 = vlaneseq
    %v119 = vshrl.u32 %v118, 7
    %vm120 = vcmp.lt.s32.totalorder %v119, 7
    %121 = vst.msk [vmem:[%s108] sm:$0xff] %vm120, %v117
    %s122 = scalar_lea.vmem [#allocation1], 16
    %s123 = scalar_lea.vmem [#allocation0], 32
    %s124 = scalar_lea.vmem %s123, 7 [#allocation0]
    %v125 = vld [vmem:[%s124] ss:$-1 sm:$0xff]
    %v126 = vrot.slane %v125, 1
    %127 = vst [vmem:[%s122] sm:$0xff] %v126
    %s128 = scalar_lea.vmem %s123, 8 [#allocation0]
    %s129 = scalar_lea.vmem %s128, 7 [#allocation0]
    %v130 = vld [vmem:[%s129] ss:$-1 sm:$0xff]
    %v131 = vrot.slane %v130, 1
    %v132 = vlaneseq
    %v133 = vshrl.u32 %v132, 7
    %vm134 = vcmp.lt.s32.totalorder %v133, 7
    %135 = vst.msk [vmem:[%s122] sm:$0xff] %vm134, %v131
    %s136 = scalar_lea.vmem [#allocation1], 24
    %s137 = scalar_lea.vmem [#allocation0], 48
    %s138 = scalar_lea.vmem %s137, 7 [#allocation0]
    %v139 = vld [vmem:[%s138] ss:$-1 sm:$0xff]
    %v140 = vrot.slane %v139, 1
    %141 = vst [vmem:[%s136] sm:$0xff] %v140
    %s142 = scalar_lea.vmem %s137, 8 [#allocation0]
    %s143 = scalar_lea.vmem %s142, 7 [#allocation0]
    %v144 = vld [vmem:[%s143] ss:$-1 sm:$0xff]
    %v145 = vrot.slane %v144, 1
    %v146 = vlaneseq
    %v147 = vshrl.u32 %v146, 7
    %vm148 = vcmp.lt.s32.totalorder %v147, 7
    %149 = vst.msk [vmem:[%s136] sm:$0xff] %vm148, %v145
    %s150 = scalar_lea.vmem [#allocation1], 32
    %s151 = scalar_lea.vmem [#allocation0], 64
    %s152 = scalar_lea.vmem %s151, 7 [#allocation0]
    %v153 = vld [vmem:[%s152] ss:$-1 sm:$0xff]
    %v154 = vrot.slane %v153, 1
    %155 = vst [vmem:[%s150] sm:$0xff] %v154
    %s156 = scalar_lea.vmem %s151, 8 [#allocation0]
    %s157 = scalar_lea.vmem %s156, 7 [#allocation0]
    %v158 = vld [vmem:[%s157] ss:$-1 sm:$0xff]
    %v159 = vrot.slane %v158, 1
    %v160 = vlaneseq
    %v161 = vshrl.u32 %v160, 7
    %vm162 = vcmp.lt.s32.totalorder %v161, 7
    %163 = vst.msk [vmem:[%s150] sm:$0xff] %vm162, %v159
    %s164 = scalar_lea.vmem [#allocation1], 40
    %s165 = scalar_lea.vmem [#allocation0], 80
    %s166 = scalar_lea.vmem %s165, 7 [#allocation0]
    %v167 = vld [vmem:[%s166] ss:$-1 sm:$0xff]
    %v168 = vrot.slane %v167, 1
    %169 = vst [vmem:[%s164] sm:$0xff] %v168
    %s170 = scalar_lea.vmem %s165, 8 [#allocation0]
    %s171 = scalar_lea.vmem %s170, 7 [#allocation0]
    %v172 = vld [vmem:[%s171] ss:$-1 sm:$0xff]
    %v173 = vrot.slane %v172, 1
    %v174 = vlaneseq
    %v175 = vshrl.u32 %v174, 7
    %vm176 = vcmp.lt.s32.totalorder %v175, 7
    %177 = vst.msk [vmem:[%s164] sm:$0xff] %vm176, %v173
    %s178 = scalar_lea.vmem [#allocation1], 48
    %s179 = scalar_lea.vmem [#allocation0], 96
    %s180 = scalar_lea.vmem %s179, 7 [#allocation0]
    %v181 = vld [vmem:[%s180] ss:$-1 sm:$0xff]
    %v182 = vrot.slane %v181, 1
    %183 = vst [vmem:[%s178] sm:$0xff] %v182
    %s184 = scalar_lea.vmem %s179, 8 [#allocation0]
    %s185 = scalar_lea.vmem %s184, 7 [#allocation0]
    %v186 = vld [vmem:[%s185] ss:$-1 sm:$0xff]
    %v187 = vrot.slane %v186, 1
    %v188 = vlaneseq
    %v189 = vshrl.u32 %v188, 7
    %vm190 = vcmp.lt.s32.totalorder %v189, 7
    %191 = vst.msk [vmem:[%s178] sm:$0xff] %vm190, %v187
    %s192 = scalar_lea.vmem [#allocation1], 56
    %s193 = scalar_lea.vmem [#allocation0], 112
    %s194 = scalar_lea.vmem %s193, 7 [#allocation0]
    %v195 = vld [vmem:[%s194] ss:$-1 sm:$0xff]
    %v196 = vrot.slane %v195, 1
    %197 = vst [vmem:[%s192] sm:$0xff] %v196
    %s198 = scalar_lea.vmem %s193, 8 [#allocation0]
    %s199 = scalar_lea.vmem %s198, 7 [#allocation0]
    %v200 = vld [vmem:[%s199] ss:$-1 sm:$0xff]
    %v201 = vrot.slane %v200, 1
    %v202 = vlaneseq
    %v203 = vshrl.u32 %v202, 7
    %vm204 = vcmp.lt.s32.totalorder %v203, 7
    %205 = vst.msk [vmem:[%s192] sm:$0xff] %vm204, %v201
    %s206 = scalar_lea.vmem [#allocation1], 64
    %s207 = scalar_lea.vmem [#allocation0], 128
    %s208 = scalar_lea.vmem %s207, 7 [#allocation0]
    %v209 = vld [vmem:[%s208] ss:$-1 sm:$0xff]
    %v210 = vrot.slane %v209, 1
    %211 = vst [vmem:[%s206] sm:$0xff] %v210
    %s212 = scalar_lea.vmem %s207, 8 [#allocation0]
    %s213 = scalar_lea.vmem %s212, 7 [#allocation0]
    %v214 = vld [vmem:[%s213] ss:$-1 sm:$0xff]
    %v215 = vrot.slane %v214, 1
    %v216 = vlaneseq
    %v217 = vshrl.u32 %v216, 7
    %vm218 = vcmp.lt.s32.totalorder %v217, 7
    %219 = vst.msk [vmem:[%s206] sm:$0xff] %vm218, %v215
    %s220 = scalar_lea.vmem [#allocation1], 72
    %s221 = scalar_lea.vmem [#allocation0], 144
    %s222 = scalar_lea.vmem %s221, 7 [#allocation0]
    %v223 = vld [vmem:[%s222] ss:$-1 sm:$0xff]
    %v224 = vrot.slane %v223, 1
    %225 = vst [vmem:[%s220] sm:$0xff] %v224
    %s226 = scalar_lea.vmem %s221, 8 [#allocation0]
    %s227 = scalar_lea.vmem %s226, 7 [#allocation0]
    %v228 = vld [vmem:[%s227] ss:$-1 sm:$0xff]
    %v229 = vrot.slane %v228, 1
    %v230 = vlaneseq
    %v231 = vshrl.u32 %v230, 7
    %vm232 = vcmp.lt.s32.totalorder %v231, 7
    %233 = vst.msk [vmem:[%s220] sm:$0xff] %vm232, %v229
    %s234 = scalar_lea.vmem [#allocation1], 80
    %s235 = scalar_lea.vmem [#allocation0], 160
    %s236 = scalar_lea.vmem %s235, 7 [#allocation0]
    %v237 = vld [vmem:[%s236] ss:$-1 sm:$0xff]
    %v238 = vrot.slane %v237, 1
    %239 = vst [vmem:[%s234] sm:$0xff] %v238
    %s240 = scalar_lea.vmem %s235, 8 [#allocation0]
    %s241 = scalar_lea.vmem %s240, 7 [#allocation0]
    %v242 = vld [vmem:[%s241] ss:$-1 sm:$0xff]
    %v243 = vrot.slane %v242, 1
    %v244 = vlaneseq
    %v245 = vshrl.u32 %v244, 7
    %vm246 = vcmp.lt.s32.totalorder %v245, 7
    %247 = vst.msk [vmem:[%s234] sm:$0xff] %vm246, %v243
    %s248 = scalar_lea.vmem [#allocation1], 88
    %s249 = scalar_lea.vmem [#allocation0], 176
    %s250 = scalar_lea.vmem %s249, 7 [#allocation0]
    %v251 = vld [vmem:[%s250] ss:$-1 sm:$0xff]
    %v252 = vrot.slane %v251, 1
    %253 = vst [vmem:[%s248] sm:$0xff] %v252
    %s254 = scalar_lea.vmem %s249, 8 [#allocation0]
    %s255 = scalar_lea.vmem %s254, 7 [#allocation0]
    %v256 = vld [vmem:[%s255] ss:$-1 sm:$0xff]
    %v257 = vrot.slane %v256, 1
    %v258 = vlaneseq
    %v259 = vshrl.u32 %v258, 7
    %vm260 = vcmp.lt.s32.totalorder %v259, 7
    %261 = vst.msk [vmem:[%s248] sm:$0xff] %vm260, %v257
    %s262 = scalar_lea.vmem [#allocation1], 96
    %s263 = scalar_lea.vmem [#allocation0], 192
    %s264 = scalar_lea.vmem %s263, 7 [#allocation0]
    %v265 = vld [vmem:[%s264] ss:$-1 sm:$0xff]
    %v266 = vrot.slane %v265, 1
    %267 = vst [vmem:[%s262] sm:$0xff] %v266
    %s268 = scalar_lea.vmem %s263, 8 [#allocation0]
    %s269 = scalar_lea.vmem %s268, 7 [#allocation0]
    %v270 = vld [vmem:[%s269] ss:$-1 sm:$0xff]
    %v271 = vrot.slane %v270, 1
    %v272 = vlaneseq
    %v273 = vshrl.u32 %v272, 7
    %vm274 = vcmp.lt.s32.totalorder %v273, 7
    %275 = vst.msk [vmem:[%s262] sm:$0xff] %vm274, %v271
    %s276 = scalar_lea.vmem [#allocation1], 104
    %s277 = scalar_lea.vmem [#allocation0], 208
    %s278 = scalar_lea.vmem %s277, 7 [#allocation0]
    %v279 = vld [vmem:[%s278] ss:$-1 sm:$0xff]
    %v280 = vrot.slane %v279, 1
    %281 = vst [vmem:[%s276] sm:$0xff] %v280
    %s282 = scalar_lea.vmem %s277, 8 [#allocation0]
    %s283 = scalar_lea.vmem %s282, 7 [#allocation0]
    %v284 = vld [vmem:[%s283] ss:$-1 sm:$0xff]
    %v285 = vrot.slane %v284, 1
    %v286 = vlaneseq
    %v287 = vshrl.u32 %v286, 7
    %vm288 = vcmp.lt.s32.totalorder %v287, 7
    %289 = vst.msk [vmem:[%s276] sm:$0xff] %vm288, %v285
    %s290 = scalar_lea.vmem [#allocation1], 112
    %s291 = scalar_lea.vmem [#allocation0], 224
    %s292 = scalar_lea.vmem %s291, 7 [#allocation0]
    %v293 = vld [vmem:[%s292] ss:$-1 sm:$0xff]
    %v294 = vrot.slane %v293, 1
    %295 = vst [vmem:[%s290] sm:$0xff] %v294
    %s296 = scalar_lea.vmem %s291, 8 [#allocation0]
    %s297 = scalar_lea.vmem %s296, 7 [#allocation0]
    %v298 = vld [vmem:[%s297] ss:$-1 sm:$0xff]
    %v299 = vrot.slane %v298, 1
    %v300 = vlaneseq
    %v301 = vshrl.u32 %v300, 7
    %vm302 = vcmp.lt.s32.totalorder %v301, 7
    %303 = vst.msk [vmem:[%s290] sm:$0xff] %vm302, %v299
    %s304 = scalar_lea.vmem [#allocation1], 120
    %s305 = scalar_lea.vmem [#allocation0], 240
    %s306 = scalar_lea.vmem %s305, 7 [#allocation0]
    %v307 = vld [vmem:[%s306] ss:$-1 sm:$0xff]
    %v308 = vrot.slane %v307, 1
    %309 = vst [vmem:[%s304] sm:$0xff] %v308
    %s310 = scalar_lea.vmem %s305, 8 [#allocation0]
    %s311 = scalar_lea.vmem %s310, 7 [#allocation0]
    %v312 = vld [vmem:[%s311] ss:$-1 sm:$0xff]
    %v313 = vrot.slane %v312, 1
    %v314 = vlaneseq
    %v315 = vshrl.u32 %v314, 7
    %vm316 = vcmp.lt.s32.totalorder %v315, 7
    %317 = vst.msk [vmem:[%s304] sm:$0xff] %vm316, %v313
    // Predicated region
    $region36: #{reverse.0} parent=1 // pred_check
      _
    $region37: #{reverse.0} parent=1 // pred_check_branch
      %319 = sbr.rel (0) target = $region39
    $region38: #{reverse.0} parent=1 // pred_region
      // Predicated region
      $region40: #{reverse.0} parent=38 // pred_check
        _
      $region41: #{reverse.0} parent=38 // pred_check_branch
        %321 = sbr.rel (0) target = $region43
      $region42: #{reverse.0} parent=38 // pred_region
        // Predicated region
        $region55: #{reverse.0} parent=42 // pred_check
          _
        $region56: #{reverse.0} parent=42 // pred_check_branch
          %367 = sbr.rel (0) target = $region58
        $region57: #{reverse.0} parent=42 // pred_region
          loop: start=0, step=1, limit=1
          $region59: #{reverse.0} parent=57 // loop_pre_header
            _
          $region60: #{reverse.0} parent=57 // loop_header
            %s369 = sphi 0, %s373
            %p370 = scmp.ge.s32.totalorder %s369, 1
            %s374 = sphi [#allocation1], [#allocation1]
            %s375 = sphi %s1, %s1
          $region61: #{reverse.0} parent=57 // loop_header_branch
            %372 = sbr.rel (%p370) target = $region65
          $region62: #{reverse.0} parent=57 // loop_body
            %v376 = vld [vmem:[%s374] sm:$0xff]
            %377 = vst [vmem:[%s375] sm:$0xff] %v376
            %v378 = vld [vmem:[%s374 + $0x8] sm:$0xff]
            %379 = vst [vmem:[%s375 + $0x8] sm:$0xff] %v378
            %v380 = vld [vmem:[%s374 + $0x10] sm:$0xff]
            %381 = vst [vmem:[%s375 + $0x10] sm:$0xff] %v380
            %v382 = vld [vmem:[%s374 + $0x18] sm:$0xff]
            %383 = vst [vmem:[%s375 + $0x18] sm:$0xff] %v382
            %v384 = vld [vmem:[%s374 + $0x20] sm:$0xff]
            %385 = vst [vmem:[%s375 + $0x20] sm:$0xff] %v384
            %v386 = vld [vmem:[%s374 + $0x28] sm:$0xff]
            %387 = vst [vmem:[%s375 + $0x28] sm:$0xff] %v386
            %v388 = vld [vmem:[%s374 + $0x30] sm:$0xff]
            %389 = vst [vmem:[%s375 + $0x30] sm:$0xff] %v388
            %v390 = vld [vmem:[%s374 + $0x38] sm:$0xff]
            %391 = vst [vmem:[%s375 + $0x38] sm:$0xff] %v390
            %v392 = vld [vmem:[%s374 + $0x40] sm:$0xff]
            %393 = vst [vmem:[%s375 + $0x40] sm:$0xff] %v392
            %v394 = vld [vmem:[%s374 + $0x48] sm:$0xff]
            %395 = vst [vmem:[%s375 + $0x48] sm:$0xff] %v394
            %v396 = vld [vmem:[%s374 + $0x50] sm:$0xff]
            %397 = vst [vmem:[%s375 + $0x50] sm:$0xff] %v396
            %v398 = vld [vmem:[%s374 + $0x58] sm:$0xff]
            %399 = vst [vmem:[%s375 + $0x58] sm:$0xff] %v398
            %v400 = vld [vmem:[%s374 + $0x60] sm:$0xff]
            %401 = vst [vmem:[%s375 + $0x60] sm:$0xff] %v400
            %v402 = vld [vmem:[%s374 + $0x68] sm:$0xff]
            %403 = vst [vmem:[%s375 + $0x68] sm:$0xff] %v402
            %v404 = vld [vmem:[%s374 + $0x70] sm:$0xff]
            %405 = vst [vmem:[%s375 + $0x70] sm:$0xff] %v404
            %v406 = vld [vmem:[%s374 + $0x78] sm:$0xff]
            %407 = vst [vmem:[%s375 + $0x78] sm:$0xff] %v406
          $region63: #{reverse.0} parent=57 // loop_footer
            %s373 = sadd.s32 1, %s369
          $region64: #{reverse.0} parent=57 // loop_footer_branch
            %368 = sbr.rel target = $region60
          $region65: #{reverse.0} parent=57 // loop_exit
            _
        $region58: #{reverse.0} parent=42 // pred_fallthru
          _
        // Predicated region
        $region66: #{reverse.0} parent=42 // pred_check
          _
        $region67: #{reverse.0} parent=42 // pred_check_branch
          %409 = sbr.rel target = $region69
        $region68: #{reverse.0} parent=42 // pred_region
          _
        $region69: #{reverse.0} parent=42 // pred_fallthru
          _
      $region43: #{reverse.0} parent=38 // pred_fallthru
        _
      // Predicated region
      $region44: #{reverse.0} parent=38 // pred_check
        _
      $region45: #{reverse.0} parent=38 // pred_check_branch
        %323 = sbr.rel target = $region47
      $region46: #{reverse.0} parent=38 // pred_region
        %s325 = ssub.s32 256, 1
        loop: start=0, step=1, limit=1
        $region48: #{reverse.0} parent=46 // loop_pre_header
          _
        $region49: #{reverse.0} parent=46 // loop_header
          %s327 = sphi 0, %s331
          %p328 = scmp.ge.s32.totalorder %s327, 1
          %s332 = sphi [#allocation1], [#allocation1]
          %s333 = sphi %s1, %s1
        $region50: #{reverse.0} parent=46 // loop_header_branch
          %330 = sbr.rel (%p328) target = $region54
        $region51: #{reverse.0} parent=46 // loop_body
          %v334 = vld [vmem:[%s332] sm:%s325]
          %335 = vst [vmem:[%s333] sm:%s325] %v334
          %v336 = vld [vmem:[%s332 + $0x8] sm:%s325]
          %337 = vst [vmem:[%s333 + $0x8] sm:%s325] %v336
          %v338 = vld [vmem:[%s332 + $0x10] sm:%s325]
          %339 = vst [vmem:[%s333 + $0x10] sm:%s325] %v338
          %v340 = vld [vmem:[%s332 + $0x18] sm:%s325]
          %341 = vst [vmem:[%s333 + $0x18] sm:%s325] %v340
          %v342 = vld [vmem:[%s332 + $0x20] sm:%s325]
          %343 = vst [vmem:[%s333 + $0x20] sm:%s325] %v342
          %v344 = vld [vmem:[%s332 + $0x28] sm:%s325]
          %345 = vst [vmem:[%s333 + $0x28] sm:%s325] %v344
          %v346 = vld [vmem:[%s332 + $0x30] sm:%s325]
          %347 = vst [vmem:[%s333 + $0x30] sm:%s325] %v346
          %v348 = vld [vmem:[%s332 + $0x38] sm:%s325]
          %349 = vst [vmem:[%s333 + $0x38] sm:%s325] %v348
          %v350 = vld [vmem:[%s332 + $0x40] sm:%s325]
          %351 = vst [vmem:[%s333 + $0x40] sm:%s325] %v350
          %v352 = vld [vmem:[%s332 + $0x48] sm:%s325]
          %353 = vst [vmem:[%s333 + $0x48] sm:%s325] %v352
          %v354 = vld [vmem:[%s332 + $0x50] sm:%s325]
          %355 = vst [vmem:[%s333 + $0x50] sm:%s325] %v354
          %v356 = vld [vmem:[%s332 + $0x58] sm:%s325]
          %357 = vst [vmem:[%s333 + $0x58] sm:%s325] %v356
          %v358 = vld [vmem:[%s332 + $0x60] sm:%s325]
          %359 = vst [vmem:[%s333 + $0x60] sm:%s325] %v358
          %v360 = vld [vmem:[%s332 + $0x68] sm:%s325]
          %361 = vst [vmem:[%s333 + $0x68] sm:%s325] %v360
          %v362 = vld [vmem:[%s332 + $0x70] sm:%s325]
          %363 = vst [vmem:[%s333 + $0x70] sm:%s325] %v362
          %v364 = vld [vmem:[%s332 + $0x78] sm:%s325]
          %365 = vst [vmem:[%s333 + $0x78] sm:%s325] %v364
        $region52: #{reverse.0} parent=46 // loop_footer
          %s331 = sadd.s32 1, %s327
        $region53: #{reverse.0} parent=46 // loop_footer_branch
          %326 = sbr.rel target = $region49
        $region54: #{reverse.0} parent=46 // loop_exit
          _
      $region47: #{reverse.0} parent=38 // pred_fallthru
        _
    $region39: #{reverse.0} parent=1 // pred_fallthru
      _
    %410 = vnop

// kernel: _lambda_.11
$region0: #{_lambda_.11}
  #allocation0 [shape = 'u32[]', space=smem, size = 0x4, offset = 0x4, fixed_abs, tag = 'smem constant byte address 0x4 - core index']
  #allocation1 [shape = 'u32[144,128]{1,0:T(1,128)}', space=vmem, size = 0x12000, scoped, tag = 'internal scratch']
  %s0 = inlined_call_operand.vmem [shape: f32[2,8,16,16], index: 0, kind: input, shape index: {}]
  %s1 = inlined_call_operand.vmem [shape: f32[2,8,16,16], index: 1, kind: input, shape index: {}]
  %s2 = inlined_call_operand.vmem [shape: f32[2,8,16,16], index: 2, kind: input, shape index: {}]
  %s3 = inlined_call_operand.hbm [shape: f32[2,4,16,16], index: 3, kind: output, shape index: {}]
  %s4 = sld [smem:[#allocation0]]
  $region45: #{_lambda_.11} parent=0
    _
  %s6 = ssub.s32 1, %s4
  %s7 = scalar_select 0, %s6, %s4
  $region1: #{_lambda_.11} parent=0
    #allocation2 [shape = 'u8[65536]{0}', space=vmem, size = 0x10000, scoped, tag = 'output window, operand 0']
    #allocation3 [shape = 's32[2]{0}', space=sflag, size = 0x8, scoped, tag = 'scoped memory for _lambda_.11']
    %8 = vsyncpa [#allocation3], 0
    %s9 = scalar_lea.sflag [#allocation3], 1
    %10 = vsyncpa %s9, 0
    loop: start=0, step=1, limit=4
    $region2: #{_lambda_.11} parent=1 // loop_pre_header
      _
    $region3: #{_lambda_.11} parent=1 // loop_header
      %s12 = sphi 0, %s16
      %p13 = scmp.ge.s32.totalorder %s12, 4
      %s22 = sphi 0, %s24
      %s25 = sphi 0, %s22
      %s26 = sphi 0, %s25
      %s42 = sphi 0, %s26
      %s48 = sphi 0, %s50
      %s51 = sphi 0, %s48
      %s52 = sphi 0, %s51
      %s68 = sphi 0, %s52
      %s74 = sphi 0, %s76
      %s77 = sphi 0, %s74
      %s78 = sphi 0, %s77
      %s94 = sphi 0, %s78
      %s100 = sphi 0, %s102
      %s103 = sphi 0, %s100
      %s104 = sphi 0, %s103
      %s120 = sphi 0, %s104
    $region4: #{_lambda_.11} parent=1 // loop_header_branch
      %15 = sbr.rel (%p13) target = $region8
    $region5: #{_lambda_.11} parent=1 // loop_body
      %s17 = ssub.s32 %s12, 1
      %s18 = ssub.s32 %s12, 2
      %s19 = sadd.s32 %s12, 1
      %s20 = ssub.s32 %s12, %s19
      %p21 = scmp.eq.s32.totalorder %s20, 0
      %s23 = sadd.s32 %s22, 1
      %s24 = scalar_select %p21, %s22, %s23
      %p27 = pneg %p21
      %p28 = scmp.eq.s32.totalorder %s12, 1
      %p29 = por %p27, %p28
      %p30 = scmp.ne.s32.totalorder %s22, %s25
      %p31 = scmp.eq.s32.totalorder %s12, 0
      %p32 = por %p30, %p31
      %p33 = scmp.ne.s32.totalorder %s22, %s25
      %p34 = scmp.eq.s32.totalorder %s17, 1
      %p35 = por %p33, %p34
      %p36 = scmp.ne.s32.totalorder %s25, %s26
      %p37 = scmp.eq.s32.totalorder %s17, 0
      %p38 = por %p36, %p37
      %p39 = scmp.ne.s32.totalorder %s25, %s26
      %p40 = scmp.eq.s32.totalorder %s18, 1
      %p41 = por %p39, %p40
      %p43 = scmp.ne.s32.totalorder %s26, %s42
      %p44 = scmp.eq.s32.totalorder %s18, 0
      %p45 = por %p43, %p44
      %s46 = ssub.s32 %s12, %s19
      %p47 = scmp.eq.s32.totalorder %s46, 0
      %s49 = sadd.s32 %s48, 1
      %s50 = scalar_select %p47, %s48, %s49
      %p53 = pneg %p47
      %p54 = scmp.eq.s32.totalorder %s12, 1
      %p55 = por %p53, %p54
      %p56 = scmp.ne.s32.totalorder %s48, %s51
      %p57 = scmp.eq.s32.totalorder %s12, 0
      %p58 = por %p56, %p57
      %p59 = scmp.ne.s32.totalorder %s48, %s51
      %p60 = scmp.eq.s32.totalorder %s17, 1
      %p61 = por %p59, %p60
      %p62 = scmp.ne.s32.totalorder %s51, %s52
      %p63 = scmp.eq.s32.totalorder %s17, 0
      %p64 = por %p62, %p63
      %p65 = scmp.ne.s32.totalorder %s51, %s52
      %p66 = scmp.eq.s32.totalorder %s18, 1
      %p67 = por %p65, %p66
      %p69 = scmp.ne.s32.totalorder %s52, %s68
      %p70 = scmp.eq.s32.totalorder %s18, 0
      %p71 = por %p69, %p70
      %s72 = ssub.s32 %s12, %s19
      %p73 = scmp.eq.s32.totalorder %s72, 0
      %s75 = sadd.s32 %s74, 1
      %s76 = scalar_select %p73, %s74, %s75
      %p79 = pneg %p73
      %p80 = scmp.eq.s32.totalorder %s12, 1
      %p81 = por %p79, %p80
      %p82 = scmp.ne.s32.totalorder %s74, %s77
      %p83 = scmp.eq.s32.totalorder %s12, 0
      %p84 = por %p82, %p83
      %p85 = scmp.ne.s32.totalorder %s74, %s77
      %p86 = scmp.eq.s32.totalorder %s17, 1
      %p87 = por %p85, %p86
      %p88 = scmp.ne.s32.totalorder %s77, %s78
      %p89 = scmp.eq.s32.totalorder %s17, 0
      %p90 = por %p88, %p89
      %p91 = scmp.ne.s32.totalorder %s77, %s78
      %p92 = scmp.eq.s32.totalorder %s18, 1
      %p93 = por %p91, %p92
      %p95 = scmp.ne.s32.totalorder %s78, %s94
      %p96 = scmp.eq.s32.totalorder %s18, 0
      %p97 = por %p95, %p96
      %s98 = ssub.s32 %s12, %s19
      %p99 = scmp.eq.s32.totalorder %s98, 0
      %s101 = sadd.s32 %s100, 1
      %s102 = scalar_select %p99, %s100, %s101
      %p105 = pneg %p99
      %p106 = scmp.eq.s32.totalorder %s12, 1
      %p107 = por %p105, %p106
      %p108 = scmp.ne.s32.totalorder %s100, %s103
      %p109 = scmp.eq.s32.totalorder %s12, 0
      %p110 = por %p108, %p109
      %p111 = scmp.ne.s32.totalorder %s100, %s103
      %p112 = scmp.eq.s32.totalorder %s17, 1
      %p113 = por %p111, %p112
      %p114 = scmp.ne.s32.totalorder %s103, %s104
      %p115 = scmp.eq.s32.totalorder %s17, 0
      %p116 = por %p114, %p115
      %p117 = scmp.ne.s32.totalorder %s103, %s104
      %p118 = scmp.eq.s32.totalorder %s18, 1
      %p119 = por %p117, %p118
      %p121 = scmp.ne.s32.totalorder %s104, %s120
      %p122 = scmp.eq.s32.totalorder %s18, 0
      %p123 = por %p121, %p122
      %p124 = scmp.le.s32.totalorder 1, %s12
      %p125 = scmp.lt.s32.totalorder %s12, 3
      %p126 = pnand %p124, %p125
      %p127 = pneg %p126
      // Predicated region
      $region9: #{_lambda_.11} parent=5 // pred_check
        _
      $region10: #{_lambda_.11} parent=5 // pred_check_branch
        %129 = sbr.rel (%p126) target = $region12
      $region11: #{_lambda_.11} parent=5 // pred_region
        %s130 = ssub.s32 %s12, 1
      $region12: #{_lambda_.11} parent=5 // pred_fallthru
        _
      %p131 = scmp.lt.s32.totalorder %s12, 2
      // Predicated region
      $region13: #{_lambda_.11} parent=5 // pred_check
        %p132 = pneg %p131
      $region14: #{_lambda_.11} parent=5 // pred_check_branch
        %134 = sbr.rel (%p132) target = $region16
      $region15: #{_lambda_.11} parent=5 // pred_region
        // Predicated region
        $region17: #{_lambda_.11} parent=15 // pred_check
          %p135 = pneg %p32
        $region18: #{_lambda_.11} parent=15 // pred_check_branch
          %137 = sbr.rel (%p135) target = $region20
        $region19: #{_lambda_.11} parent=15 // pred_region
          %p138 = scmp.lt.s32.totalorder %s12, 1
          %s139 = scalar_select %p138, %s12, 1
          %s140 = smul.addr %s139, 16
          %s141 = smul.addr %s140, 8
          %s142 = scalar_lea.vmem %s0, %s141
        $region20: #{_lambda_.11} parent=15 // pred_fallthru
          _
        // Predicated region
        $region21: #{_lambda_.11} parent=15 // pred_check
          %p143 = pneg %p58
        $region22: #{_lambda_.11} parent=15 // pred_check_branch
          %145 = sbr.rel (%p143) target = $region24
        $region23: #{_lambda_.11} parent=15 // pred_region
          %p146 = scmp.lt.s32.totalorder %s12, 1
          %s147 = scalar_select %p146, %s12, 1
          %s148 = smul.addr %s147, 16
          %s149 = smul.addr %s148, 8
          %s150 = scalar_lea.vmem %s1, %s149
        $region24: #{_lambda_.11} parent=15 // pred_fallthru
          _
        // Predicated region
        $region25: #{_lambda_.11} parent=15 // pred_check
          %p151 = pneg %p84
        $region26: #{_lambda_.11} parent=15 // pred_check_branch
          %153 = sbr.rel (%p151) target = $region28
        $region27: #{_lambda_.11} parent=15 // pred_region
          %p154 = scmp.lt.s32.totalorder %s12, 1
          %s155 = scalar_select %p154, %s12, 1
          %s156 = smul.addr %s155, 16
          %s157 = smul.addr %s156, 8
          %s158 = scalar_lea.vmem %s2, %s157
        $region28: #{_lambda_.11} parent=15 // pred_fallthru
          _
      $region16: #{_lambda_.11} parent=5 // pred_fallthru
        _
      %p159 = scmp.le.s32.totalorder 1, %s12
      %p160 = scmp.lt.s32.totalorder %s12, 3
      %p161 = pnand %p159, %p160
      %p162 = pneg %p161
      // Predicated region
      $region29: #{_lambda_.11} parent=5 // pred_check
        _
      $region30: #{_lambda_.11} parent=5 // pred_check_branch
        %164 = sbr.rel (%p161) target = $region32
      $region31: #{_lambda_.11} parent=5 // pred_region
        %s165 = ssub.s32 %s12, 1
        %p166 = scmp.lt.s32.totalorder %s17, 1
        %s167 = scalar_select %p166, %s17, 1
        %s168 = smul.addr %s167, 16
        %s169 = smul.addr %s168, 8
        %s170 = scalar_lea.vmem %s0, %s169
        %p171 = pneg %p38
        %p172 = pneg %p35
        %p173 = scmp.lt.s32.totalorder %s17, 1
        %s174 = scalar_select %p173, %s17, 1
        %s175 = smul.addr %s174, 16
        %s176 = smul.addr %s175, 8
        %s177 = scalar_lea.vmem %s1, %s176
        %p178 = pneg %p64
        %p179 = pneg %p61
        %p180 = scmp.lt.s32.totalorder %s17, 1
        %s181 = scalar_select %p180, %s17, 1
        %s182 = smul.addr %s181, 16
        %s183 = smul.addr %s182, 8
        %s184 = scalar_lea.vmem %s2, %s183
        %p185 = pneg %p90
        %p186 = pneg %p87
        %p187 = pneg %p116
        %p188 = pneg %p113
        %s189 = sand.u32 %s103, 1
        %s190 = scalar_lea.sflag [#allocation3], %s189
        %s191 = sand.u32 %s103, 1
        %s192 = smul.addr %s191, 64
        %s193 = scalar_lea.vmem [#allocation2], %s192
        %p194 = scmp.lt.s32.totalorder %s17, 1
        %s195 = scalar_select %p194, %s17, 1
        %s196 = smul.addr %s195, 16
        %s197 = smul.addr %s196, 8
        %s198 = scalar_lea.vmem %s0, %s197
        %p199 = scmp.lt.s32.totalorder %s17, 1
        %s200 = scalar_select %p199, %s17, 1
        %s201 = smul.addr %s200, 16
        %s202 = smul.addr %s201, 8
        %s203 = scalar_lea.vmem %s1, %s202
        %p204 = scmp.lt.s32.totalorder %s17, 1
        %s205 = scalar_select %p204, %s17, 1
        %s206 = smul.addr %s205, 16
        %s207 = smul.addr %s206, 8
        %s208 = scalar_lea.vmem %s2, %s207
        %v209 = vld [vmem:[%s198] sm:$0xff]
        %v210 = vld [vmem:[%s198 + $0x8] sm:$0xff]
        %v211 = vld [vmem:[%s198 + $0x10] sm:$0xff]
        %v212 = vld [vmem:[%s198 + $0x18] sm:$0xff]
        %v213 = vld [vmem:[%s198 + $0x20] sm:$0xff]
        %v214 = vld [vmem:[%s198 + $0x28] sm:$0xff]
        %v215 = vld [vmem:[%s198 + $0x30] sm:$0xff]
        %v216 = vld [vmem:[%s198 + $0x38] sm:$0xff]
        %v217 = vld [vmem:[%s198 + $0x40] sm:$0xff]
        %v218 = vld [vmem:[%s198 + $0x48] sm:$0xff]
        %v219 = vld [vmem:[%s198 + $0x50] sm:$0xff]
        %v220 = vld [vmem:[%s198 + $0x58] sm:$0xff]
        %v221 = vld [vmem:[%s198 + $0x60] sm:$0xff]
        %v222 = vld [vmem:[%s198 + $0x68] sm:$0xff]
        %v223 = vld [vmem:[%s198 + $0x70] sm:$0xff]
        %v224 = vld [vmem:[%s198 + $0x78] sm:$0xff]
        %v225 = vld [vmem:[%s203] sm:$0xff]
        %v226 = vld [vmem:[%s203 + $0x8] sm:$0xff]
        %v227 = vld [vmem:[%s203 + $0x10] sm:$0xff]
        %v228 = vld [vmem:[%s203 + $0x18] sm:$0xff]
        %v229 = vld [vmem:[%s203 + $0x20] sm:$0xff]
        %v230 = vld [vmem:[%s203 + $0x28] sm:$0xff]
        %v231 = vld [vmem:[%s203 + $0x30] sm:$0xff]
        %v232 = vld [vmem:[%s203 + $0x38] sm:$0xff]
        %v233 = vld [vmem:[%s203 + $0x40] sm:$0xff]
        %v234 = vld [vmem:[%s203 + $0x48] sm:$0xff]
        %v235 = vld [vmem:[%s203 + $0x50] sm:$0xff]
        %v236 = vld [vmem:[%s203 + $0x58] sm:$0xff]
        %v237 = vld [vmem:[%s203 + $0x60] sm:$0xff]
        %v238 = vld [vmem:[%s203 + $0x68] sm:$0xff]
        %v239 = vld [vmem:[%s203 + $0x70] sm:$0xff]
        %v240 = vld [vmem:[%s203 + $0x78] sm:$0xff]
        %v241 = vld [vmem:[%s208] sm:$0xff]
        %v242 = vld [vmem:[%s208 + $0x8] sm:$0xff]
        %v243 = vld [vmem:[%s208 + $0x10] sm:$0xff]
        %v244 = vld [vmem:[%s208 + $0x18] sm:$0xff]
        %v245 = vld [vmem:[%s208 + $0x20] sm:$0xff]
        %v246 = vld [vmem:[%s208 + $0x28] sm:$0xff]
        %v247 = vld [vmem:[%s208 + $0x30] sm:$0xff]
        %v248 = vld [vmem:[%s208 + $0x38] sm:$0xff]
        %v249 = vld [vmem:[%s208 + $0x40] sm:$0xff]
        %v250 = vld [vmem:[%s208 + $0x48] sm:$0xff]
        %v251 = vld [vmem:[%s208 + $0x50] sm:$0xff]
        %v252 = vld [vmem:[%s208 + $0x58] sm:$0xff]
        %v253 = vld [vmem:[%s208 + $0x60] sm:$0xff]
        %v254 = vld [vmem:[%s208 + $0x68] sm:$0xff]
        %v255 = vld [vmem:[%s208 + $0x70] sm:$0xff]
        %v256 = vld [vmem:[%s208 + $0x78] sm:$0xff]
        %vm257 = vcmask 130048
        %v258 = vsel %vm257, %v209, -inf
        %v259 = vsel %vm257, %v211, -inf
        %v260 = vsel %vm257, %v213, -inf
        %v261 = vmax.f32 %v258, %v260
        %v262 = vsel %vm257, %v215, -inf
        %v263 = vmax.f32 %v259, %v262
        %v264 = vsel %vm257, %v217, -inf
        %v265 = vmax.f32 %v261, %v264
        %v266 = vsel %vm257, %v219, -inf
        %v267 = vmax.f32 %v263, %v266
        %v268 = vsel %vm257, %v221, -inf
        %v269 = vmax.f32 %v265, %v268
        %v270 = vsel %vm257, %v223, -inf
        %v271 = vmax.f32 %v267, %v270
        %v272 = vmax.f32 %v269, %v271
        %v273 = vsel %vm257, %v210, -inf
        %v274 = vsel %vm257, %v212, -inf
        %v275 = vsel %vm257, %v214, -inf
        %v276 = vmax.f32 %v273, %v275
        %v277 = vsel %vm257, %v216, -inf
        %v278 = vmax.f32 %v274, %v277
        %v279 = vsel %vm257, %v218, -inf
        %v280 = vmax.f32 %v276, %v279
        %v281 = vsel %vm257, %v220, -inf
        %v282 = vmax.f32 %v278, %v281
        %v283 = vsel %vm257, %v222, -inf
        %v284 = vmax.f32 %v280, %v283
        %v285 = vsel %vm257, %v224, -inf
        %v286 = vmax.f32 %v282, %v285
        %v287 = vmax.f32 %v284, %v286
        %v288 = vmax.f32 %v272, 1.0
        %v289 = vmax.f32 %v287, 1.0
        %v290 = vrcp.pop %v288
        %v291 = vrcp.pop %v289
        %v292 = vmul.f32 %v225, %v290
        %v293 = vmul.f32 %v226, %v291
        %v294 = vmul.f32 %v227, %v290
        %v295 = vmul.f32 %v228, %v291
        %v296 = vmul.f32 %v229, %v290
        %v297 = vmul.f32 %v230, %v291
        %v298 = vmul.f32 %v231, %v290
        %v299 = vmul.f32 %v232, %v291
        %v300 = vmul.f32 %v233, %v290
        %v301 = vmul.f32 %v234, %v291
        %v302 = vmul.f32 %v235, %v290
        %v303 = vmul.f32 %v236, %v291
        %v304 = vmul.f32 %v237, %v290
        %v305 = vmul.f32 %v238, %v291
        %v306 = vmul.f32 %v239, %v290
        %v307 = vmul.f32 %v240, %v291
        %v308 = vtanh.pop %v292
        %v309 = vtanh.pop %v293
        %v310 = vtanh.pop %v294
        %v311 = vtanh.pop %v295
        %v312 = vtanh.pop %v296
        %v313 = vtanh.pop %v297
        %v314 = vtanh.pop %v298
        %v315 = vtanh.pop %v299
        %v316 = vtanh.pop %v300
        %v317 = vtanh.pop %v301
        %v318 = vtanh.pop %v302
        %v319 = vtanh.pop %v303
        %v320 = vtanh.pop %v304
        %v321 = vtanh.pop %v305
        %v322 = vtanh.pop %v306
        %v323 = vtanh.pop %v307
        %v324 = vmul.f32 %v288, %v308
        %v325 = vmul.f32 %v289, %v309
        %v326 = vmul.f32 %v288, %v310
        %v327 = vmul.f32 %v289, %v311
        %v328 = vmul.f32 %v288, %v312
        %v329 = vmul.f32 %v289, %v313
        %v330 = vmul.f32 %v288, %v314
        %v331 = vmul.f32 %v289, %v315
        %v332 = vmul.f32 %v288, %v316
        %v333 = vmul.f32 %v289, %v317
        %v334 = vmul.f32 %v288, %v318
        %v335 = vmul.f32 %v289, %v319
        %v336 = vmul.f32 %v288, %v320
        %v337 = vmul.f32 %v289, %v321
        %v338 = vmul.f32 %v288, %v322
        %v339 = vmul.f32 %v289, %v323
        %v340 = vadd.f32 %v209, %v324
        %v341 = vadd.f32 %v210, %v325
        %v342 = vadd.f32 %v211, %v326
        %v343 = vadd.f32 %v212, %v327
        %v344 = vadd.f32 %v213, %v328
        %v345 = vadd.f32 %v214, %v329
        %v346 = vadd.f32 %v215, %v330
        %v347 = vadd.f32 %v216, %v331
        %v348 = vadd.f32 %v217, %v332
        %v349 = vadd.f32 %v218, %v333
        %v350 = vadd.f32 %v219, %v334
        %v351 = vadd.f32 %v220, %v335
        %v352 = vadd.f32 %v221, %v336
        %v353 = vadd.f32 %v222, %v337
        %v354 = vadd.f32 %v223, %v338
        %v355 = vadd.f32 %v224, %v339
        %v356 = vadd.f32 %v340, %v241
        %v357 = vadd.f32 %v341, %v242
        %v358 = vadd.f32 %v342, %v243
        %v359 = vadd.f32 %v343, %v244
        %v360 = vadd.f32 %v344, %v245
        %v361 = vadd.f32 %v345, %v246
        %v362 = vadd.f32 %v346, %v247
        %v363 = vadd.f32 %v347, %v248
        %v364 = vadd.f32 %v348, %v249
        %v365 = vadd.f32 %v349, %v250
        %v366 = vadd.f32 %v350, %v251
        %v367 = vadd.f32 %v351, %v252
        %v368 = vadd.f32 %v352, %v253
        %v369 = vadd.f32 %v353, %v254
        %v370 = vadd.f32 %v354, %v255
        %v371 = vadd.f32 %v355, %v256
        %v373 = vsel %vm257, %v356, 0
        %v376 = vsel %vm257, %v357, 0
        %v379 = vsel %vm257, %v364, 0
        %v382 = vsel %vm257, %v365, 0
        %384 = vmatprep.subr.mxu0 0.0
        %385 = vmatpush1.xpose.msra.mxu0 0.0
        %386 = vmatprep.subr.mxu0 0.0
        %387 = vmatpush1.xpose.msra.mxu0 0.0
        %388 = vmatprep.subr.mxu0 0.0
        %389 = vmatpush1.xpose.msra.mxu0 0.0
        %390 = vmatprep.subr.mxu0 0.0
        %391 = vmatpush1.xpose.msra.mxu0 0.0
        %392 = vmatprep.subr.mxu0 0.0
        %393 = vmatpush1.xpose.msra.mxu0 0.0
        %394 = vmatprep.subr.mxu0 0.0
        %395 = vmatpush1.xpose.msra.mxu0 0.0
        %396 = vmatprep.subr.mxu0 0.0
        %397 = vmatpush1.xpose.msra.mxu0 0.0
        %398 = vmatprep.subr.mxu0 0.0
        %399 = vmatpush1.xpose.msra.mxu0 0.0
        %400 = vmatprep.subr.mxu0 0.0
        %401 = vmatpush1.xpose.msra.mxu0 0.0
        %402 = vmatprep.subr.mxu0 0.0
        %403 = vmatpush1.xpose.msra.mxu0 0.0
        %404 = vmatprep.subr.mxu0 0.0
        %405 = vmatpush1.xpose.msra.mxu0 0.0
        %406 = vmatprep.subr.mxu0 0.0
        %407 = vmatpush1.xpose.msra.mxu0 0.0
        %408 = vmatprep.subr.mxu0 0.0
        %409 = vmatpush1.xpose.msra.mxu0 0.0
        %410 = vmatprep.subr.mxu0 0.0
        %411 = vmatpush1.xpose.msra.mxu0 0.0
        %412 = vmatprep.subr.mxu0 0.0
        %413 = vmatpush1.xpose.msra.mxu0 %v382
        %414 = vmatprep.subr.mxu0 0.0
        %415 = vmatpush1.xpose.msra.mxu0 %v379
        %416 = vmatprep.subr.mxu0 0.0
        %417 = vmatpush2.xpose.msra.mxu0 0.0
        %418 = vmatprep.subr.mxu0 0.0
        %419 = vmatpush2.xpose.msra.mxu0 0.0
        %420 = vmatprep.subr.mxu0 0.0
        %421 = vmatpush2.xpose.msra.mxu0 0.0
        %422 = vmatprep.subr.mxu0 0.0
        %423 = vmatpush2.xpose.msra.mxu0 0.0
        %424 = vmatprep.subr.mxu0 0.0
        %425 = vmatpush2.xpose.msra.mxu0 0.0
        %426 = vmatprep.subr.mxu0 0.0
        %427 = vmatpush2.xpose.msra.mxu0 0.0
        %428 = vmatprep.subr.mxu0 0.0
        %429 = vmatpush2.xpose.msra.mxu0 0.0
        %430 = vmatprep.subr.mxu0 0.0
        %431 = vmatpush2.xpose.msra.mxu0 0.0
        %432 = vmatprep.subr.mxu0 0.0
        %433 = vmatpush2.xpose.msra.mxu0 0.0
        %434 = vmatprep.subr.mxu0 0.0
        %435 = vmatpush2.xpose.msra.mxu0 0.0
        %436 = vmatprep.subr.mxu0 0.0
        %437 = vmatpush2.xpose.msra.mxu0 0.0
        %438 = vmatprep.subr.mxu0 0.0
        %439 = vmatpush2.xpose.msra.mxu0 0.0
        %440 = vmatprep.subr.mxu0 0.0
        %441 = vmatpush2.xpose.msra.mxu0 0.0
        %442 = vmatprep.subr.mxu0 0.0
        %443 = vmatpush2.xpose.msra.mxu0 0.0
        %444 = vmatprep.subr.mxu0 0.0
        %445 = vmatpush2.xpose.msra.mxu0 0.0
        %446 = vmatprep.subr.mxu0 0.0
        %447 = vmatpush2.xpose.msra.mxu0 0.0
        %448 = vmatprep.mubr.f32.mxu0 0.0
        %449 = vmatmul.mubr.f32.gmra.mxu0 %v373
        %v450 = vpop.f32.mrf.mxu0
        %v451 = vadd.f32 0.0, %v450
        %v452 = vpop.f32.mrf.mxu0
        %453 = vmatprep.mubr.f32.mxu0 0.0
        %454 = vmatmul.mubr.f32.gmra.mxu0 %v376
        %v455 = vpop.f32.mrf.mxu0
        %v456 = vadd.f32 0.0, %v455
        %v457 = vpop.f32.mrf.mxu0
        %458 = vdwg.mxu0
        %v460 = vsel %vm257, %v358, 0
        %v463 = vsel %vm257, %v359, 0
        %v466 = vsel %vm257, %v366, 0
        %v469 = vsel %vm257, %v367, 0
        %471 = vmatprep.subr.mxu0 0.0
        %472 = vmatpush1.xpose.msra.mxu0 0.0
        %473 = vmatprep.subr.mxu0 0.0
        %474 = vmatpush1.xpose.msra.mxu0 0.0
        %475 = vmatprep.subr.mxu0 0.0
        %476 = vmatpush1.xpose.msra.mxu0 0.0
        %477 = vmatprep.subr.mxu0 0.0
        %478 = vmatpush1.xpose.msra.mxu0 0.0
        %479 = vmatprep.subr.mxu0 0.0
        %480 = vmatpush1.xpose.msra.mxu0 0.0
        %481 = vmatprep.subr.mxu0 0.0
        %482 = vmatpush1.xpose.msra.mxu0 0.0
        %483 = vmatprep.subr.mxu0 0.0
        %484 = vmatpush1.xpose.msra.mxu0 0.0
        %485 = vmatprep.subr.mxu0 0.0
        %486 = vmatpush1.xpose.msra.mxu0 0.0
        %487 = vmatprep.subr.mxu0 0.0
        %488 = vmatpush1.xpose.msra.mxu0 0.0
        %489 = vmatprep.subr.mxu0 0.0
        %490 = vmatpush1.xpose.msra.mxu0 0.0
        %491 = vmatprep.subr.mxu0 0.0
        %492 = vmatpush1.xpose.msra.mxu0 0.0
        %493 = vmatprep.subr.mxu0 0.0
        %494 = vmatpush1.xpose.msra.mxu0 0.0
        %495 = vmatprep.subr.mxu0 0.0
        %496 = vmatpush1.xpose.msra.mxu0 0.0
        %497 = vmatprep.subr.mxu0 0.0
        %498 = vmatpush1.xpose.msra.mxu0 0.0
        %499 = vmatprep.subr.mxu0 0.0
        %500 = vmatpush1.xpose.msra.mxu0 %v469
        %501 = vmatprep.subr.mxu0 0.0
        %502 = vmatpush1.xpose.msra.mxu0 %v466
        %503 = vmatprep.subr.mxu0 0.0
        %504 = vmatpush2.xpose.msra.mxu0 0.0
        %505 = vmatprep.subr.mxu0 0.0
        %506 = vmatpush2.xpose.msra.mxu0 0.0
        %507 = vmatprep.subr.mxu0 0.0
        %508 = vmatpush2.xpose.msra.mxu0 0.0
        %509 = vmatprep.subr.mxu0 0.0
        %510 = vmatpush2.xpose.msra.mxu0 0.0
        %511 = vmatprep.subr.mxu0 0.0
        %512 = vmatpush2.xpose.msra.mxu0 0.0
        %513 = vmatprep.subr.mxu0 0.0
        %514 = vmatpush2.xpose.msra.mxu0 0.0
        %515 = vmatprep.subr.mxu0 0.0
        %516 = vmatpush2.xpose.msra.mxu0 0.0
        %517 = vmatprep.subr.mxu0 0.0
        %518 = vmatpush2.xpose.msra.mxu0 0.0
        %519 = vmatprep.subr.mxu0 0.0
        %520 = vmatpush2.xpose.msra.mxu0 0.0
        %521 = vmatprep.subr.mxu0 0.0
        %522 = vmatpush2.xpose.msra.mxu0 0.0
        %523 = vmatprep.subr.mxu0 0.0
        %524 = vmatpush2.xpose.msra.mxu0 0.0
        %525 = vmatprep.subr.mxu0 0.0
        %526 = vmatpush2.xpose.msra.mxu0 0.0
        %527 = vmatprep.subr.mxu0 0.0
        %528 = vmatpush2.xpose.msra.mxu0 0.0
        %529 = vmatprep.subr.mxu0 0.0
        %530 = vmatpush2.xpose.msra.mxu0 0.0
        %531 = vmatprep.subr.mxu0 0.0
        %532 = vmatpush2.xpose.msra.mxu0 0.0
        %533 = vmatprep.subr.mxu0 0.0
        %534 = vmatpush2.xpose.msra.mxu0 0.0
        %535 = vmatprep.mubr.f32.mxu0 0.0
        %536 = vmatmul.mubr.f32.gmra.mxu0 %v460
        %v537 = vpop.f32.mrf.mxu0
        %v538 = vadd.f32 0.0, %v537
        %v539 = vpop.f32.mrf.mxu0
        %540 = vmatprep.mubr.f32.mxu0 0.0
        %541 = vmatmul.mubr.f32.gmra.mxu0 %v463
        %v542 = vpop.f32.mrf.mxu0
        %v543 = vadd.f32 0.0, %v542
        %v544 = vpop.f32.mrf.mxu0
        %545 = vdwg.mxu0
        %v547 = vsel %vm257, %v360, 0
        %v550 = vsel %vm257, %v361, 0
        %v553 = vsel %vm257, %v368, 0
        %v556 = vsel %vm257, %v369, 0
        %558 = vmatprep.subr.mxu0 0.0
        %559 = vmatpush1.xpose.msra.mxu0 0.0
        %560 = vmatprep.subr.mxu0 0.0
        %561 = vmatpush1.xpose.msra.mxu0 0.0
        %562 = vmatprep.subr.mxu0 0.0
        %563 = vmatpush1.xpose.msra.mxu0 0.0
        %564 = vmatprep.subr.mxu0 0.0
        %565 = vmatpush1.xpose.msra.mxu0 0.0
        %566 = vmatprep.subr.mxu0 0.0
        %567 = vmatpush1.xpose.msra.mxu0 0.0
        %568 = vmatprep.subr.mxu0 0.0
        %569 = vmatpush1.xpose.msra.mxu0 0.0
        %570 = vmatprep.subr.mxu0 0.0
        %571 = vmatpush1.xpose.msra.mxu0 0.0
        %572 = vmatprep.subr.mxu0 0.0
        %573 = vmatpush1.xpose.msra.mxu0 0.0
        %574 = vmatprep.subr.mxu0 0.0
        %575 = vmatpush1.xpose.msra.mxu0 0.0
        %576 = vmatprep.subr.mxu0 0.0
        %577 = vmatpush1.xpose.msra.mxu0 0.0
        %578 = vmatprep.subr.mxu0 0.0
        %579 = vmatpush1.xpose.msra.mxu0 0.0
        %580 = vmatprep.subr.mxu0 0.0
        %581 = vmatpush1.xpose.msra.mxu0 0.0
        %582 = vmatprep.subr.mxu0 0.0
        %583 = vmatpush1.xpose.msra.mxu0 0.0
        %584 = vmatprep.subr.mxu0 0.0
        %585 = vmatpush1.xpose.msra.mxu0 0.0
        %586 = vmatprep.subr.mxu0 0.0
        %587 = vmatpush1.xpose.msra.mxu0 %v556
        %588 = vmatprep.subr.mxu0 0.0
        %589 = vmatpush1.xpose.msra.mxu0 %v553
        %590 = vmatprep.subr.mxu0 0.0
        %591 = vmatpush2.xpose.msra.mxu0 0.0
        %592 = vmatprep.subr.mxu0 0.0
        %593 = vmatpush2.xpose.msra.mxu0 0.0
        %594 = vmatprep.subr.mxu0 0.0
        %595 = vmatpush2.xpose.msra.mxu0 0.0
        %596 = vmatprep.subr.mxu0 0.0
        %597 = vmatpush2.xpose.msra.mxu0 0.0
        %598 = vmatprep.subr.mxu0 0.0
        %599 = vmatpush2.xpose.msra.mxu0 0.0
        %600 = vmatprep.subr.mxu0 0.0
        %601 = vmatpush2.xpose.msra.mxu0 0.0
        %602 = vmatprep.subr.mxu0 0.0
        %603 = vmatpush2.xpose.msra.mxu0 0.0
        %604 = vmatprep.subr.mxu0 0.0
        %605 = vmatpush2.xpose.msra.mxu0 0.0
        %606 = vmatprep.subr.mxu0 0.0
        %607 = vmatpush2.xpose.msra.mxu0 0.0
        %608 = vmatprep.subr.mxu0 0.0
        %609 = vmatpush2.xpose.msra.mxu0 0.0
        %610 = vmatprep.subr.mxu0 0.0
        %611 = vmatpush2.xpose.msra.mxu0 0.0
        %612 = vmatprep.subr.mxu0 0.0
        %613 = vmatpush2.xpose.msra.mxu0 0.0
        %614 = vmatprep.subr.mxu0 0.0
        %615 = vmatpush2.xpose.msra.mxu0 0.0
        %616 = vmatprep.subr.mxu0 0.0
        %617 = vmatpush2.xpose.msra.mxu0 0.0
        %618 = vmatprep.subr.mxu0 0.0
        %619 = vmatpush2.xpose.msra.mxu0 0.0
        %620 = vmatprep.subr.mxu0 0.0
        %621 = vmatpush2.xpose.msra.mxu0 0.0
        %622 = vmatprep.mubr.f32.mxu0 0.0
        %623 = vmatmul.mubr.f32.gmra.mxu0 %v547
        %v624 = vpop.f32.mrf.mxu0
        %v625 = vadd.f32 0.0, %v624
        %v626 = vpop.f32.mrf.mxu0
        %627 = vmatprep.mubr.f32.mxu0 0.0
        %628 = vmatmul.mubr.f32.gmra.mxu0 %v550
        %v629 = vpop.f32.mrf.mxu0
        %v630 = vadd.f32 0.0, %v629
        %v631 = vpop.f32.mrf.mxu0
        %632 = vdwg.mxu0
        %v634 = vsel %vm257, %v362, 0
        %v637 = vsel %vm257, %v363, 0
        %v640 = vsel %vm257, %v370, 0
        %v643 = vsel %vm257, %v371, 0
        %645 = vmatprep.subr.mxu0 0.0
        %646 = vmatpush1.xpose.msra.mxu0 0.0
        %647 = vmatprep.subr.mxu0 0.0
        %648 = vmatpush1.xpose.msra.mxu0 0.0
        %649 = vmatprep.subr.mxu0 0.0
        %650 = vmatpush1.xpose.msra.mxu0 0.0
        %651 = vmatprep.subr.mxu0 0.0
        %652 = vmatpush1.xpose.msra.mxu0 0.0
        %653 = vmatprep.subr.mxu0 0.0
        %654 = vmatpush1.xpose.msra.mxu0 0.0
        %655 = vmatprep.subr.mxu0 0.0
        %656 = vmatpush1.xpose.msra.mxu0 0.0
        %657 = vmatprep.subr.mxu0 0.0
        %658 = vmatpush1.xpose.msra.mxu0 0.0
        %659 = vmatprep.subr.mxu0 0.0
        %660 = vmatpush1.xpose.msra.mxu0 0.0
        %661 = vmatprep.subr.mxu0 0.0
        %662 = vmatpush1.xpose.msra.mxu0 0.0
        %663 = vmatprep.subr.mxu0 0.0
        %664 = vmatpush1.xpose.msra.mxu0 0.0
        %665 = vmatprep.subr.mxu0 0.0
        %666 = vmatpush1.xpose.msra.mxu0 0.0
        %667 = vmatprep.subr.mxu0 0.0
        %668 = vmatpush1.xpose.msra.mxu0 0.0
        %669 = vmatprep.subr.mxu0 0.0
        %670 = vmatpush1.xpose.msra.mxu0 0.0
        %671 = vmatprep.subr.mxu0 0.0
        %672 = vmatpush1.xpose.msra.mxu0 0.0
        %673 = vmatprep.subr.mxu0 0.0
        %674 = vmatpush1.xpose.msra.mxu0 %v643
        %675 = vmatprep.subr.mxu0 0.0
        %676 = vmatpush1.xpose.msra.mxu0 %v640
        %677 = vmatprep.subr.mxu0 0.0
        %678 = vmatpush2.xpose.msra.mxu0 0.0
        %679 = vmatprep.subr.mxu0 0.0
        %680 = vmatpush2.xpose.msra.mxu0 0.0
        %681 = vmatprep.subr.mxu0 0.0
        %682 = vmatpush2.xpose.msra.mxu0 0.0
        %683 = vmatprep.subr.mxu0 0.0
        %684 = vmatpush2.xpose.msra.mxu0 0.0
        %685 = vmatprep.subr.mxu0 0.0
        %686 = vmatpush2.xpose.msra.mxu0 0.0
        %687 = vmatprep.subr.mxu0 0.0
        %688 = vmatpush2.xpose.msra.mxu0 0.0
        %689 = vmatprep.subr.mxu0 0.0
        %690 = vmatpush2.xpose.msra.mxu0 0.0
        %691 = vmatprep.subr.mxu0 0.0
        %692 = vmatpush2.xpose.msra.mxu0 0.0
        %693 = vmatprep.subr.mxu0 0.0
        %694 = vmatpush2.xpose.msra.mxu0 0.0
        %695 = vmatprep.subr.mxu0 0.0
        %696 = vmatpush2.xpose.msra.mxu0 0.0
        %697 = vmatprep.subr.mxu0 0.0
        %698 = vmatpush2.xpose.msra.mxu0 0.0
        %699 = vmatprep.subr.mxu0 0.0
        %700 = vmatpush2.xpose.msra.mxu0 0.0
        %701 = vmatprep.subr.mxu0 0.0
        %702 = vmatpush2.xpose.msra.mxu0 0.0
        %703 = vmatprep.subr.mxu0 0.0
        %704 = vmatpush2.xpose.msra.mxu0 0.0
        %705 = vmatprep.subr.mxu0 0.0
        %706 = vmatpush2.xpose.msra.mxu0 0.0
        %707 = vmatprep.subr.mxu0 0.0
        %708 = vmatpush2.xpose.msra.mxu0 0.0
        %709 = vmatprep.mubr.f32.mxu0 0.0
        %710 = vmatmul.mubr.f32.gmra.mxu0 %v634
        %v711 = vpop.f32.mrf.mxu0
        %v712 = vadd.f32 0.0, %v711
        %v713 = vpop.f32.mrf.mxu0
        %714 = vmatprep.mubr.f32.mxu0 0.0
        %715 = vmatmul.mubr.f32.gmra.mxu0 %v637
        %v716 = vpop.f32.mrf.mxu0
        %v717 = vadd.f32 0.0, %v716
        %v718 = vpop.f32.mrf.mxu0
        %719 = vdwg.mxu0
        %v720 = vmul.f32 %v451, %v451
        %v721 = vmul.f32 %v456, %v456
        %v722 = vmul.f32 %v538, %v538
        %v723 = vmul.f32 %v543, %v543
        %v724 = vmul.f32 %v625, %v625
        %v725 = vmul.f32 %v630, %v630
        %v726 = vmul.f32 %v712, %v712
        %v727 = vmul.f32 %v717, %v717
        %v728 = vsel %vm257, %v720, 0.0
        %729 = vadd.xlane.f32.xlu0 %v728
        %v730 = vpop.xlane.xlu0 %729
        %v731 = vsel %vm257, %v721, 0.0
        %732 = vadd.xlane.f32.xlu0 %v731
        %v733 = vpop.xlane.xlu0 %732
        %v734 = vsel %vm257, %v722, 0.0
        %735 = vadd.xlane.f32.xlu0 %v734
        %v736 = vpop.xlane.xlu0 %735
        %v737 = vsel %vm257, %v723, 0.0
        %738 = vadd.xlane.f32.xlu0 %v737
        %v739 = vpop.xlane.xlu0 %738
        %v740 = vsel %vm257, %v724, 0.0
        %741 = vadd.xlane.f32.xlu0 %v740
        %v742 = vpop.xlane.xlu0 %741
        %v743 = vsel %vm257, %v725, 0.0
        %744 = vadd.xlane.f32.xlu0 %v743
        %v745 = vpop.xlane.xlu0 %744
        %v746 = vsel %vm257, %v726, 0.0
        %747 = vadd.xlane.f32.xlu0 %v746
        %v748 = vpop.xlane.xlu0 %747
        %v749 = vsel %vm257, %v727, 0.0
        %750 = vadd.xlane.f32.xlu0 %v749
        %v751 = vpop.xlane.xlu0 %750
        %v752 = vadd.f32 %v730, %v733
        %v753 = vrot.slane %v752, 4
        %v754 = vadd.f32 %v752, %v753
        %v755 = vrot.slane %v754, 2
        %v756 = vadd.f32 %v754, %v755
        %v757 = vrot.slane %v756, 1
        %v758 = vadd.f32 %v756, %v757
        %v759 = vadd.f32 %v736, %v739
        %v760 = vrot.slane %v759, 4
        %v761 = vadd.f32 %v759, %v760
        %v762 = vrot.slane %v761, 2
        %v763 = vadd.f32 %v761, %v762
        %v764 = vrot.slane %v763, 1
        %v765 = vadd.f32 %v763, %v764
        %v766 = vadd.f32 %v742, %v745
        %v767 = vrot.slane %v766, 4
        %v768 = vadd.f32 %v766, %v767
        %v769 = vrot.slane %v768, 2
        %v770 = vadd.f32 %v768, %v769
        %v771 = vrot.slane %v770, 1
        %v772 = vadd.f32 %v770, %v771
        %v773 = vadd.f32 %v748, %v751
        %v774 = vrot.slane %v773, 4
        %v775 = vadd.f32 %v773, %v774
        %v776 = vrot.slane %v775, 2
        %v777 = vadd.f32 %v775, %v776
        %v778 = vrot.slane %v777, 1
        %v779 = vadd.f32 %v777, %v778
        %v780 = vrsqrt.pop %v758
        %v781 = vmul.f32 %v758, %v780
        %vm782 = vcmp.eq.f32.partialorder %v758, inf
        %v783 = vsel %vm782, %v758, %v781
        %vm784 = vcmp.eq.f32.partialorder %v758, 0.0
        %v785 = vand.u32 %v758, 2147483648
        %v786 = vsel %vm784, %v785, %v783
        %v787 = vrsqrt.pop %v765
        %v788 = vmul.f32 %v765, %v787
        %vm789 = vcmp.eq.f32.partialorder %v765, inf
        %v790 = vsel %vm789, %v765, %v788
        %vm791 = vcmp.eq.f32.partialorder %v765, 0.0
        %v792 = vand.u32 %v765, 2147483648
        %v793 = vsel %vm791, %v792, %v790
        %v794 = vrsqrt.pop %v772
        %v795 = vmul.f32 %v772, %v794
        %vm796 = vcmp.eq.f32.partialorder %v772, inf
        %v797 = vsel %vm796, %v772, %v795
        %vm798 = vcmp.eq.f32.partialorder %v772, 0.0
        %v799 = vand.u32 %v772, 2147483648
        %v800 = vsel %vm798, %v799, %v797
        %v801 = vrsqrt.pop %v779
        %v802 = vmul.f32 %v779, %v801
        %vm803 = vcmp.eq.f32.partialorder %v779, inf
        %v804 = vsel %vm803, %v779, %v802
        %vm805 = vcmp.eq.f32.partialorder %v779, 0.0
        %v806 = vand.u32 %v779, 2147483648
        %v807 = vsel %vm805, %v806, %v804
        %v808 = vmax.f32 %v786, 1e-12
        %v809 = vmax.f32 %v793, 1e-12
        %v810 = vmax.f32 %v800, 1e-12
        %v811 = vmax.f32 %v807, 1e-12
        %v812 = vrcp.pop %v808
        %v813 = vmul.f32 1.0, %v812
        %v814 = vrcp.pop %v809
        %v815 = vmul.f32 1.0, %v814
        %v816 = vrcp.pop %v810
        %v817 = vmul.f32 1.0, %v816
        %v818 = vrcp.pop %v811
        %v819 = vmul.f32 1.0, %v818
        %v820 = vmul.f32 %v451, %v813
        %v821 = vmul.f32 %v456, %v813
        %v822 = vmul.f32 %v538, %v815
        %v823 = vmul.f32 %v543, %v815
        %v824 = vmul.f32 %v625, %v817
        %v825 = vmul.f32 %v630, %v817
        %v826 = vmul.f32 %v712, %v819
        %v827 = vmul.f32 %v717, %v819
        %828 = vst.msk [vmem:[%s193] sm:$0xff] %vm257, %v820
        %829 = vst.msk [vmem:[%s193 + $0x8] sm:$0xff] %vm257, %v821
        %830 = vst.msk [vmem:[%s193 + $0x10] sm:$0xff] %vm257, %v822
        %831 = vst.msk [vmem:[%s193 + $0x18] sm:$0xff] %vm257, %v823
        %832 = vst.msk [vmem:[%s193 + $0x20] sm:$0xff] %vm257, %v824
        %833 = vst.msk [vmem:[%s193 + $0x28] sm:$0xff] %vm257, %v825
        %834 = vst.msk [vmem:[%s193 + $0x30] sm:$0xff] %vm257, %v826
        %835 = vst.msk [vmem:[%s193 + $0x38] sm:$0xff] %vm257, %v827
        %s836 = sand.u32 %s103, 1
        %s837 = scalar_lea.sflag [#allocation3], %s836
        %s838 = sand.u32 %s103, 1
        %s839 = smul.addr %s838, 64
        %s840 = scalar_lea.vmem [#allocation2], %s839
        // Predicated region
        $region33: #{_lambda_.11} parent=31 // pred_check
          %p841 = pneg %p113
        $region34: #{_lambda_.11} parent=31 // pred_check_branch
          %843 = sbr.rel (%p841) target = $region36
        $region35: #{_lambda_.11} parent=31 // pred_region
          %s845 = ssub.s32 1024, 1024
          %846 = vsyncadd %s837, %s845
          %s847 = smul.addr %s17, 8
          %s848 = smul.addr %s847, 128
          %s849 = scalar_lea.hbm %s3, %s848
          %s850 = sshll.u32 %s840, 4
          %s851 = int_to_ptr.vmem [resolvable:$true] %s850
          %856 = dma.vmem_to_hbm [thread:$0]  %s851, 1024, %s849, %s837, 128, 128, 8
        $region36: #{_lambda_.11} parent=31 // pred_fallthru
          _
      $region32: #{_lambda_.11} parent=5 // pred_fallthru
        _
      %p857 = scmp.le.s32.totalorder 2, %s12
      // Predicated region
      $region37: #{_lambda_.11} parent=5 // pred_check
        %p858 = pneg %p857
      $region38: #{_lambda_.11} parent=5 // pred_check_branch
        %860 = sbr.rel (%p858) target = $region40
      $region39: #{_lambda_.11} parent=5 // pred_region
        %s861 = ssub.s32 %s12, 2
        // Predicated region
        $region41: #{_lambda_.11} parent=39 // pred_check
          %p862 = pneg %p119
        $region42: #{_lambda_.11} parent=39 // pred_check_branch
          %864 = sbr.rel (%p862) target = $region44
        $region43: #{_lambda_.11} parent=39 // pred_region
          %s865 = sand.u32 %s104, 1
          %s866 = scalar_lea.sflag [#allocation3], %s865
          %s867 = sand.u32 %s104, 1
          %s868 = smul.addr %s867, 64
          %s869 = scalar_lea.vmem [#allocation2], %s868
          %870 = dma.done %s866, 1024
        $region44: #{_lambda_.11} parent=39 // pred_fallthru
          _
      $region40: #{_lambda_.11} parent=5 // pred_fallthru
        _
    $region6: #{_lambda_.11} parent=1 // loop_footer
      %s16 = sadd.s32 1, %s12
    $region7: #{_lambda_.11} parent=1 // loop_footer_branch
      %11 = sbr.rel target = $region3
    $region8: #{_lambda_.11} parent=1 // loop_exit
      _
    %871 = vsyncpa [#allocation3], 1
    %s872 = scalar_lea.sflag [#allocation3], 1
    %873 = vsyncpa %s872, 1

</llo_original>
